<compile_context>
chip_gen: v6e
topology: v6e:2x2x1
jax: 0.10.0
libtpu: 0.0.40
codegen_flags: <defaults>
</compile_context>

<pallas_src>
import jax
import jax.numpy as jnp
from jax.experimental import pallas as pl
from jax.experimental.pallas import tpu as pltpu

IN_CH = 2        # in_ch
FC_OUT = 16      # fc_out
HID = 128        # lstm_ch_hidden
OUT_CH = 2       # out_ch_final
SUBLANE = 8      # f32 sublane granularity
LANE = 128       # lane width (padded output columns)


def _sigmoid(x):
    # logistic-as-tanh: one EUP op instead of exp + divide
    return 0.5 * jnp.tanh(0.5 * x) + 0.5


def decoder_kernel(
    # inputs
    x_ref,        # (T*Bp, IN_CH)   time-major, batch padded to Bp
    h0_ref,       # (Bp, HID)
    c0_ref,       # (Bp, HID)
    wc_ref,       # (IN_CH, 4*HID)  folded: wl @ wih   (gate order i, f, g, o)
    bc_ref,       # (1, 4*HID)      folded: bl @ wih + bih + bhh
    whh_i_ref,    # (HID, HID)
    whh_f_ref,    # (HID, HID)
    whh_g_ref,    # (HID, HID)
    whh_o_ref,    # (HID, HID)
    w1_ref,       # (HID, HID)
    b1_ref,       # (1, HID)
    w2_ref,       # (HID, LANE)     lane-padded (real columns: OUT_CH)
    b2_ref,       # (1, LANE)
    # outputs
    y_ref,        # (T*Bp, LANE)    time-major, lane-dense
    hout_ref,     # (Bp, HID)
    cout_ref,     # (Bp, HID)
    # scratch
    gates_x,      # VMEM (T*Bp, 4*HID): input contribution to the gates
):
    H = HID
    Bp = h0_ref.shape[0]
    T = x_ref.shape[0] // Bp

    # One batched pass covering every timestep (runs once, off the serial
    # critical path).  K = IN_CH is degenerate for the MXU but tiny.
    gates_x[...] = (jnp.dot(x_ref[...], wc_ref[...],
                            preferred_element_type=jnp.float32) + bc_ref[...])

    h = h0_ref[...]                                    # (Bp, H)  -> one vreg
    c = c0_ref[...]                                    # (Bp, H)  -> one vreg

    # Unrolled recurrence (T is small and static).  Per step: four (Bp,H)x(H,H)
    # gate matmuls (i,f,g issued before o so their nonlinearities overlap the
    # MXU drain) + the per-timestep output MLP as free MXU filler.
    for t in range(T):
        row = t * Bp
        gi = gates_x[row:row + Bp, 0 * H:1 * H] + jnp.dot(
            h, whh_i_ref[...], preferred_element_type=jnp.float32)
        gf = gates_x[row:row + Bp, 1 * H:2 * H] + jnp.dot(
            h, whh_f_ref[...], preferred_element_type=jnp.float32)
        gg = gates_x[row:row + Bp, 2 * H:3 * H] + jnp.dot(
            h, whh_g_ref[...], preferred_element_type=jnp.float32)
        i_g = _sigmoid(gi)
        f_g = _sigmoid(gf)
        g_g = jnp.tanh(gg)
        c = f_g * c + i_g * g_g

        go = gates_x[row:row + Bp, 3 * H:4 * H] + jnp.dot(
            h, whh_o_ref[...], preferred_element_type=jnp.float32)
        o_g = _sigmoid(go)
        h = o_g * jnp.tanh(c)

        # Output MLP for timestep t: independent of step t+1's recurrence, so
        # the scheduler can hide it under the next step's dependency stalls.
        z = jnp.tanh(jnp.dot(h, w1_ref[...],
                             preferred_element_type=jnp.float32) + b1_ref[...])
        y_ref[row:row + Bp, :] = (jnp.dot(z, w2_ref[...],
                                          preferred_element_type=jnp.float32)
                                  + b2_ref[...])

    hout_ref[...] = h
    cout_ref[...] = c


def prepare_params(params):
    """One-time parameter prep: fold the input Linear into the LSTM input
    projection, split whh per gate, and lane-pad the final Linear."""
    wl, bl, wih, whh, bih, bhh, w1, b1, w2, b2 = params
    wc = wl @ wih                                   # (IN_CH, 4H)
    bc = bl @ wih + bih + bhh                       # (1, 4H)
    whh_i = whh[:, 0 * HID:1 * HID]
    whh_f = whh[:, 1 * HID:2 * HID]
    whh_g = whh[:, 2 * HID:3 * HID]
    whh_o = whh[:, 3 * HID:4 * HID]
    w2p = jnp.zeros((HID, LANE), jnp.float32).at[:, :OUT_CH].set(w2)
    b2p = jnp.zeros((1, LANE), jnp.float32).at[:, :OUT_CH].set(b2)
    return (wc, bc, whh_i, whh_f, whh_g, whh_o, w1, b1, w2p, b2p)


@jax.jit
def decoder_forward(x, h0, c0, prepped):
    """x: (B, T, IN_CH); h0/c0: (1, B, HID); prepped from prepare_params.
    Returns (y, h_T, c_T) matching the PyTorch Decoder forward."""
    B, T, _ = x.shape
    Bp = max(SUBLANE, ((B + SUBLANE - 1) // SUBLANE) * SUBLANE)

    # Pad batch to sublane granularity and go time-major (all inside jit).
    x_p = jnp.zeros((Bp, T, IN_CH), jnp.float32).at[:B].set(x)
    x_tb = jnp.transpose(x_p, (1, 0, 2)).reshape(T * Bp, IN_CH)
    h0_p = jnp.zeros((Bp, HID), jnp.float32).at[:B].set(h0[0])
    c0_p = jnp.zeros((Bp, HID), jnp.float32).at[:B].set(c0[0])

    vmem = pl.BlockSpec(memory_space=pltpu.MemorySpace.VMEM)
    out_shape = (
        jax.ShapeDtypeStruct((T * Bp, LANE), jnp.float32),
        jax.ShapeDtypeStruct((Bp, HID), jnp.float32),
        jax.ShapeDtypeStruct((Bp, HID), jnp.float32),
    )
    y_flat, h_p, c_p = pl.pallas_call(
        decoder_kernel,
        out_shape=out_shape,
        in_specs=[vmem] * (3 + len(prepped)),
        out_specs=(vmem, vmem, vmem),
        scratch_shapes=[
            pltpu.VMEM((T * Bp, 4 * HID), jnp.float32),
        ],
    )(x_tb, h0_p, c0_p, *prepped)

    y = jnp.transpose(y_flat.reshape(T, Bp, LANE), (1, 0, 2))[:B, :, :OUT_CH]
    return y, h_p[:B][None], c_p[:B][None]


def init_params(key):
    """Deterministic synthetic parameters (PyTorch-style uniform init)."""
    ks = jax.random.split(key, 10)

    def u(k, shape, fan_in):
        bound = 1.0 / jnp.sqrt(fan_in)
        return jax.random.uniform(k, shape, jnp.float32, -bound, bound)

    wl = u(ks[0], (IN_CH, FC_OUT), IN_CH)          # Linear(in_ch, fc_out), stored (in, out)
    bl = u(ks[1], (1, FC_OUT), IN_CH)
    wih = u(ks[2], (FC_OUT, 4 * HID), HID)         # LSTM W_ih^T, gate order i,f,g,o
    whh = u(ks[3], (HID, 4 * HID), HID)            # LSTM W_hh^T
    bih = u(ks[4], (1, 4 * HID), HID)
    bhh = u(ks[5], (1, 4 * HID), HID)
    w1 = u(ks[6], (HID, HID), HID)                 # out[0]: Linear(hidden, hidden)
    b1 = u(ks[7], (1, HID), HID)
    w2 = u(ks[8], (HID, OUT_CH), HID)              # out[2]: Linear(hidden, out_ch)
    b2 = u(ks[9], (1, OUT_CH), HID)
    return (wl, bl, wih, whh, bih, bhh, w1, b1, w2, b2)


def decoder_reference(x, h0, c0, params):
    """Pure-JAX reference matching PyTorch semantics (for verification)."""
    wl, bl, wih, whh, bih, bhh, w1, b1, w2, b2 = params
    B, T, _ = x.shape
    xt = x @ wl + bl                               # (B, T, FC_OUT)
    h, c = h0[0], c0[0]
    hs = []
    for t in range(T):
        gates = xt[:, t, :] @ wih + h @ whh + bih + bhh
        i = jax.nn.sigmoid(gates[:, 0 * HID:1 * HID])
        f = jax.nn.sigmoid(gates[:, 1 * HID:2 * HID])
        g = jnp.tanh(gates[:, 2 * HID:3 * HID])
        o = jax.nn.sigmoid(gates[:, 3 * HID:4 * HID])
        c = f * c + i * g
        h = o * jnp.tanh(c)
        hs.append(h)
    lstm_out = jnp.stack(hs, axis=1)               # (B, T, HID)
    z = jnp.tanh(lstm_out @ w1 + b1)
    y = z @ w2 + b2
    return y, h[None], c[None]


if __name__ == "__main__":
    key = jax.random.PRNGKey(0)
    k_x, k_h, k_c, k_p = jax.random.split(key, 4)

    B, T = 2, 8
    x = jax.random.normal(k_x, (B, T, IN_CH), jnp.float32)      # (batch, seq, in_ch)
    h0 = jax.random.normal(k_h, (1, B, HID), jnp.float32)       # (num_layers, batch, hidden)
    c0 = jax.random.normal(k_c, (1, B, HID), jnp.float32)
    params = init_params(k_p)

    prepped = prepare_params(params)                            # one-time param prep
    y, h_out, c_out = decoder_forward(x, h0, c0, prepped)
    jax.block_until_ready((y, h_out, c_out))

    y_ref, h_ref, c_ref = decoder_reference(x, h0, c0, params)
    assert jnp.allclose(y, y_ref, rtol=1e-3, atol=1e-3)
    assert jnp.allclose(h_out, h_ref, rtol=1e-3, atol=1e-3)
    assert jnp.allclose(c_out, c_ref, rtol=1e-3, atol=1e-3)

    print("KERNEL_OK")
</pallas_src>

<mosaic_0001>
module attributes {stable_mosaic.version = 11 : i64} {
  func.func @decoder_kernel(%arg0: memref<64x2xf32, #tpu.memory_space<vmem>>, %arg1: memref<8x128xf32, #tpu.memory_space<vmem>>, %arg2: memref<8x128xf32, #tpu.memory_space<vmem>>, %arg3: memref<2x512xf32, #tpu.memory_space<vmem>>, %arg4: memref<1x512xf32, #tpu.memory_space<vmem>>, %arg5: memref<128x128xf32, #tpu.memory_space<vmem>>, %arg6: memref<128x128xf32, #tpu.memory_space<vmem>>, %arg7: memref<128x128xf32, #tpu.memory_space<vmem>>, %arg8: memref<128x128xf32, #tpu.memory_space<vmem>>, %arg9: memref<128x128xf32, #tpu.memory_space<vmem>>, %arg10: memref<1x128xf32, #tpu.memory_space<vmem>>, %arg11: memref<128x128xf32, #tpu.memory_space<vmem>>, %arg12: memref<1x128xf32, #tpu.memory_space<vmem>>, %arg13: memref<64x128xf32, #tpu.memory_space<vmem>>, %arg14: memref<8x128xf32, #tpu.memory_space<vmem>>, %arg15: memref<8x128xf32, #tpu.memory_space<vmem>>, %arg16: memref<64x512xf32, #tpu.memory_space<vmem>>) attributes {dimension_semantics = [], scalar_prefetch = 0 : i64, scratch_operands = 1 : i64, tpu.core_type = #tpu.core_type<tc>} {
    %c0 = arith.constant 0 : index
    %c0_0 = arith.constant 0 : index
    %0 = vector.load %arg0[%c0, %c0_0] : memref<64x2xf32, #tpu.memory_space<vmem>>, vector<64x2xf32>
    %c0_1 = arith.constant 0 : index
    %c0_2 = arith.constant 0 : index
    %1 = vector.load %arg3[%c0_1, %c0_2] : memref<2x512xf32, #tpu.memory_space<vmem>>, vector<2x512xf32>
    %cst = arith.constant dense<0.000000e+00> : vector<64x512xf32>
    %2 = tpu.matmul %0, %1, %cst {dimension_numbers = #tpu.dot_dimension_numbers<[1], [0], [0], [1], [0, 0, 1, 1], [], []>} : vector<64x2xf32>, vector<2x512xf32>, vector<64x512xf32> -> vector<64x512xf32>
    %c0_3 = arith.constant 0 : index
    %c0_4 = arith.constant 0 : index
    %3 = vector.load %arg4[%c0_3, %c0_4] : memref<1x512xf32, #tpu.memory_space<vmem>>, vector<1x512xf32>
    %4 = vector.broadcast %3 : vector<1x512xf32> to vector<64x512xf32>
    %5 = arith.addf %2, %4 : vector<64x512xf32>
    %c0_5 = arith.constant 0 : index
    %c0_6 = arith.constant 0 : index
    %6 = vector.load %arg16[%c0_5, %c0_6] : memref<64x512xf32, #tpu.memory_space<vmem>>, vector<64x512xf32>
    tpu.vector_store %arg16[%c0_5, %c0_6], %5 {strides = array<i32>} : memref<64x512xf32, #tpu.memory_space<vmem>>, vector<64x512xf32>,
    %c0_7 = arith.constant 0 : index
    %c0_8 = arith.constant 0 : index
    %7 = vector.load %arg1[%c0_7, %c0_8] : memref<8x128xf32, #tpu.memory_space<vmem>>, vector<8x128xf32>
    %c0_9 = arith.constant 0 : index
    %c0_10 = arith.constant 0 : index
    %8 = vector.load %arg2[%c0_9, %c0_10] : memref<8x128xf32, #tpu.memory_space<vmem>>, vector<8x128xf32>
    %c0_11 = arith.constant 0 : index
    %c0_12 = arith.constant 0 : index
    %9 = vector.load %arg16[%c0_11, %c0_12] : memref<64x512xf32, #tpu.memory_space<vmem>>, vector<8x128xf32>
    %c0_13 = arith.constant 0 : index
    %c0_14 = arith.constant 0 : index
    %10 = vector.load %arg5[%c0_13, %c0_14] : memref<128x128xf32, #tpu.memory_space<vmem>>, vector<128x128xf32>
    %cst_15 = arith.constant dense<0.000000e+00> : vector<8x128xf32>
    %11 = tpu.matmul %7, %10, %cst_15 {dimension_numbers = #tpu.dot_dimension_numbers<[1], [0], [0], [1], [0, 0, 1, 1], [], []>} : vector<8x128xf32>, vector<128x128xf32>, vector<8x128xf32> -> vector<8x128xf32>
    %12 = arith.addf %9, %11 : vector<8x128xf32>
    %c0_16 = arith.constant 0 : index
    %c128 = arith.constant 128 : index
    %13 = vector.load %arg16[%c0_16, %c128] : memref<64x512xf32, #tpu.memory_space<vmem>>, vector<8x128xf32>
    %c0_17 = arith.constant 0 : index
    %c0_18 = arith.constant 0 : index
    %14 = vector.load %arg6[%c0_17, %c0_18] : memref<128x128xf32, #tpu.memory_space<vmem>>, vector<128x128xf32>
    %cst_19 = arith.constant dense<0.000000e+00> : vector<8x128xf32>
    %15 = tpu.matmul %7, %14, %cst_19 {dimension_numbers = #tpu.dot_dimension_numbers<[1], [0], [0], [1], [0, 0, 1, 1], [], []>} : vector<8x128xf32>, vector<128x128xf32>, vector<8x128xf32> -> vector<8x128xf32>
    %16 = arith.addf %13, %15 : vector<8x128xf32>
    %c0_20 = arith.constant 0 : index
    %c256 = arith.constant 256 : index
    %17 = vector.load %arg16[%c0_20, %c256] : memref<64x512xf32, #tpu.memory_space<vmem>>, vector<8x128xf32>
    %c0_21 = arith.constant 0 : index
    %c0_22 = arith.constant 0 : index
    %18 = vector.load %arg7[%c0_21, %c0_22] : memref<128x128xf32, #tpu.memory_space<vmem>>, vector<128x128xf32>
    %cst_23 = arith.constant dense<0.000000e+00> : vector<8x128xf32>
    %19 = tpu.matmul %7, %18, %cst_23 {dimension_numbers = #tpu.dot_dimension_numbers<[1], [0], [0], [1], [0, 0, 1, 1], [], []>} : vector<8x128xf32>, vector<128x128xf32>, vector<8x128xf32> -> vector<8x128xf32>
    %20 = arith.addf %17, %19 : vector<8x128xf32>
    %cst_24 = arith.constant 5.000000e-01 : f32
    %21 = vector.broadcast %cst_24 : f32 to vector<8x128xf32>
    %22 = arith.mulf %21, %12 : vector<8x128xf32>
    %23 = math.tanh %22 : vector<8x128xf32>
    %cst_25 = arith.constant 5.000000e-01 : f32
    %24 = vector.broadcast %cst_25 : f32 to vector<8x128xf32>
    %25 = arith.mulf %24, %23 : vector<8x128xf32>
    %cst_26 = arith.constant 5.000000e-01 : f32
    %26 = vector.broadcast %cst_26 : f32 to vector<8x128xf32>
    %27 = arith.addf %25, %26 : vector<8x128xf32>
    %cst_27 = arith.constant 5.000000e-01 : f32
    %28 = vector.broadcast %cst_27 : f32 to vector<8x128xf32>
    %29 = arith.mulf %28, %16 : vector<8x128xf32>
    %30 = math.tanh %29 : vector<8x128xf32>
    %cst_28 = arith.constant 5.000000e-01 : f32
    %31 = vector.broadcast %cst_28 : f32 to vector<8x128xf32>
    %32 = arith.mulf %31, %30 : vector<8x128xf32>
    %cst_29 = arith.constant 5.000000e-01 : f32
    %33 = vector.broadcast %cst_29 : f32 to vector<8x128xf32>
    %34 = arith.addf %32, %33 : vector<8x128xf32>
    %35 = math.tanh %20 : vector<8x128xf32>
    %36 = arith.mulf %34, %8 : vector<8x128xf32>
    %37 = arith.mulf %27, %35 : vector<8x128xf32>
    %38 = arith.addf %36, %37 : vector<8x128xf32>
    %c0_30 = arith.constant 0 : index
    %c384 = arith.constant 384 : index
    %39 = vector.load %arg16[%c0_30, %c384] : memref<64x512xf32, #tpu.memory_space<vmem>>, vector<8x128xf32>
    %c0_31 = arith.constant 0 : index
    %c0_32 = arith.constant 0 : index
    %40 = vector.load %arg8[%c0_31, %c0_32] : memref<128x128xf32, #tpu.memory_space<vmem>>, vector<128x128xf32>
    %cst_33 = arith.constant dense<0.000000e+00> : vector<8x128xf32>
    %41 = tpu.matmul %7, %40, %cst_33 {dimension_numbers = #tpu.dot_dimension_numbers<[1], [0], [0], [1], [0, 0, 1, 1], [], []>} : vector<8x128xf32>, vector<128x128xf32>, vector<8x128xf32> -> vector<8x128xf32>
    %42 = arith.addf %39, %41 : vector<8x128xf32>
    %cst_34 = arith.constant 5.000000e-01 : f32
    %43 = vector.broadcast %cst_34 : f32 to vector<8x128xf32>
    %44 = arith.mulf %43, %42 : vector<8x128xf32>
    %45 = math.tanh %44 : vector<8x128xf32>
    %cst_35 = arith.constant 5.000000e-01 : f32
    %46 = vector.broadcast %cst_35 : f32 to vector<8x128xf32>
    %47 = arith.mulf %46, %45 : vector<8x128xf32>
    %cst_36 = arith.constant 5.000000e-01 : f32
    %48 = vector.broadcast %cst_36 : f32 to vector<8x128xf32>
    %49 = arith.addf %47, %48 : vector<8x128xf32>
    %50 = math.tanh %38 : vector<8x128xf32>
    %51 = arith.mulf %49, %50 : vector<8x128xf32>
    %c0_37 = arith.constant 0 : index
    %c0_38 = arith.constant 0 : index
    %52 = vector.load %arg9[%c0_37, %c0_38] : memref<128x128xf32, #tpu.memory_space<vmem>>, vector<128x128xf32>
    %cst_39 = arith.constant dense<0.000000e+00> : vector<8x128xf32>
    %53 = tpu.matmul %51, %52, %cst_39 {dimension_numbers = #tpu.dot_dimension_numbers<[1], [0], [0], [1], [0, 0, 1, 1], [], []>} : vector<8x128xf32>, vector<128x128xf32>, vector<8x128xf32> -> vector<8x128xf32>
    %c0_40 = arith.constant 0 : index
    %c0_41 = arith.constant 0 : index
    %54 = vector.load %arg10[%c0_40, %c0_41] : memref<1x128xf32, #tpu.memory_space<vmem>>, vector<1x128xf32>
    %55 = vector.broadcast %54 : vector<1x128xf32> to vector<8x128xf32>
    %56 = arith.addf %53, %55 : vector<8x128xf32>
    %57 = math.tanh %56 : vector<8x128xf32>
    %c0_42 = arith.constant 0 : index
    %c0_43 = arith.constant 0 : index
    %58 = vector.load %arg11[%c0_42, %c0_43] : memref<128x128xf32, #tpu.memory_space<vmem>>, vector<128x128xf32>
    %cst_44 = arith.constant dense<0.000000e+00> : vector<8x128xf32>
    %59 = tpu.matmul %57, %58, %cst_44 {dimension_numbers = #tpu.dot_dimension_numbers<[1], [0], [0], [1], [0, 0, 1, 1], [], []>} : vector<8x128xf32>, vector<128x128xf32>, vector<8x128xf32> -> vector<8x128xf32>
    %c0_45 = arith.constant 0 : index
    %c0_46 = arith.constant 0 : index
    %60 = vector.load %arg12[%c0_45, %c0_46] : memref<1x128xf32, #tpu.memory_space<vmem>>, vector<1x128xf32>
    %61 = vector.broadcast %60 : vector<1x128xf32> to vector<8x128xf32>
    %62 = arith.addf %59, %61 : vector<8x128xf32>
    %c0_47 = arith.constant 0 : index
    %c0_48 = arith.constant 0 : index
    %63 = vector.load %arg13[%c0_47, %c0_48] : memref<64x128xf32, #tpu.memory_space<vmem>>, vector<8x128xf32>
    tpu.vector_store %arg13[%c0_47, %c0_48], %62 {strides = array<i32>} : memref<64x128xf32, #tpu.memory_space<vmem>>, vector<8x128xf32>,
    %c8 = arith.constant 8 : index
    %c0_49 = arith.constant 0 : index
    %64 = vector.load %arg16[%c8, %c0_49] : memref<64x512xf32, #tpu.memory_space<vmem>>, vector<8x128xf32>
    %c0_50 = arith.constant 0 : index
    %c0_51 = arith.constant 0 : index
    %65 = vector.load %arg5[%c0_50, %c0_51] : memref<128x128xf32, #tpu.memory_space<vmem>>, vector<128x128xf32>
    %cst_52 = arith.constant dense<0.000000e+00> : vector<8x128xf32>
    %66 = tpu.matmul %51, %65, %cst_52 {dimension_numbers = #tpu.dot_dimension_numbers<[1], [0], [0], [1], [0, 0, 1, 1], [], []>} : vector<8x128xf32>, vector<128x128xf32>, vector<8x128xf32> -> vector<8x128xf32>
    %67 = arith.addf %64, %66 : vector<8x128xf32>
    %c8_53 = arith.constant 8 : index
    %c128_54 = arith.constant 128 : index
    %68 = vector.load %arg16[%c8_53, %c128_54] : memref<64x512xf32, #tpu.memory_space<vmem>>, vector<8x128xf32>
    %c0_55 = arith.constant 0 : index
    %c0_56 = arith.constant 0 : index
    %69 = vector.load %arg6[%c0_55, %c0_56] : memref<128x128xf32, #tpu.memory_space<vmem>>, vector<128x128xf32>
    %cst_57 = arith.constant dense<0.000000e+00> : vector<8x128xf32>
    %70 = tpu.matmul %51, %69, %cst_57 {dimension_numbers = #tpu.dot_dimension_numbers<[1], [0], [0], [1], [0, 0, 1, 1], [], []>} : vector<8x128xf32>, vector<128x128xf32>, vector<8x128xf32> -> vector<8x128xf32>
    %71 = arith.addf %68, %70 : vector<8x128xf32>
    %c8_58 = arith.constant 8 : index
    %c256_59 = arith.constant 256 : index
    %72 = vector.load %arg16[%c8_58, %c256_59] : memref<64x512xf32, #tpu.memory_space<vmem>>, vector<8x128xf32>
    %c0_60 = arith.constant 0 : index
    %c0_61 = arith.constant 0 : index
    %73 = vector.load %arg7[%c0_60, %c0_61] : memref<128x128xf32, #tpu.memory_space<vmem>>, vector<128x128xf32>
    %cst_62 = arith.constant dense<0.000000e+00> : vector<8x128xf32>
    %74 = tpu.matmul %51, %73, %cst_62 {dimension_numbers = #tpu.dot_dimension_numbers<[1], [0], [0], [1], [0, 0, 1, 1], [], []>} : vector<8x128xf32>, vector<128x128xf32>, vector<8x128xf32> -> vector<8x128xf32>
    %75 = arith.addf %72, %74 : vector<8x128xf32>
    %cst_63 = arith.constant 5.000000e-01 : f32
    %76 = vector.broadcast %cst_63 : f32 to vector<8x128xf32>
    %77 = arith.mulf %76, %67 : vector<8x128xf32>
    %78 = math.tanh %77 : vector<8x128xf32>
    %cst_64 = arith.constant 5.000000e-01 : f32
    %79 = vector.broadcast %cst_64 : f32 to vector<8x128xf32>
    %80 = arith.mulf %79, %78 : vector<8x128xf32>
    %cst_65 = arith.constant 5.000000e-01 : f32
    %81 = vector.broadcast %cst_65 : f32 to vector<8x128xf32>
    %82 = arith.addf %80, %81 : vector<8x128xf32>
    %cst_66 = arith.constant 5.000000e-01 : f32
    %83 = vector.broadcast %cst_66 : f32 to vector<8x128xf32>
    %84 = arith.mulf %83, %71 : vector<8x128xf32>
    %85 = math.tanh %84 : vector<8x128xf32>
    %cst_67 = arith.constant 5.000000e-01 : f32
    %86 = vector.broadcast %cst_67 : f32 to vector<8x128xf32>
    %87 = arith.mulf %86, %85 : vector<8x128xf32>
    %cst_68 = arith.constant 5.000000e-01 : f32
    %88 = vector.broadcast %cst_68 : f32 to vector<8x128xf32>
    %89 = arith.addf %87, %88 : vector<8x128xf32>
    %90 = math.tanh %75 : vector<8x128xf32>
    %91 = arith.mulf %89, %38 : vector<8x128xf32>
    %92 = arith.mulf %82, %90 : vector<8x128xf32>
    %93 = arith.addf %91, %92 : vector<8x128xf32>
    %c8_69 = arith.constant 8 : index
    %c384_70 = arith.constant 384 : index
    %94 = vector.load %arg16[%c8_69, %c384_70] : memref<64x512xf32, #tpu.memory_space<vmem>>, vector<8x128xf32>
    %c0_71 = arith.constant 0 : index
    %c0_72 = arith.constant 0 : index
    %95 = vector.load %arg8[%c0_71, %c0_72] : memref<128x128xf32, #tpu.memory_space<vmem>>, vector<128x128xf32>
    %cst_73 = arith.constant dense<0.000000e+00> : vector<8x128xf32>
    %96 = tpu.matmul %51, %95, %cst_73 {dimension_numbers = #tpu.dot_dimension_numbers<[1], [0], [0], [1], [0, 0, 1, 1], [], []>} : vector<8x128xf32>, vector<128x128xf32>, vector<8x128xf32> -> vector<8x128xf32>
    %97 = arith.addf %94, %96 : vector<8x128xf32>
    %cst_74 = arith.constant 5.000000e-01 : f32
    %98 = vector.broadcast %cst_74 : f32 to vector<8x128xf32>
    %99 = arith.mulf %98, %97 : vector<8x128xf32>
    %100 = math.tanh %99 : vector<8x128xf32>
    %cst_75 = arith.constant 5.000000e-01 : f32
    %101 = vector.broadcast %cst_75 : f32 to vector<8x128xf32>
    %102 = arith.mulf %101, %100 : vector<8x128xf32>
    %cst_76 = arith.constant 5.000000e-01 : f32
    %103 = vector.broadcast %cst_76 : f32 to vector<8x128xf32>
    %104 = arith.addf %102, %103 : vector<8x128xf32>
    %105 = math.tanh %93 : vector<8x128xf32>
    %106 = arith.mulf %104, %105 : vector<8x128xf32>
    %c0_77 = arith.constant 0 : index
    %c0_78 = arith.constant 0 : index
    %107 = vector.load %arg9[%c0_77, %c0_78] : memref<128x128xf32, #tpu.memory_space<vmem>>, vector<128x128xf32>
    %cst_79 = arith.constant dense<0.000000e+00> : vector<8x128xf32>
    %108 = tpu.matmul %106, %107, %cst_79 {dimension_numbers = #tpu.dot_dimension_numbers<[1], [0], [0], [1], [0, 0, 1, 1], [], []>} : vector<8x128xf32>, vector<128x128xf32>, vector<8x128xf32> -> vector<8x128xf32>
    %c0_80 = arith.constant 0 : index
    %c0_81 = arith.constant 0 : index
    %109 = vector.load %arg10[%c0_80, %c0_81] : memref<1x128xf32, #tpu.memory_space<vmem>>, vector<1x128xf32>
    %110 = vector.broadcast %109 : vector<1x128xf32> to vector<8x128xf32>
    %111 = arith.addf %108, %110 : vector<8x128xf32>
    %112 = math.tanh %111 : vector<8x128xf32>
    %c0_82 = arith.constant 0 : index
    %c0_83 = arith.constant 0 : index
    %113 = vector.load %arg11[%c0_82, %c0_83] : memref<128x128xf32, #tpu.memory_space<vmem>>, vector<128x128xf32>
    %cst_84 = arith.constant dense<0.000000e+00> : vector<8x128xf32>
    %114 = tpu.matmul %112, %113, %cst_84 {dimension_numbers = #tpu.dot_dimension_numbers<[1], [0], [0], [1], [0, 0, 1, 1], [], []>} : vector<8x128xf32>, vector<128x128xf32>, vector<8x128xf32> -> vector<8x128xf32>
    %c0_85 = arith.constant 0 : index
    %c0_86 = arith.constant 0 : index
    %115 = vector.load %arg12[%c0_85, %c0_86] : memref<1x128xf32, #tpu.memory_space<vmem>>, vector<1x128xf32>
    %116 = vector.broadcast %115 : vector<1x128xf32> to vector<8x128xf32>
    %117 = arith.addf %114, %116 : vector<8x128xf32>
    %c8_87 = arith.constant 8 : index
    %c0_88 = arith.constant 0 : index
    %118 = vector.load %arg13[%c8_87, %c0_88] : memref<64x128xf32, #tpu.memory_space<vmem>>, vector<8x128xf32>
    tpu.vector_store %arg13[%c8_87, %c0_88], %117 {strides = array<i32>} : memref<64x128xf32, #tpu.memory_space<vmem>>, vector<8x128xf32>,
    %c16 = arith.constant 16 : index
    %c0_89 = arith.constant 0 : index
    %119 = vector.load %arg16[%c16, %c0_89] : memref<64x512xf32, #tpu.memory_space<vmem>>, vector<8x128xf32>
    %c0_90 = arith.constant 0 : index
    %c0_91 = arith.constant 0 : index
    %120 = vector.load %arg5[%c0_90, %c0_91] : memref<128x128xf32, #tpu.memory_space<vmem>>, vector<128x128xf32>
    %cst_92 = arith.constant dense<0.000000e+00> : vector<8x128xf32>
    %121 = tpu.matmul %106, %120, %cst_92 {dimension_numbers = #tpu.dot_dimension_numbers<[1], [0], [0], [1], [0, 0, 1, 1], [], []>} : vector<8x128xf32>, vector<128x128xf32>, vector<8x128xf32> -> vector<8x128xf32>
    %122 = arith.addf %119, %121 : vector<8x128xf32>
    %c16_93 = arith.constant 16 : index
    %c128_94 = arith.constant 128 : index
    %123 = vector.load %arg16[%c16_93, %c128_94] : memref<64x512xf32, #tpu.memory_space<vmem>>, vector<8x128xf32>
    %c0_95 = arith.constant 0 : index
    %c0_96 = arith.constant 0 : index
    %124 = vector.load %arg6[%c0_95, %c0_96] : memref<128x128xf32, #tpu.memory_space<vmem>>, vector<128x128xf32>
    %cst_97 = arith.constant dense<0.000000e+00> : vector<8x128xf32>
    %125 = tpu.matmul %106, %124, %cst_97 {dimension_numbers = #tpu.dot_dimension_numbers<[1], [0], [0], [1], [0, 0, 1, 1], [], []>} : vector<8x128xf32>, vector<128x128xf32>, vector<8x128xf32> -> vector<8x128xf32>
    %126 = arith.addf %123, %125 : vector<8x128xf32>
    %c16_98 = arith.constant 16 : index
    %c256_99 = arith.constant 256 : index
    %127 = vector.load %arg16[%c16_98, %c256_99] : memref<64x512xf32, #tpu.memory_space<vmem>>, vector<8x128xf32>
    %c0_100 = arith.constant 0 : index
    %c0_101 = arith.constant 0 : index
    %128 = vector.load %arg7[%c0_100, %c0_101] : memref<128x128xf32, #tpu.memory_space<vmem>>, vector<128x128xf32>
    %cst_102 = arith.constant dense<0.000000e+00> : vector<8x128xf32>
    %129 = tpu.matmul %106, %128, %cst_102 {dimension_numbers = #tpu.dot_dimension_numbers<[1], [0], [0], [1], [0, 0, 1, 1], [], []>} : vector<8x128xf32>, vector<128x128xf32>, vector<8x128xf32> -> vector<8x128xf32>
    %130 = arith.addf %127, %129 : vector<8x128xf32>
    %cst_103 = arith.constant 5.000000e-01 : f32
    %131 = vector.broadcast %cst_103 : f32 to vector<8x128xf32>
    %132 = arith.mulf %131, %122 : vector<8x128xf32>
    %133 = math.tanh %132 : vector<8x128xf32>
    %cst_104 = arith.constant 5.000000e-01 : f32
    %134 = vector.broadcast %cst_104 : f32 to vector<8x128xf32>
    %135 = arith.mulf %134, %133 : vector<8x128xf32>
    %cst_105 = arith.constant 5.000000e-01 : f32
    %136 = vector.broadcast %cst_105 : f32 to vector<8x128xf32>
    %137 = arith.addf %135, %136 : vector<8x128xf32>
    %cst_106 = arith.constant 5.000000e-01 : f32
    %138 = vector.broadcast %cst_106 : f32 to vector<8x128xf32>
    %139 = arith.mulf %138, %126 : vector<8x128xf32>
    %140 = math.tanh %139 : vector<8x128xf32>
    %cst_107 = arith.constant 5.000000e-01 : f32
    %141 = vector.broadcast %cst_107 : f32 to vector<8x128xf32>
    %142 = arith.mulf %141, %140 : vector<8x128xf32>
    %cst_108 = arith.constant 5.000000e-01 : f32
    %143 = vector.broadcast %cst_108 : f32 to vector<8x128xf32>
    %144 = arith.addf %142, %143 : vector<8x128xf32>
    %145 = math.tanh %130 : vector<8x128xf32>
    %146 = arith.mulf %144, %93 : vector<8x128xf32>
    %147 = arith.mulf %137, %145 : vector<8x128xf32>
    %148 = arith.addf %146, %147 : vector<8x128xf32>
    %c16_109 = arith.constant 16 : index
    %c384_110 = arith.constant 384 : index
    %149 = vector.load %arg16[%c16_109, %c384_110] : memref<64x512xf32, #tpu.memory_space<vmem>>, vector<8x128xf32>
    %c0_111 = arith.constant 0 : index
    %c0_112 = arith.constant 0 : index
    %150 = vector.load %arg8[%c0_111, %c0_112] : memref<128x128xf32, #tpu.memory_space<vmem>>, vector<128x128xf32>
    %cst_113 = arith.constant dense<0.000000e+00> : vector<8x128xf32>
    %151 = tpu.matmul %106, %150, %cst_113 {dimension_numbers = #tpu.dot_dimension_numbers<[1], [0], [0], [1], [0, 0, 1, 1], [], []>} : vector<8x128xf32>, vector<128x128xf32>, vector<8x128xf32> -> vector<8x128xf32>
    %152 = arith.addf %149, %151 : vector<8x128xf32>
    %cst_114 = arith.constant 5.000000e-01 : f32
    %153 = vector.broadcast %cst_114 : f32 to vector<8x128xf32>
    %154 = arith.mulf %153, %152 : vector<8x128xf32>
    %155 = math.tanh %154 : vector<8x128xf32>
    %cst_115 = arith.constant 5.000000e-01 : f32
    %156 = vector.broadcast %cst_115 : f32 to vector<8x128xf32>
    %157 = arith.mulf %156, %155 : vector<8x128xf32>
    %cst_116 = arith.constant 5.000000e-01 : f32
    %158 = vector.broadcast %cst_116 : f32 to vector<8x128xf32>
    %159 = arith.addf %157, %158 : vector<8x128xf32>
    %160 = math.tanh %148 : vector<8x128xf32>
    %161 = arith.mulf %159, %160 : vector<8x128xf32>
    %c0_117 = arith.constant 0 : index
    %c0_118 = arith.constant 0 : index
    %162 = vector.load %arg9[%c0_117, %c0_118] : memref<128x128xf32, #tpu.memory_space<vmem>>, vector<128x128xf32>
    %cst_119 = arith.constant dense<0.000000e+00> : vector<8x128xf32>
    %163 = tpu.matmul %161, %162, %cst_119 {dimension_numbers = #tpu.dot_dimension_numbers<[1], [0], [0], [1], [0, 0, 1, 1], [], []>} : vector<8x128xf32>, vector<128x128xf32>, vector<8x128xf32> -> vector<8x128xf32>
    %c0_120 = arith.constant 0 : index
    %c0_121 = arith.constant 0 : index
    %164 = vector.load %arg10[%c0_120, %c0_121] : memref<1x128xf32, #tpu.memory_space<vmem>>, vector<1x128xf32>
    %165 = vector.broadcast %164 : vector<1x128xf32> to vector<8x128xf32>
    %166 = arith.addf %163, %165 : vector<8x128xf32>
    %167 = math.tanh %166 : vector<8x128xf32>
    %c0_122 = arith.constant 0 : index
    %c0_123 = arith.constant 0 : index
    %168 = vector.load %arg11[%c0_122, %c0_123] : memref<128x128xf32, #tpu.memory_space<vmem>>, vector<128x128xf32>
    %cst_124 = arith.constant dense<0.000000e+00> : vector<8x128xf32>
    %169 = tpu.matmul %167, %168, %cst_124 {dimension_numbers = #tpu.dot_dimension_numbers<[1], [0], [0], [1], [0, 0, 1, 1], [], []>} : vector<8x128xf32>, vector<128x128xf32>, vector<8x128xf32> -> vector<8x128xf32>
    %c0_125 = arith.constant 0 : index
    %c0_126 = arith.constant 0 : index
    %170 = vector.load %arg12[%c0_125, %c0_126] : memref<1x128xf32, #tpu.memory_space<vmem>>, vector<1x128xf32>
    %171 = vector.broadcast %170 : vector<1x128xf32> to vector<8x128xf32>
    %172 = arith.addf %169, %171 : vector<8x128xf32>
    %c16_127 = arith.constant 16 : index
    %c0_128 = arith.constant 0 : index
    %173 = vector.load %arg13[%c16_127, %c0_128] : memref<64x128xf32, #tpu.memory_space<vmem>>, vector<8x128xf32>
    tpu.vector_store %arg13[%c16_127, %c0_128], %172 {strides = array<i32>} : memref<64x128xf32, #tpu.memory_space<vmem>>, vector<8x128xf32>,
    %c24 = arith.constant 24 : index
    %c0_129 = arith.constant 0 : index
    %174 = vector.load %arg16[%c24, %c0_129] : memref<64x512xf32, #tpu.memory_space<vmem>>, vector<8x128xf32>
    %c0_130 = arith.constant 0 : index
    %c0_131 = arith.constant 0 : index
    %175 = vector.load %arg5[%c0_130, %c0_131] : memref<128x128xf32, #tpu.memory_space<vmem>>, vector<128x128xf32>
    %cst_132 = arith.constant dense<0.000000e+00> : vector<8x128xf32>
    %176 = tpu.matmul %161, %175, %cst_132 {dimension_numbers = #tpu.dot_dimension_numbers<[1], [0], [0], [1], [0, 0, 1, 1], [], []>} : vector<8x128xf32>, vector<128x128xf32>, vector<8x128xf32> -> vector<8x128xf32>
    %177 = arith.addf %174, %176 : vector<8x128xf32>
    %c24_133 = arith.constant 24 : index
    %c128_134 = arith.constant 128 : index
    %178 = vector.load %arg16[%c24_133, %c128_134] : memref<64x512xf32, #tpu.memory_space<vmem>>, vector<8x128xf32>
    %c0_135 = arith.constant 0 : index
    %c0_136 = arith.constant 0 : index
    %179 = vector.load %arg6[%c0_135, %c0_136] : memref<128x128xf32, #tpu.memory_space<vmem>>, vector<128x128xf32>
    %cst_137 = arith.constant dense<0.000000e+00> : vector<8x128xf32>
    %180 = tpu.matmul %161, %179, %cst_137 {dimension_numbers = #tpu.dot_dimension_numbers<[1], [0], [0], [1], [0, 0, 1, 1], [], []>} : vector<8x128xf32>, vector<128x128xf32>, vector<8x128xf32> -> vector<8x128xf32>
    %181 = arith.addf %178, %180 : vector<8x128xf32>
    %c24_138 = arith.constant 24 : index
    %c256_139 = arith.constant 256 : index
    %182 = vector.load %arg16[%c24_138, %c256_139] : memref<64x512xf32, #tpu.memory_space<vmem>>, vector<8x128xf32>
    %c0_140 = arith.constant 0 : index
    %c0_141 = arith.constant 0 : index
    %183 = vector.load %arg7[%c0_140, %c0_141] : memref<128x128xf32, #tpu.memory_space<vmem>>, vector<128x128xf32>
    %cst_142 = arith.constant dense<0.000000e+00> : vector<8x128xf32>
    %184 = tpu.matmul %161, %183, %cst_142 {dimension_numbers = #tpu.dot_dimension_numbers<[1], [0], [0], [1], [0, 0, 1, 1], [], []>} : vector<8x128xf32>, vector<128x128xf32>, vector<8x128xf32> -> vector<8x128xf32>
    %185 = arith.addf %182, %184 : vector<8x128xf32>
    %cst_143 = arith.constant 5.000000e-01 : f32
    %186 = vector.broadcast %cst_143 : f32 to vector<8x128xf32>
    %187 = arith.mulf %186, %177 : vector<8x128xf32>
    %188 = math.tanh %187 : vector<8x128xf32>
    %cst_144 = arith.constant 5.000000e-01 : f32
    %189 = vector.broadcast %cst_144 : f32 to vector<8x128xf32>
    %190 = arith.mulf %189, %188 : vector<8x128xf32>
    %cst_145 = arith.constant 5.000000e-01 : f32
    %191 = vector.broadcast %cst_145 : f32 to vector<8x128xf32>
    %192 = arith.addf %190, %191 : vector<8x128xf32>
    %cst_146 = arith.constant 5.000000e-01 : f32
    %193 = vector.broadcast %cst_146 : f32 to vector<8x128xf32>
    %194 = arith.mulf %193, %181 : vector<8x128xf32>
    %195 = math.tanh %194 : vector<8x128xf32>
    %cst_147 = arith.constant 5.000000e-01 : f32
    %196 = vector.broadcast %cst_147 : f32 to vector<8x128xf32>
    %197 = arith.mulf %196, %195 : vector<8x128xf32>
    %cst_148 = arith.constant 5.000000e-01 : f32
    %198 = vector.broadcast %cst_148 : f32 to vector<8x128xf32>
    %199 = arith.addf %197, %198 : vector<8x128xf32>
    %200 = math.tanh %185 : vector<8x128xf32>
    %201 = arith.mulf %199, %148 : vector<8x128xf32>
    %202 = arith.mulf %192, %200 : vector<8x128xf32>
    %203 = arith.addf %201, %202 : vector<8x128xf32>
    %c24_149 = arith.constant 24 : index
    %c384_150 = arith.constant 384 : index
    %204 = vector.load %arg16[%c24_149, %c384_150] : memref<64x512xf32, #tpu.memory_space<vmem>>, vector<8x128xf32>
    %c0_151 = arith.constant 0 : index
    %c0_152 = arith.constant 0 : index
    %205 = vector.load %arg8[%c0_151, %c0_152] : memref<128x128xf32, #tpu.memory_space<vmem>>, vector<128x128xf32>
    %cst_153 = arith.constant dense<0.000000e+00> : vector<8x128xf32>
    %206 = tpu.matmul %161, %205, %cst_153 {dimension_numbers = #tpu.dot_dimension_numbers<[1], [0], [0], [1], [0, 0, 1, 1], [], []>} : vector<8x128xf32>, vector<128x128xf32>, vector<8x128xf32> -> vector<8x128xf32>
    %207 = arith.addf %204, %206 : vector<8x128xf32>
    %cst_154 = arith.constant 5.000000e-01 : f32
    %208 = vector.broadcast %cst_154 : f32 to vector<8x128xf32>
    %209 = arith.mulf %208, %207 : vector<8x128xf32>
    %210 = math.tanh %209 : vector<8x128xf32>
    %cst_155 = arith.constant 5.000000e-01 : f32
    %211 = vector.broadcast %cst_155 : f32 to vector<8x128xf32>
    %212 = arith.mulf %211, %210 : vector<8x128xf32>
    %cst_156 = arith.constant 5.000000e-01 : f32
    %213 = vector.broadcast %cst_156 : f32 to vector<8x128xf32>
    %214 = arith.addf %212, %213 : vector<8x128xf32>
    %215 = math.tanh %203 : vector<8x128xf32>
    %216 = arith.mulf %214, %215 : vector<8x128xf32>
    %c0_157 = arith.constant 0 : index
    %c0_158 = arith.constant 0 : index
    %217 = vector.load %arg9[%c0_157, %c0_158] : memref<128x128xf32, #tpu.memory_space<vmem>>, vector<128x128xf32>
    %cst_159 = arith.constant dense<0.000000e+00> : vector<8x128xf32>
    %218 = tpu.matmul %216, %217, %cst_159 {dimension_numbers = #tpu.dot_dimension_numbers<[1], [0], [0], [1], [0, 0, 1, 1], [], []>} : vector<8x128xf32>, vector<128x128xf32>, vector<8x128xf32> -> vector<8x128xf32>
    %c0_160 = arith.constant 0 : index
    %c0_161 = arith.constant 0 : index
    %219 = vector.load %arg10[%c0_160, %c0_161] : memref<1x128xf32, #tpu.memory_space<vmem>>, vector<1x128xf32>
    %220 = vector.broadcast %219 : vector<1x128xf32> to vector<8x128xf32>
    %221 = arith.addf %218, %220 : vector<8x128xf32>
    %222 = math.tanh %221 : vector<8x128xf32>
    %c0_162 = arith.constant 0 : index
    %c0_163 = arith.constant 0 : index
    %223 = vector.load %arg11[%c0_162, %c0_163] : memref<128x128xf32, #tpu.memory_space<vmem>>, vector<128x128xf32>
    %cst_164 = arith.constant dense<0.000000e+00> : vector<8x128xf32>
    %224 = tpu.matmul %222, %223, %cst_164 {dimension_numbers = #tpu.dot_dimension_numbers<[1], [0], [0], [1], [0, 0, 1, 1], [], []>} : vector<8x128xf32>, vector<128x128xf32>, vector<8x128xf32> -> vector<8x128xf32>
    %c0_165 = arith.constant 0 : index
    %c0_166 = arith.constant 0 : index
    %225 = vector.load %arg12[%c0_165, %c0_166] : memref<1x128xf32, #tpu.memory_space<vmem>>, vector<1x128xf32>
    %226 = vector.broadcast %225 : vector<1x128xf32> to vector<8x128xf32>
    %227 = arith.addf %224, %226 : vector<8x128xf32>
    %c24_167 = arith.constant 24 : index
    %c0_168 = arith.constant 0 : index
    %228 = vector.load %arg13[%c24_167, %c0_168] : memref<64x128xf32, #tpu.memory_space<vmem>>, vector<8x128xf32>
    tpu.vector_store %arg13[%c24_167, %c0_168], %227 {strides = array<i32>} : memref<64x128xf32, #tpu.memory_space<vmem>>, vector<8x128xf32>,
    %c32 = arith.constant 32 : index
    %c0_169 = arith.constant 0 : index
    %229 = vector.load %arg16[%c32, %c0_169] : memref<64x512xf32, #tpu.memory_space<vmem>>, vector<8x128xf32>
    %c0_170 = arith.constant 0 : index
    %c0_171 = arith.constant 0 : index
    %230 = vector.load %arg5[%c0_170, %c0_171] : memref<128x128xf32, #tpu.memory_space<vmem>>, vector<128x128xf32>
    %cst_172 = arith.constant dense<0.000000e+00> : vector<8x128xf32>
    %231 = tpu.matmul %216, %230, %cst_172 {dimension_numbers = #tpu.dot_dimension_numbers<[1], [0], [0], [1], [0, 0, 1, 1], [], []>} : vector<8x128xf32>, vector<128x128xf32>, vector<8x128xf32> -> vector<8x128xf32>
    %232 = arith.addf %229, %231 : vector<8x128xf32>
    %c32_173 = arith.constant 32 : index
    %c128_174 = arith.constant 128 : index
    %233 = vector.load %arg16[%c32_173, %c128_174] : memref<64x512xf32, #tpu.memory_space<vmem>>, vector<8x128xf32>
    %c0_175 = arith.constant 0 : index
    %c0_176 = arith.constant 0 : index
    %234 = vector.load %arg6[%c0_175, %c0_176] : memref<128x128xf32, #tpu.memory_space<vmem>>, vector<128x128xf32>
    %cst_177 = arith.constant dense<0.000000e+00> : vector<8x128xf32>
    %235 = tpu.matmul %216, %234, %cst_177 {dimension_numbers = #tpu.dot_dimension_numbers<[1], [0], [0], [1], [0, 0, 1, 1], [], []>} : vector<8x128xf32>, vector<128x128xf32>, vector<8x128xf32> -> vector<8x128xf32>
    %236 = arith.addf %233, %235 : vector<8x128xf32>
    %c32_178 = arith.constant 32 : index
    %c256_179 = arith.constant 256 : index
    %237 = vector.load %arg16[%c32_178, %c256_179] : memref<64x512xf32, #tpu.memory_space<vmem>>, vector<8x128xf32>
    %c0_180 = arith.constant 0 : index
    %c0_181 = arith.constant 0 : index
    %238 = vector.load %arg7[%c0_180, %c0_181] : memref<128x128xf32, #tpu.memory_space<vmem>>, vector<128x128xf32>
    %cst_182 = arith.constant dense<0.000000e+00> : vector<8x128xf32>
    %239 = tpu.matmul %216, %238, %cst_182 {dimension_numbers = #tpu.dot_dimension_numbers<[1], [0], [0], [1], [0, 0, 1, 1], [], []>} : vector<8x128xf32>, vector<128x128xf32>, vector<8x128xf32> -> vector<8x128xf32>
    %240 = arith.addf %237, %239 : vector<8x128xf32>
    %cst_183 = arith.constant 5.000000e-01 : f32
    %241 = vector.broadcast %cst_183 : f32 to vector<8x128xf32>
    %242 = arith.mulf %241, %232 : vector<8x128xf32>
    %243 = math.tanh %242 : vector<8x128xf32>
    %cst_184 = arith.constant 5.000000e-01 : f32
    %244 = vector.broadcast %cst_184 : f32 to vector<8x128xf32>
    %245 = arith.mulf %244, %243 : vector<8x128xf32>
    %cst_185 = arith.constant 5.000000e-01 : f32
    %246 = vector.broadcast %cst_185 : f32 to vector<8x128xf32>
    %247 = arith.addf %245, %246 : vector<8x128xf32>
    %cst_186 = arith.constant 5.000000e-01 : f32
    %248 = vector.broadcast %cst_186 : f32 to vector<8x128xf32>
    %249 = arith.mulf %248, %236 : vector<8x128xf32>
    %250 = math.tanh %249 : vector<8x128xf32>
    %cst_187 = arith.constant 5.000000e-01 : f32
    %251 = vector.broadcast %cst_187 : f32 to vector<8x128xf32>
    %252 = arith.mulf %251, %250 : vector<8x128xf32>
    %cst_188 = arith.constant 5.000000e-01 : f32
    %253 = vector.broadcast %cst_188 : f32 to vector<8x128xf32>
    %254 = arith.addf %252, %253 : vector<8x128xf32>
    %255 = math.tanh %240 : vector<8x128xf32>
    %256 = arith.mulf %254, %203 : vector<8x128xf32>
    %257 = arith.mulf %247, %255 : vector<8x128xf32>
    %258 = arith.addf %256, %257 : vector<8x128xf32>
    %c32_189 = arith.constant 32 : index
    %c384_190 = arith.constant 384 : index
    %259 = vector.load %arg16[%c32_189, %c384_190] : memref<64x512xf32, #tpu.memory_space<vmem>>, vector<8x128xf32>
    %c0_191 = arith.constant 0 : index
    %c0_192 = arith.constant 0 : index
    %260 = vector.load %arg8[%c0_191, %c0_192] : memref<128x128xf32, #tpu.memory_space<vmem>>, vector<128x128xf32>
    %cst_193 = arith.constant dense<0.000000e+00> : vector<8x128xf32>
    %261 = tpu.matmul %216, %260, %cst_193 {dimension_numbers = #tpu.dot_dimension_numbers<[1], [0], [0], [1], [0, 0, 1, 1], [], []>} : vector<8x128xf32>, vector<128x128xf32>, vector<8x128xf32> -> vector<8x128xf32>
    %262 = arith.addf %259, %261 : vector<8x128xf32>
    %cst_194 = arith.constant 5.000000e-01 : f32
    %263 = vector.broadcast %cst_194 : f32 to vector<8x128xf32>
    %264 = arith.mulf %263, %262 : vector<8x128xf32>
    %265 = math.tanh %264 : vector<8x128xf32>
    %cst_195 = arith.constant 5.000000e-01 : f32
    %266 = vector.broadcast %cst_195 : f32 to vector<8x128xf32>
    %267 = arith.mulf %266, %265 : vector<8x128xf32>
    %cst_196 = arith.constant 5.000000e-01 : f32
    %268 = vector.broadcast %cst_196 : f32 to vector<8x128xf32>
    %269 = arith.addf %267, %268 : vector<8x128xf32>
    %270 = math.tanh %258 : vector<8x128xf32>
    %271 = arith.mulf %269, %270 : vector<8x128xf32>
    %c0_197 = arith.constant 0 : index
    %c0_198 = arith.constant 0 : index
    %272 = vector.load %arg9[%c0_197, %c0_198] : memref<128x128xf32, #tpu.memory_space<vmem>>, vector<128x128xf32>
    %cst_199 = arith.constant dense<0.000000e+00> : vector<8x128xf32>
    %273 = tpu.matmul %271, %272, %cst_199 {dimension_numbers = #tpu.dot_dimension_numbers<[1], [0], [0], [1], [0, 0, 1, 1], [], []>} : vector<8x128xf32>, vector<128x128xf32>, vector<8x128xf32> -> vector<8x128xf32>
    %c0_200 = arith.constant 0 : index
    %c0_201 = arith.constant 0 : index
    %274 = vector.load %arg10[%c0_200, %c0_201] : memref<1x128xf32, #tpu.memory_space<vmem>>, vector<1x128xf32>
    %275 = vector.broadcast %274 : vector<1x128xf32> to vector<8x128xf32>
    %276 = arith.addf %273, %275 : vector<8x128xf32>
    %277 = math.tanh %276 : vector<8x128xf32>
    %c0_202 = arith.constant 0 : index
    %c0_203 = arith.constant 0 : index
    %278 = vector.load %arg11[%c0_202, %c0_203] : memref<128x128xf32, #tpu.memory_space<vmem>>, vector<128x128xf32>
    %cst_204 = arith.constant dense<0.000000e+00> : vector<8x128xf32>
    %279 = tpu.matmul %277, %278, %cst_204 {dimension_numbers = #tpu.dot_dimension_numbers<[1], [0], [0], [1], [0, 0, 1, 1], [], []>} : vector<8x128xf32>, vector<128x128xf32>, vector<8x128xf32> -> vector<8x128xf32>
    %c0_205 = arith.constant 0 : index
    %c0_206 = arith.constant 0 : index
    %280 = vector.load %arg12[%c0_205, %c0_206] : memref<1x128xf32, #tpu.memory_space<vmem>>, vector<1x128xf32>
    %281 = vector.broadcast %280 : vector<1x128xf32> to vector<8x128xf32>
    %282 = arith.addf %279, %281 : vector<8x128xf32>
    %c32_207 = arith.constant 32 : index
    %c0_208 = arith.constant 0 : index
    %283 = vector.load %arg13[%c32_207, %c0_208] : memref<64x128xf32, #tpu.memory_space<vmem>>, vector<8x128xf32>
    tpu.vector_store %arg13[%c32_207, %c0_208], %282 {strides = array<i32>} : memref<64x128xf32, #tpu.memory_space<vmem>>, vector<8x128xf32>,
    %c40 = arith.constant 40 : index
    %c0_209 = arith.constant 0 : index
    %284 = vector.load %arg16[%c40, %c0_209] : memref<64x512xf32, #tpu.memory_space<vmem>>, vector<8x128xf32>
    %c0_210 = arith.constant 0 : index
    %c0_211 = arith.constant 0 : index
    %285 = vector.load %arg5[%c0_210, %c0_211] : memref<128x128xf32, #tpu.memory_space<vmem>>, vector<128x128xf32>
    %cst_212 = arith.constant dense<0.000000e+00> : vector<8x128xf32>
    %286 = tpu.matmul %271, %285, %cst_212 {dimension_numbers = #tpu.dot_dimension_numbers<[1], [0], [0], [1], [0, 0, 1, 1], [], []>} : vector<8x128xf32>, vector<128x128xf32>, vector<8x128xf32> -> vector<8x128xf32>
    %287 = arith.addf %284, %286 : vector<8x128xf32>
    %c40_213 = arith.constant 40 : index
    %c128_214 = arith.constant 128 : index
    %288 = vector.load %arg16[%c40_213, %c128_214] : memref<64x512xf32, #tpu.memory_space<vmem>>, vector<8x128xf32>
    %c0_215 = arith.constant 0 : index
    %c0_216 = arith.constant 0 : index
    %289 = vector.load %arg6[%c0_215, %c0_216] : memref<128x128xf32, #tpu.memory_space<vmem>>, vector<128x128xf32>
    %cst_217 = arith.constant dense<0.000000e+00> : vector<8x128xf32>
    %290 = tpu.matmul %271, %289, %cst_217 {dimension_numbers = #tpu.dot_dimension_numbers<[1], [0], [0], [1], [0, 0, 1, 1], [], []>} : vector<8x128xf32>, vector<128x128xf32>, vector<8x128xf32> -> vector<8x128xf32>
    %291 = arith.addf %288, %290 : vector<8x128xf32>
    %c40_218 = arith.constant 40 : index
    %c256_219 = arith.constant 256 : index
    %292 = vector.load %arg16[%c40_218, %c256_219] : memref<64x512xf32, #tpu.memory_space<vmem>>, vector<8x128xf32>
    %c0_220 = arith.constant 0 : index
    %c0_221 = arith.constant 0 : index
    %293 = vector.load %arg7[%c0_220, %c0_221] : memref<128x128xf32, #tpu.memory_space<vmem>>, vector<128x128xf32>
    %cst_222 = arith.constant dense<0.000000e+00> : vector<8x128xf32>
    %294 = tpu.matmul %271, %293, %cst_222 {dimension_numbers = #tpu.dot_dimension_numbers<[1], [0], [0], [1], [0, 0, 1, 1], [], []>} : vector<8x128xf32>, vector<128x128xf32>, vector<8x128xf32> -> vector<8x128xf32>
    %295 = arith.addf %292, %294 : vector<8x128xf32>
    %cst_223 = arith.constant 5.000000e-01 : f32
    %296 = vector.broadcast %cst_223 : f32 to vector<8x128xf32>
    %297 = arith.mulf %296, %287 : vector<8x128xf32>
    %298 = math.tanh %297 : vector<8x128xf32>
    %cst_224 = arith.constant 5.000000e-01 : f32
    %299 = vector.broadcast %cst_224 : f32 to vector<8x128xf32>
    %300 = arith.mulf %299, %298 : vector<8x128xf32>
    %cst_225 = arith.constant 5.000000e-01 : f32
    %301 = vector.broadcast %cst_225 : f32 to vector<8x128xf32>
    %302 = arith.addf %300, %301 : vector<8x128xf32>
    %cst_226 = arith.constant 5.000000e-01 : f32
    %303 = vector.broadcast %cst_226 : f32 to vector<8x128xf32>
    %304 = arith.mulf %303, %291 : vector<8x128xf32>
    %305 = math.tanh %304 : vector<8x128xf32>
    %cst_227 = arith.constant 5.000000e-01 : f32
    %306 = vector.broadcast %cst_227 : f32 to vector<8x128xf32>
    %307 = arith.mulf %306, %305 : vector<8x128xf32>
    %cst_228 = arith.constant 5.000000e-01 : f32
    %308 = vector.broadcast %cst_228 : f32 to vector<8x128xf32>
    %309 = arith.addf %307, %308 : vector<8x128xf32>
    %310 = math.tanh %295 : vector<8x128xf32>
    %311 = arith.mulf %309, %258 : vector<8x128xf32>
    %312 = arith.mulf %302, %310 : vector<8x128xf32>
    %313 = arith.addf %311, %312 : vector<8x128xf32>
    %c40_229 = arith.constant 40 : index
    %c384_230 = arith.constant 384 : index
    %314 = vector.load %arg16[%c40_229, %c384_230] : memref<64x512xf32, #tpu.memory_space<vmem>>, vector<8x128xf32>
    %c0_231 = arith.constant 0 : index
    %c0_232 = arith.constant 0 : index
    %315 = vector.load %arg8[%c0_231, %c0_232] : memref<128x128xf32, #tpu.memory_space<vmem>>, vector<128x128xf32>
    %cst_233 = arith.constant dense<0.000000e+00> : vector<8x128xf32>
    %316 = tpu.matmul %271, %315, %cst_233 {dimension_numbers = #tpu.dot_dimension_numbers<[1], [0], [0], [1], [0, 0, 1, 1], [], []>} : vector<8x128xf32>, vector<128x128xf32>, vector<8x128xf32> -> vector<8x128xf32>
    %317 = arith.addf %314, %316 : vector<8x128xf32>
    %cst_234 = arith.constant 5.000000e-01 : f32
    %318 = vector.broadcast %cst_234 : f32 to vector<8x128xf32>
    %319 = arith.mulf %318, %317 : vector<8x128xf32>
    %320 = math.tanh %319 : vector<8x128xf32>
    %cst_235 = arith.constant 5.000000e-01 : f32
    %321 = vector.broadcast %cst_235 : f32 to vector<8x128xf32>
    %322 = arith.mulf %321, %320 : vector<8x128xf32>
    %cst_236 = arith.constant 5.000000e-01 : f32
    %323 = vector.broadcast %cst_236 : f32 to vector<8x128xf32>
    %324 = arith.addf %322, %323 : vector<8x128xf32>
    %325 = math.tanh %313 : vector<8x128xf32>
    %326 = arith.mulf %324, %325 : vector<8x128xf32>
    %c0_237 = arith.constant 0 : index
    %c0_238 = arith.constant 0 : index
    %327 = vector.load %arg9[%c0_237, %c0_238] : memref<128x128xf32, #tpu.memory_space<vmem>>, vector<128x128xf32>
    %cst_239 = arith.constant dense<0.000000e+00> : vector<8x128xf32>
    %328 = tpu.matmul %326, %327, %cst_239 {dimension_numbers = #tpu.dot_dimension_numbers<[1], [0], [0], [1], [0, 0, 1, 1], [], []>} : vector<8x128xf32>, vector<128x128xf32>, vector<8x128xf32> -> vector<8x128xf32>
    %c0_240 = arith.constant 0 : index
    %c0_241 = arith.constant 0 : index
    %329 = vector.load %arg10[%c0_240, %c0_241] : memref<1x128xf32, #tpu.memory_space<vmem>>, vector<1x128xf32>
    %330 = vector.broadcast %329 : vector<1x128xf32> to vector<8x128xf32>
    %331 = arith.addf %328, %330 : vector<8x128xf32>
    %332 = math.tanh %331 : vector<8x128xf32>
    %c0_242 = arith.constant 0 : index
    %c0_243 = arith.constant 0 : index
    %333 = vector.load %arg11[%c0_242, %c0_243] : memref<128x128xf32, #tpu.memory_space<vmem>>, vector<128x128xf32>
    %cst_244 = arith.constant dense<0.000000e+00> : vector<8x128xf32>
    %334 = tpu.matmul %332, %333, %cst_244 {dimension_numbers = #tpu.dot_dimension_numbers<[1], [0], [0], [1], [0, 0, 1, 1], [], []>} : vector<8x128xf32>, vector<128x128xf32>, vector<8x128xf32> -> vector<8x128xf32>
    %c0_245 = arith.constant 0 : index
    %c0_246 = arith.constant 0 : index
    %335 = vector.load %arg12[%c0_245, %c0_246] : memref<1x128xf32, #tpu.memory_space<vmem>>, vector<1x128xf32>
    %336 = vector.broadcast %335 : vector<1x128xf32> to vector<8x128xf32>
    %337 = arith.addf %334, %336 : vector<8x128xf32>
    %c40_247 = arith.constant 40 : index
    %c0_248 = arith.constant 0 : index
    %338 = vector.load %arg13[%c40_247, %c0_248] : memref<64x128xf32, #tpu.memory_space<vmem>>, vector<8x128xf32>
    tpu.vector_store %arg13[%c40_247, %c0_248], %337 {strides = array<i32>} : memref<64x128xf32, #tpu.memory_space<vmem>>, vector<8x128xf32>,
    %c48 = arith.constant 48 : index
    %c0_249 = arith.constant 0 : index
    %339 = vector.load %arg16[%c48, %c0_249] : memref<64x512xf32, #tpu.memory_space<vmem>>, vector<8x128xf32>
    %c0_250 = arith.constant 0 : index
    %c0_251 = arith.constant 0 : index
    %340 = vector.load %arg5[%c0_250, %c0_251] : memref<128x128xf32, #tpu.memory_space<vmem>>, vector<128x128xf32>
    %cst_252 = arith.constant dense<0.000000e+00> : vector<8x128xf32>
    %341 = tpu.matmul %326, %340, %cst_252 {dimension_numbers = #tpu.dot_dimension_numbers<[1], [0], [0], [1], [0, 0, 1, 1], [], []>} : vector<8x128xf32>, vector<128x128xf32>, vector<8x128xf32> -> vector<8x128xf32>
    %342 = arith.addf %339, %341 : vector<8x128xf32>
    %c48_253 = arith.constant 48 : index
    %c128_254 = arith.constant 128 : index
    %343 = vector.load %arg16[%c48_253, %c128_254] : memref<64x512xf32, #tpu.memory_space<vmem>>, vector<8x128xf32>
    %c0_255 = arith.constant 0 : index
    %c0_256 = arith.constant 0 : index
    %344 = vector.load %arg6[%c0_255, %c0_256] : memref<128x128xf32, #tpu.memory_space<vmem>>, vector<128x128xf32>
    %cst_257 = arith.constant dense<0.000000e+00> : vector<8x128xf32>
    %345 = tpu.matmul %326, %344, %cst_257 {dimension_numbers = #tpu.dot_dimension_numbers<[1], [0], [0], [1], [0, 0, 1, 1], [], []>} : vector<8x128xf32>, vector<128x128xf32>, vector<8x128xf32> -> vector<8x128xf32>
    %346 = arith.addf %343, %345 : vector<8x128xf32>
    %c48_258 = arith.constant 48 : index
    %c256_259 = arith.constant 256 : index
    %347 = vector.load %arg16[%c48_258, %c256_259] : memref<64x512xf32, #tpu.memory_space<vmem>>, vector<8x128xf32>
    %c0_260 = arith.constant 0 : index
    %c0_261 = arith.constant 0 : index
    %348 = vector.load %arg7[%c0_260, %c0_261] : memref<128x128xf32, #tpu.memory_space<vmem>>, vector<128x128xf32>
    %cst_262 = arith.constant dense<0.000000e+00> : vector<8x128xf32>
    %349 = tpu.matmul %326, %348, %cst_262 {dimension_numbers = #tpu.dot_dimension_numbers<[1], [0], [0], [1], [0, 0, 1, 1], [], []>} : vector<8x128xf32>, vector<128x128xf32>, vector<8x128xf32> -> vector<8x128xf32>
    %350 = arith.addf %347, %349 : vector<8x128xf32>
    %cst_263 = arith.constant 5.000000e-01 : f32
    %351 = vector.broadcast %cst_263 : f32 to vector<8x128xf32>
    %352 = arith.mulf %351, %342 : vector<8x128xf32>
    %353 = math.tanh %352 : vector<8x128xf32>
    %cst_264 = arith.constant 5.000000e-01 : f32
    %354 = vector.broadcast %cst_264 : f32 to vector<8x128xf32>
    %355 = arith.mulf %354, %353 : vector<8x128xf32>
    %cst_265 = arith.constant 5.000000e-01 : f32
    %356 = vector.broadcast %cst_265 : f32 to vector<8x128xf32>
    %357 = arith.addf %355, %356 : vector<8x128xf32>
    %cst_266 = arith.constant 5.000000e-01 : f32
    %358 = vector.broadcast %cst_266 : f32 to vector<8x128xf32>
    %359 = arith.mulf %358, %346 : vector<8x128xf32>
    %360 = math.tanh %359 : vector<8x128xf32>
    %cst_267 = arith.constant 5.000000e-01 : f32
    %361 = vector.broadcast %cst_267 : f32 to vector<8x128xf32>
    %362 = arith.mulf %361, %360 : vector<8x128xf32>
    %cst_268 = arith.constant 5.000000e-01 : f32
    %363 = vector.broadcast %cst_268 : f32 to vector<8x128xf32>
    %364 = arith.addf %362, %363 : vector<8x128xf32>
    %365 = math.tanh %350 : vector<8x128xf32>
    %366 = arith.mulf %364, %313 : vector<8x128xf32>
    %367 = arith.mulf %357, %365 : vector<8x128xf32>
    %368 = arith.addf %366, %367 : vector<8x128xf32>
    %c48_269 = arith.constant 48 : index
    %c384_270 = arith.constant 384 : index
    %369 = vector.load %arg16[%c48_269, %c384_270] : memref<64x512xf32, #tpu.memory_space<vmem>>, vector<8x128xf32>
    %c0_271 = arith.constant 0 : index
    %c0_272 = arith.constant 0 : index
    %370 = vector.load %arg8[%c0_271, %c0_272] : memref<128x128xf32, #tpu.memory_space<vmem>>, vector<128x128xf32>
    %cst_273 = arith.constant dense<0.000000e+00> : vector<8x128xf32>
    %371 = tpu.matmul %326, %370, %cst_273 {dimension_numbers = #tpu.dot_dimension_numbers<[1], [0], [0], [1], [0, 0, 1, 1], [], []>} : vector<8x128xf32>, vector<128x128xf32>, vector<8x128xf32> -> vector<8x128xf32>
    %372 = arith.addf %369, %371 : vector<8x128xf32>
    %cst_274 = arith.constant 5.000000e-01 : f32
    %373 = vector.broadcast %cst_274 : f32 to vector<8x128xf32>
    %374 = arith.mulf %373, %372 : vector<8x128xf32>
    %375 = math.tanh %374 : vector<8x128xf32>
    %cst_275 = arith.constant 5.000000e-01 : f32
    %376 = vector.broadcast %cst_275 : f32 to vector<8x128xf32>
    %377 = arith.mulf %376, %375 : vector<8x128xf32>
    %cst_276 = arith.constant 5.000000e-01 : f32
    %378 = vector.broadcast %cst_276 : f32 to vector<8x128xf32>
    %379 = arith.addf %377, %378 : vector<8x128xf32>
    %380 = math.tanh %368 : vector<8x128xf32>
    %381 = arith.mulf %379, %380 : vector<8x128xf32>
    %c0_277 = arith.constant 0 : index
    %c0_278 = arith.constant 0 : index
    %382 = vector.load %arg9[%c0_277, %c0_278] : memref<128x128xf32, #tpu.memory_space<vmem>>, vector<128x128xf32>
    %cst_279 = arith.constant dense<0.000000e+00> : vector<8x128xf32>
    %383 = tpu.matmul %381, %382, %cst_279 {dimension_numbers = #tpu.dot_dimension_numbers<[1], [0], [0], [1], [0, 0, 1, 1], [], []>} : vector<8x128xf32>, vector<128x128xf32>, vector<8x128xf32> -> vector<8x128xf32>
    %c0_280 = arith.constant 0 : index
    %c0_281 = arith.constant 0 : index
    %384 = vector.load %arg10[%c0_280, %c0_281] : memref<1x128xf32, #tpu.memory_space<vmem>>, vector<1x128xf32>
    %385 = vector.broadcast %384 : vector<1x128xf32> to vector<8x128xf32>
    %386 = arith.addf %383, %385 : vector<8x128xf32>
    %387 = math.tanh %386 : vector<8x128xf32>
    %c0_282 = arith.constant 0 : index
    %c0_283 = arith.constant 0 : index
    %388 = vector.load %arg11[%c0_282, %c0_283] : memref<128x128xf32, #tpu.memory_space<vmem>>, vector<128x128xf32>
    %cst_284 = arith.constant dense<0.000000e+00> : vector<8x128xf32>
    %389 = tpu.matmul %387, %388, %cst_284 {dimension_numbers = #tpu.dot_dimension_numbers<[1], [0], [0], [1], [0, 0, 1, 1], [], []>} : vector<8x128xf32>, vector<128x128xf32>, vector<8x128xf32> -> vector<8x128xf32>
    %c0_285 = arith.constant 0 : index
    %c0_286 = arith.constant 0 : index
    %390 = vector.load %arg12[%c0_285, %c0_286] : memref<1x128xf32, #tpu.memory_space<vmem>>, vector<1x128xf32>
    %391 = vector.broadcast %390 : vector<1x128xf32> to vector<8x128xf32>
    %392 = arith.addf %389, %391 : vector<8x128xf32>
    %c48_287 = arith.constant 48 : index
    %c0_288 = arith.constant 0 : index
    %393 = vector.load %arg13[%c48_287, %c0_288] : memref<64x128xf32, #tpu.memory_space<vmem>>, vector<8x128xf32>
    tpu.vector_store %arg13[%c48_287, %c0_288], %392 {strides = array<i32>} : memref<64x128xf32, #tpu.memory_space<vmem>>, vector<8x128xf32>,
    %c56 = arith.constant 56 : index
    %c0_289 = arith.constant 0 : index
    %394 = vector.load %arg16[%c56, %c0_289] : memref<64x512xf32, #tpu.memory_space<vmem>>, vector<8x128xf32>
    %c0_290 = arith.constant 0 : index
    %c0_291 = arith.constant 0 : index
    %395 = vector.load %arg5[%c0_290, %c0_291] : memref<128x128xf32, #tpu.memory_space<vmem>>, vector<128x128xf32>
    %cst_292 = arith.constant dense<0.000000e+00> : vector<8x128xf32>
    %396 = tpu.matmul %381, %395, %cst_292 {dimension_numbers = #tpu.dot_dimension_numbers<[1], [0], [0], [1], [0, 0, 1, 1], [], []>} : vector<8x128xf32>, vector<128x128xf32>, vector<8x128xf32> -> vector<8x128xf32>
    %397 = arith.addf %394, %396 : vector<8x128xf32>
    %c56_293 = arith.constant 56 : index
    %c128_294 = arith.constant 128 : index
    %398 = vector.load %arg16[%c56_293, %c128_294] : memref<64x512xf32, #tpu.memory_space<vmem>>, vector<8x128xf32>
    %c0_295 = arith.constant 0 : index
    %c0_296 = arith.constant 0 : index
    %399 = vector.load %arg6[%c0_295, %c0_296] : memref<128x128xf32, #tpu.memory_space<vmem>>, vector<128x128xf32>
    %cst_297 = arith.constant dense<0.000000e+00> : vector<8x128xf32>
    %400 = tpu.matmul %381, %399, %cst_297 {dimension_numbers = #tpu.dot_dimension_numbers<[1], [0], [0], [1], [0, 0, 1, 1], [], []>} : vector<8x128xf32>, vector<128x128xf32>, vector<8x128xf32> -> vector<8x128xf32>
    %401 = arith.addf %398, %400 : vector<8x128xf32>
    %c56_298 = arith.constant 56 : index
    %c256_299 = arith.constant 256 : index
    %402 = vector.load %arg16[%c56_298, %c256_299] : memref<64x512xf32, #tpu.memory_space<vmem>>, vector<8x128xf32>
    %c0_300 = arith.constant 0 : index
    %c0_301 = arith.constant 0 : index
    %403 = vector.load %arg7[%c0_300, %c0_301] : memref<128x128xf32, #tpu.memory_space<vmem>>, vector<128x128xf32>
    %cst_302 = arith.constant dense<0.000000e+00> : vector<8x128xf32>
    %404 = tpu.matmul %381, %403, %cst_302 {dimension_numbers = #tpu.dot_dimension_numbers<[1], [0], [0], [1], [0, 0, 1, 1], [], []>} : vector<8x128xf32>, vector<128x128xf32>, vector<8x128xf32> -> vector<8x128xf32>
    %405 = arith.addf %402, %404 : vector<8x128xf32>
    %cst_303 = arith.constant 5.000000e-01 : f32
    %406 = vector.broadcast %cst_303 : f32 to vector<8x128xf32>
    %407 = arith.mulf %406, %397 : vector<8x128xf32>
    %408 = math.tanh %407 : vector<8x128xf32>
    %cst_304 = arith.constant 5.000000e-01 : f32
    %409 = vector.broadcast %cst_304 : f32 to vector<8x128xf32>
    %410 = arith.mulf %409, %408 : vector<8x128xf32>
    %cst_305 = arith.constant 5.000000e-01 : f32
    %411 = vector.broadcast %cst_305 : f32 to vector<8x128xf32>
    %412 = arith.addf %410, %411 : vector<8x128xf32>
    %cst_306 = arith.constant 5.000000e-01 : f32
    %413 = vector.broadcast %cst_306 : f32 to vector<8x128xf32>
    %414 = arith.mulf %413, %401 : vector<8x128xf32>
    %415 = math.tanh %414 : vector<8x128xf32>
    %cst_307 = arith.constant 5.000000e-01 : f32
    %416 = vector.broadcast %cst_307 : f32 to vector<8x128xf32>
    %417 = arith.mulf %416, %415 : vector<8x128xf32>
    %cst_308 = arith.constant 5.000000e-01 : f32
    %418 = vector.broadcast %cst_308 : f32 to vector<8x128xf32>
    %419 = arith.addf %417, %418 : vector<8x128xf32>
    %420 = math.tanh %405 : vector<8x128xf32>
    %421 = arith.mulf %419, %368 : vector<8x128xf32>
    %422 = arith.mulf %412, %420 : vector<8x128xf32>
    %423 = arith.addf %421, %422 : vector<8x128xf32>
    %c56_309 = arith.constant 56 : index
    %c384_310 = arith.constant 384 : index
    %424 = vector.load %arg16[%c56_309, %c384_310] : memref<64x512xf32, #tpu.memory_space<vmem>>, vector<8x128xf32>
    %c0_311 = arith.constant 0 : index
    %c0_312 = arith.constant 0 : index
    %425 = vector.load %arg8[%c0_311, %c0_312] : memref<128x128xf32, #tpu.memory_space<vmem>>, vector<128x128xf32>
    %cst_313 = arith.constant dense<0.000000e+00> : vector<8x128xf32>
    %426 = tpu.matmul %381, %425, %cst_313 {dimension_numbers = #tpu.dot_dimension_numbers<[1], [0], [0], [1], [0, 0, 1, 1], [], []>} : vector<8x128xf32>, vector<128x128xf32>, vector<8x128xf32> -> vector<8x128xf32>
    %427 = arith.addf %424, %426 : vector<8x128xf32>
    %cst_314 = arith.constant 5.000000e-01 : f32
    %428 = vector.broadcast %cst_314 : f32 to vector<8x128xf32>
    %429 = arith.mulf %428, %427 : vector<8x128xf32>
    %430 = math.tanh %429 : vector<8x128xf32>
    %cst_315 = arith.constant 5.000000e-01 : f32
    %431 = vector.broadcast %cst_315 : f32 to vector<8x128xf32>
    %432 = arith.mulf %431, %430 : vector<8x128xf32>
    %cst_316 = arith.constant 5.000000e-01 : f32
    %433 = vector.broadcast %cst_316 : f32 to vector<8x128xf32>
    %434 = arith.addf %432, %433 : vector<8x128xf32>
    %435 = math.tanh %423 : vector<8x128xf32>
    %436 = arith.mulf %434, %435 : vector<8x128xf32>
    %c0_317 = arith.constant 0 : index
    %c0_318 = arith.constant 0 : index
    %437 = vector.load %arg9[%c0_317, %c0_318] : memref<128x128xf32, #tpu.memory_space<vmem>>, vector<128x128xf32>
    %cst_319 = arith.constant dense<0.000000e+00> : vector<8x128xf32>
    %438 = tpu.matmul %436, %437, %cst_319 {dimension_numbers = #tpu.dot_dimension_numbers<[1], [0], [0], [1], [0, 0, 1, 1], [], []>} : vector<8x128xf32>, vector<128x128xf32>, vector<8x128xf32> -> vector<8x128xf32>
    %c0_320 = arith.constant 0 : index
    %c0_321 = arith.constant 0 : index
    %439 = vector.load %arg10[%c0_320, %c0_321] : memref<1x128xf32, #tpu.memory_space<vmem>>, vector<1x128xf32>
    %440 = vector.broadcast %439 : vector<1x128xf32> to vector<8x128xf32>
    %441 = arith.addf %438, %440 : vector<8x128xf32>
    %442 = math.tanh %441 : vector<8x128xf32>
    %c0_322 = arith.constant 0 : index
    %c0_323 = arith.constant 0 : index
    %443 = vector.load %arg11[%c0_322, %c0_323] : memref<128x128xf32, #tpu.memory_space<vmem>>, vector<128x128xf32>
    %cst_324 = arith.constant dense<0.000000e+00> : vector<8x128xf32>
    %444 = tpu.matmul %442, %443, %cst_324 {dimension_numbers = #tpu.dot_dimension_numbers<[1], [0], [0], [1], [0, 0, 1, 1], [], []>} : vector<8x128xf32>, vector<128x128xf32>, vector<8x128xf32> -> vector<8x128xf32>
    %c0_325 = arith.constant 0 : index
    %c0_326 = arith.constant 0 : index
    %445 = vector.load %arg12[%c0_325, %c0_326] : memref<1x128xf32, #tpu.memory_space<vmem>>, vector<1x128xf32>
    %446 = vector.broadcast %445 : vector<1x128xf32> to vector<8x128xf32>
    %447 = arith.addf %444, %446 : vector<8x128xf32>
    %c56_327 = arith.constant 56 : index
    %c0_328 = arith.constant 0 : index
    %448 = vector.load %arg13[%c56_327, %c0_328] : memref<64x128xf32, #tpu.memory_space<vmem>>, vector<8x128xf32>
    tpu.vector_store %arg13[%c56_327, %c0_328], %447 {strides = array<i32>} : memref<64x128xf32, #tpu.memory_space<vmem>>, vector<8x128xf32>,
    %c0_329 = arith.constant 0 : index
    %c0_330 = arith.constant 0 : index
    %449 = vector.load %arg14[%c0_329, %c0_330] : memref<8x128xf32, #tpu.memory_space<vmem>>, vector<8x128xf32>
    tpu.vector_store %arg14[%c0_329, %c0_330], %436 {strides = array<i32>} : memref<8x128xf32, #tpu.memory_space<vmem>>, vector<8x128xf32>,
    %c0_331 = arith.constant 0 : index
    %c0_332 = arith.constant 0 : index
    %450 = vector.load %arg15[%c0_331, %c0_332] : memref<8x128xf32, #tpu.memory_space<vmem>>, vector<8x128xf32>
    tpu.vector_store %arg15[%c0_331, %c0_332], %423 {strides = array<i32>} : memref<8x128xf32, #tpu.memory_space<vmem>>, vector<8x128xf32>,
    return
  }
}

</mosaic_0001>

<llo_original>
// kernel: decoder_forward.1
$region0: #{decoder_forward.1}
  #allocation0 [shape = 'u32[]', space=smem, size = 0x4, offset = 0x4, fixed_abs, tag = 'smem constant byte address 0x4 - core index']
  #allocation1 [shape = 'u32[144,128]{1,0:T(1,128)}', space=vmem, size = 0x12000, scoped, tag = 'internal scratch']
  #allocation2 [shape = 'f32[64,512]{1,0:T(8,128)}', space=vmem, size = 0x20000, scoped, tag = 'scratch operand']
  %s0 = inlined_call_operand.vmem [shape: f32[64,2], index: 0, kind: input, shape index: {}]
  %s1 = inlined_call_operand.vmem [shape: f32[8,128], index: 1, kind: input, shape index: {}]
  %s2 = inlined_call_operand.vmem [shape: f32[8,128], index: 2, kind: input, shape index: {}]
  %s3 = inlined_call_operand.vmem [shape: f32[2,512], index: 3, kind: input, shape index: {}]
  %s4 = inlined_call_operand.hbm [shape: f32[1,512], index: 4, kind: input, shape index: {}]
  %s5 = inlined_call_operand.vmem [shape: f32[128,128], index: 5, kind: input, shape index: {}]
  %s6 = inlined_call_operand.hbm [shape: f32[128,128], index: 6, kind: input, shape index: {}]
  %s7 = inlined_call_operand.hbm [shape: f32[128,128], index: 7, kind: input, shape index: {}]
  %s8 = inlined_call_operand.hbm [shape: f32[128,128], index: 8, kind: input, shape index: {}]
  %s9 = inlined_call_operand.hbm [shape: f32[128,128], index: 9, kind: input, shape index: {}]
  %s10 = inlined_call_operand.vmem [shape: f32[1,128], index: 10, kind: input, shape index: {}]
  %s11 = inlined_call_operand.hbm [shape: f32[128,128], index: 11, kind: input, shape index: {}]
  %s12 = inlined_call_operand.vmem [shape: f32[1,128], index: 12, kind: input, shape index: {}]
  %s13 = inlined_call_operand.vmem [shape: f32[64,128], index: 13, kind: output, shape index: {0}]
  %s14 = inlined_call_operand.vmem [shape: f32[8,128], index: 14, kind: output, shape index: {1}]
  %s15 = inlined_call_operand.vmem [shape: f32[8,128], index: 15, kind: output, shape index: {2}]
  %16 = xla_tuple %s13, %s14, %s15
  %s17 = sld [smem:[#allocation0]]
  $region102: #{decoder_forward.1} parent=0
    _
  %s19 = ssub.s32 1, %s17
  %s20 = scalar_select 0, %s19, %s17
  $region1: #{decoder_forward.1} parent=0
    #allocation3 [shape = 'u8[2048]{0}', space=vmem, size = 0x800, scoped, tag = 'input window, operand 4, single buffered']
    #allocation4 [shape = 's32[1]{0}', space=sflag, size = 0x4, scoped, tag = 'scoped memory for decoder_forward.1']
    #allocation5 [shape = 'u8[65536]{0}', space=vmem, size = 0x10000, scoped, tag = 'input window, operand 6, single buffered']
    #allocation6 [shape = 's32[1]{0}', space=sflag, size = 0x4, scoped, tag = 'scoped memory for decoder_forward.1']
    #allocation7 [shape = 'u8[65536]{0}', space=vmem, size = 0x10000, scoped, tag = 'input window, operand 7, single buffered']
    #allocation8 [shape = 'u8[65536]{0}', space=vmem, size = 0x10000, scoped, tag = 'input window, operand 8, single buffered']
    #allocation9 [shape = 's32[1]{0}', space=sflag, size = 0x4, scoped, tag = 'scoped memory for decoder_forward.1']
    #allocation10 [shape = 'u8[65536]{0}', space=vmem, size = 0x10000, scoped, tag = 'input window, operand 9, single buffered']
    #allocation11 [shape = 'u8[65536]{0}', space=vmem, size = 0x10000, scoped, tag = 'input window, operand 11, single buffered']
    #allocation12 [shape = 's32[1]{0}', space=sflag, size = 0x4, scoped, tag = 'scoped memory for decoder_forward.1']
    %21 = vsyncpa [#allocation4], 0
    %22 = vsyncpa [#allocation6], 0
    %23 = vsyncpa [#allocation9], 0
    %24 = vsyncpa [#allocation12], 0
    // Predicated region
    $region2: #{decoder_forward.1} parent=1 // pred_check
      _
    $region3: #{decoder_forward.1} parent=1 // pred_check_branch
      %26 = sbr.rel (0) target = $region5
    $region4: #{decoder_forward.1} parent=1 // pred_region
      _
    $region5: #{decoder_forward.1} parent=1 // pred_fallthru
      _
    // Predicated region
    $region6: #{decoder_forward.1} parent=1 // pred_check
      _
    $region7: #{decoder_forward.1} parent=1 // pred_check_branch
      %28 = sbr.rel (0) target = $region9
    $region8: #{decoder_forward.1} parent=1 // pred_region
      _
    $region9: #{decoder_forward.1} parent=1 // pred_fallthru
      _
    // Predicated region
    $region10: #{decoder_forward.1} parent=1 // pred_check
      _
    $region11: #{decoder_forward.1} parent=1 // pred_check_branch
      %30 = sbr.rel (0) target = $region13
    $region12: #{decoder_forward.1} parent=1 // pred_region
      _
    $region13: #{decoder_forward.1} parent=1 // pred_fallthru
      _
    // Predicated region
    $region14: #{decoder_forward.1} parent=1 // pred_check
      _
    $region15: #{decoder_forward.1} parent=1 // pred_check_branch
      %32 = sbr.rel (0) target = $region17
    $region16: #{decoder_forward.1} parent=1 // pred_region
      _
    $region17: #{decoder_forward.1} parent=1 // pred_fallthru
      _
    // Predicated region
    $region18: #{decoder_forward.1} parent=1 // pred_check
      _
    $region19: #{decoder_forward.1} parent=1 // pred_check_branch
      %34 = sbr.rel (0) target = $region21
    $region20: #{decoder_forward.1} parent=1 // pred_region
      %s36 = ssub.s32 64, 64
      %37 = vsyncadd [#allocation4], %s36
      %s39 = sshll.u32 [#allocation3], 4
      %s40 = int_to_ptr.vmem [resolvable:$true] %s39
      %42 = dma.hbm_to_vmem [thread:$0]  %s4, 64, %s40, [#allocation4]
    $region21: #{decoder_forward.1} parent=1 // pred_fallthru
      _
    // Predicated region
    $region22: #{decoder_forward.1} parent=1 // pred_check
      _
    $region23: #{decoder_forward.1} parent=1 // pred_check_branch
      %44 = sbr.rel (0) target = $region25
    $region24: #{decoder_forward.1} parent=1 // pred_region
      _
    $region25: #{decoder_forward.1} parent=1 // pred_fallthru
      _
    // Predicated region
    $region26: #{decoder_forward.1} parent=1 // pred_check
      _
    $region27: #{decoder_forward.1} parent=1 // pred_check_branch
      %46 = sbr.rel (0) target = $region29
    $region28: #{decoder_forward.1} parent=1 // pred_region
      %s48 = ssub.s32 2048, 2048
      %49 = vsyncadd [#allocation6], %s48
      %s50 = sshll.u32 [#allocation5], 4
      %s51 = int_to_ptr.vmem [resolvable:$true] %s50
      %56 = dma.hbm_to_vmem [thread:$0]  %s6, 2048, %s51, [#allocation6], 128, 128, 8
    $region29: #{decoder_forward.1} parent=1 // pred_fallthru
      _
    // Predicated region
    $region30: #{decoder_forward.1} parent=1 // pred_check
      _
    $region31: #{decoder_forward.1} parent=1 // pred_check_branch
      %58 = sbr.rel (0) target = $region33
    $region32: #{decoder_forward.1} parent=1 // pred_region
      %s60 = ssub.s32 2048, 2048
      %61 = vsyncadd [#allocation6], %s60
      %s62 = sshll.u32 [#allocation7], 4
      %s63 = int_to_ptr.vmem [resolvable:$true] %s62
      %68 = dma.hbm_to_vmem [thread:$0]  %s7, 2048, %s63, [#allocation6], 128, 128, 8
    $region33: #{decoder_forward.1} parent=1 // pred_fallthru
      _
    // Predicated region
    $region34: #{decoder_forward.1} parent=1 // pred_check
      _
    $region35: #{decoder_forward.1} parent=1 // pred_check_branch
      %70 = sbr.rel (0) target = $region37
    $region36: #{decoder_forward.1} parent=1 // pred_region
      %s72 = ssub.s32 2048, 2048
      %73 = vsyncadd [#allocation9], %s72
      %s74 = sshll.u32 [#allocation8], 4
      %s75 = int_to_ptr.vmem [resolvable:$true] %s74
      %80 = dma.hbm_to_vmem [thread:$0]  %s8, 2048, %s75, [#allocation9], 128, 128, 8
    $region37: #{decoder_forward.1} parent=1 // pred_fallthru
      _
    // Predicated region
    $region38: #{decoder_forward.1} parent=1 // pred_check
      _
    $region39: #{decoder_forward.1} parent=1 // pred_check_branch
      %82 = sbr.rel (0) target = $region41
    $region40: #{decoder_forward.1} parent=1 // pred_region
      %s84 = ssub.s32 2048, 2048
      %85 = vsyncadd [#allocation9], %s84
      %s86 = sshll.u32 [#allocation10], 4
      %s87 = int_to_ptr.vmem [resolvable:$true] %s86
      %92 = dma.hbm_to_vmem [thread:$0]  %s9, 2048, %s87, [#allocation9], 128, 128, 8
    $region41: #{decoder_forward.1} parent=1 // pred_fallthru
      _
    // Predicated region
    $region42: #{decoder_forward.1} parent=1 // pred_check
      _
    $region43: #{decoder_forward.1} parent=1 // pred_check_branch
      %94 = sbr.rel (0) target = $region45
    $region44: #{decoder_forward.1} parent=1 // pred_region
      _
    $region45: #{decoder_forward.1} parent=1 // pred_fallthru
      _
    // Predicated region
    $region46: #{decoder_forward.1} parent=1 // pred_check
      _
    $region47: #{decoder_forward.1} parent=1 // pred_check_branch
      %96 = sbr.rel (0) target = $region49
    $region48: #{decoder_forward.1} parent=1 // pred_region
      %s98 = ssub.s32 2048, 2048
      %99 = vsyncadd [#allocation12], %s98
      %s100 = sshll.u32 [#allocation11], 4
      %s101 = int_to_ptr.vmem [resolvable:$true] %s100
      %106 = dma.hbm_to_vmem [thread:$0]  %s11, 2048, %s101, [#allocation12], 128, 128, 8
    $region49: #{decoder_forward.1} parent=1 // pred_fallthru
      _
    // Predicated region
    $region50: #{decoder_forward.1} parent=1 // pred_check
      _
    $region51: #{decoder_forward.1} parent=1 // pred_check_branch
      %108 = sbr.rel (0) target = $region53
    $region52: #{decoder_forward.1} parent=1 // pred_region
      _
    $region53: #{decoder_forward.1} parent=1 // pred_fallthru
      _
    // Predicated region
    $region54: #{decoder_forward.1} parent=1 // pred_check
      _
    $region55: #{decoder_forward.1} parent=1 // pred_check_branch
      %110 = sbr.rel (0) target = $region57
    $region56: #{decoder_forward.1} parent=1 // pred_region
      %111 = dma.done [#allocation4], 64
    $region57: #{decoder_forward.1} parent=1 // pred_fallthru
      _
    // Predicated region
    $region58: #{decoder_forward.1} parent=1 // pred_check
      _
    $region59: #{decoder_forward.1} parent=1 // pred_check_branch
      %113 = sbr.rel (0) target = $region61
    $region60: #{decoder_forward.1} parent=1 // pred_region
      %114 = dma.done [#allocation6], 2048
    $region61: #{decoder_forward.1} parent=1 // pred_fallthru
      _
    // Predicated region
    $region62: #{decoder_forward.1} parent=1 // pred_check
      _
    $region63: #{decoder_forward.1} parent=1 // pred_check_branch
      %116 = sbr.rel (0) target = $region65
    $region64: #{decoder_forward.1} parent=1 // pred_region
      %117 = dma.done [#allocation6], 2048
    $region65: #{decoder_forward.1} parent=1 // pred_fallthru
      _
    // Predicated region
    $region66: #{decoder_forward.1} parent=1 // pred_check
      _
    $region67: #{decoder_forward.1} parent=1 // pred_check_branch
      %119 = sbr.rel (0) target = $region69
    $region68: #{decoder_forward.1} parent=1 // pred_region
      %120 = dma.done [#allocation9], 2048
    $region69: #{decoder_forward.1} parent=1 // pred_fallthru
      _
    // Predicated region
    $region70: #{decoder_forward.1} parent=1 // pred_check
      _
    $region71: #{decoder_forward.1} parent=1 // pred_check_branch
      %122 = sbr.rel (0) target = $region73
    $region72: #{decoder_forward.1} parent=1 // pred_region
      %123 = dma.done [#allocation9], 2048
    $region73: #{decoder_forward.1} parent=1 // pred_fallthru
      _
    // Predicated region
    $region74: #{decoder_forward.1} parent=1 // pred_check
      _
    $region75: #{decoder_forward.1} parent=1 // pred_check_branch
      %125 = sbr.rel (0) target = $region77
    $region76: #{decoder_forward.1} parent=1 // pred_region
      %126 = dma.done [#allocation12], 2048
    $region77: #{decoder_forward.1} parent=1 // pred_fallthru
      _
    %v127 = vld [vmem:[%s0] sm:$0xff]
    %v128 = vld [vmem:[%s0 + $0x8] sm:$0xff]
    %v129 = vld [vmem:[%s0 + $0x10] sm:$0xff]
    %v130 = vld [vmem:[%s0 + $0x18] sm:$0xff]
    %v131 = vld [vmem:[%s0 + $0x20] sm:$0xff]
    %v132 = vld [vmem:[%s0 + $0x28] sm:$0xff]
    %v133 = vld [vmem:[%s0 + $0x30] sm:$0xff]
    %v134 = vld [vmem:[%s0 + $0x38] sm:$0xff]
    %v135 = vld [vmem:[%s3] sm:$0xff]
    %v136 = vld [vmem:[#allocation3] sm:$0xf]
    %v138 = vlaneseq
    %v139 = vshrl.u32 %v138, 7
    %v140 = vsub.s32 0, %v139
    %v141 = vrot.slane %v136, %v140
    %v142 = vlaneseq
    %v143 = vshrl.u32 %v142, 7
    %v144 = vsub.s32 1, %v143
    %v145 = vrot.slane %v136, %v144
    %v146 = vlaneseq
    %v147 = vshrl.u32 %v146, 7
    %v148 = vsub.s32 2, %v147
    %v149 = vrot.slane %v136, %v148
    %v150 = vlaneseq
    %v151 = vshrl.u32 %v150, 7
    %v152 = vsub.s32 3, %v151
    %v153 = vrot.slane %v136, %v152
    %v159 = vcombine.high %v135, %v135
    %v161 = vunpack.c.l.s4 1983009808
    %v162 = vunpack.c.0.s8 %v161
    %v163 = vlaneseq
    %v164 = vshrl.u32 %v163, 7
    %v165 = vsub.s32 %v162, %v164
    %v166 = vrot.slane %v135, %v165
    %v168 = vunpack.c.l.s4 1983009808
    %v169 = vunpack.c.0.s8 %v168
    %v170 = vlaneseq
    %v171 = vshrl.u32 %v170, 7
    %v172 = vsub.s32 %v169, %v171
    %v173 = vrot.slane %v159, %v172
    %v174 = vcombine.high %v166, %v166
    %v175 = vcombine.high %v173, %v173
    %vm176 = vcmask 15360
    %v178 = vsel %vm176, %v127, 0
    %v181 = vsel %vm176, %v128, 0
    %v184 = vsel %vm176, %v129, 0
    %v187 = vsel %vm176, %v130, 0
    %v190 = vsel %vm176, %v131, 0
    %v193 = vsel %vm176, %v132, 0
    %v196 = vsel %vm176, %v133, 0
    %v199 = vsel %vm176, %v134, 0
    %vm201 = vcmask 1041408
    %v202 = vsel %vm201, %v166, 0
    %v204 = vsel %vm201, %v174, 0
    %v206 = vsel %vm201, %v173, 0
    %v208 = vsel %vm201, %v175, 0
    %210 = vmatprep.subr.mxu0 0.0
    %211 = vmatpush1.msra.mxu0 0.0
    %212 = vmatprep.subr.mxu0 0.0
    %213 = vmatpush1.msra.mxu0 0.0
    %214 = vmatprep.subr.mxu0 0.0
    %215 = vmatpush1.msra.mxu0 0.0
    %216 = vmatprep.subr.mxu0 0.0
    %217 = vmatpush1.msra.mxu0 0.0
    %218 = vmatprep.subr.mxu0 0.0
    %219 = vmatpush1.msra.mxu0 0.0
    %220 = vmatprep.subr.mxu0 0.0
    %221 = vmatpush1.msra.mxu0 0.0
    %222 = vmatprep.subr.mxu0 0.0
    %223 = vmatpush1.msra.mxu0 0.0
    %224 = vmatprep.subr.mxu0 0.0
    %225 = vmatpush1.msra.mxu0 0.0
    %226 = vmatprep.subr.mxu0 0.0
    %227 = vmatpush1.msra.mxu0 0.0
    %228 = vmatprep.subr.mxu0 0.0
    %229 = vmatpush1.msra.mxu0 0.0
    %230 = vmatprep.subr.mxu0 0.0
    %231 = vmatpush1.msra.mxu0 0.0
    %232 = vmatprep.subr.mxu0 0.0
    %233 = vmatpush1.msra.mxu0 0.0
    %234 = vmatprep.subr.mxu0 0.0
    %235 = vmatpush1.msra.mxu0 0.0
    %236 = vmatprep.subr.mxu0 0.0
    %237 = vmatpush1.msra.mxu0 0.0
    %238 = vmatprep.subr.mxu0 0.0
    %239 = vmatpush1.msra.mxu0 0.0
    %240 = vmatprep.subr.mxu0 %v204
    %241 = vmatpush1.msra.mxu0 %v202
    %242 = vmatprep.subr.mxu0 0.0
    %243 = vmatpush2.msra.mxu0 0.0
    %244 = vmatprep.subr.mxu0 0.0
    %245 = vmatpush2.msra.mxu0 0.0
    %246 = vmatprep.subr.mxu0 0.0
    %247 = vmatpush2.msra.mxu0 0.0
    %248 = vmatprep.subr.mxu0 0.0
    %249 = vmatpush2.msra.mxu0 0.0
    %250 = vmatprep.subr.mxu0 0.0
    %251 = vmatpush2.msra.mxu0 0.0
    %252 = vmatprep.subr.mxu0 0.0
    %253 = vmatpush2.msra.mxu0 0.0
    %254 = vmatprep.subr.mxu0 0.0
    %255 = vmatpush2.msra.mxu0 0.0
    %256 = vmatprep.subr.mxu0 0.0
    %257 = vmatpush2.msra.mxu0 0.0
    %258 = vmatprep.subr.mxu0 0.0
    %259 = vmatpush2.msra.mxu0 0.0
    %260 = vmatprep.subr.mxu0 0.0
    %261 = vmatpush2.msra.mxu0 0.0
    %262 = vmatprep.subr.mxu0 0.0
    %263 = vmatpush2.msra.mxu0 0.0
    %264 = vmatprep.subr.mxu0 0.0
    %265 = vmatpush2.msra.mxu0 0.0
    %266 = vmatprep.subr.mxu0 0.0
    %267 = vmatpush2.msra.mxu0 0.0
    %268 = vmatprep.subr.mxu0 0.0
    %269 = vmatpush2.msra.mxu0 0.0
    %270 = vmatprep.subr.mxu0 0.0
    %271 = vmatpush2.msra.mxu0 0.0
    %272 = vmatprep.subr.mxu0 0.0
    %273 = vmatpush2.msra.mxu0 0.0
    %274 = vmatprep.mubr.f32.mxu0 0.0
    %275 = vmatmul.mubr.f32.gmra.mxu0 %v178
    %v276 = vpop.f32.mrf.mxu0
    %v277 = vadd.f32 %v141, %v276
    %v278 = vpop.f32.mrf.mxu0
    %v279 = vadd.f32 %v145, %v278
    %280 = vmatprep.mubr.f32.mxu0 0.0
    %281 = vmatmul.mubr.f32.gmra.mxu0 %v181
    %v282 = vpop.f32.mrf.mxu0
    %v283 = vadd.f32 %v141, %v282
    %v284 = vpop.f32.mrf.mxu0
    %v285 = vadd.f32 %v145, %v284
    %286 = vmatprep.mubr.f32.mxu0 0.0
    %287 = vmatmul.mubr.f32.gmra.mxu0 %v184
    %v288 = vpop.f32.mrf.mxu0
    %v289 = vadd.f32 %v141, %v288
    %v290 = vpop.f32.mrf.mxu0
    %v291 = vadd.f32 %v145, %v290
    %292 = vmatprep.mubr.f32.mxu0 0.0
    %293 = vmatmul.mubr.f32.gmra.mxu0 %v187
    %v294 = vpop.f32.mrf.mxu0
    %v295 = vadd.f32 %v141, %v294
    %v296 = vpop.f32.mrf.mxu0
    %v297 = vadd.f32 %v145, %v296
    %298 = vmatprep.mubr.f32.mxu0 0.0
    %299 = vmatmul.mubr.f32.gmra.mxu0 %v190
    %v300 = vpop.f32.mrf.mxu0
    %v301 = vadd.f32 %v141, %v300
    %v302 = vpop.f32.mrf.mxu0
    %v303 = vadd.f32 %v145, %v302
    %304 = vmatprep.mubr.f32.mxu0 0.0
    %305 = vmatmul.mubr.f32.gmra.mxu0 %v193
    %v306 = vpop.f32.mrf.mxu0
    %v307 = vadd.f32 %v141, %v306
    %v308 = vpop.f32.mrf.mxu0
    %v309 = vadd.f32 %v145, %v308
    %310 = vmatprep.mubr.f32.mxu0 0.0
    %311 = vmatmul.mubr.f32.gmra.mxu0 %v196
    %v312 = vpop.f32.mrf.mxu0
    %v313 = vadd.f32 %v141, %v312
    %v314 = vpop.f32.mrf.mxu0
    %v315 = vadd.f32 %v145, %v314
    %316 = vmatprep.mubr.f32.mxu0 0.0
    %317 = vmatmul.mubr.f32.gmra.mxu0 %v199
    %v318 = vpop.f32.mrf.mxu0
    %v319 = vadd.f32 %v141, %v318
    %v320 = vpop.f32.mrf.mxu0
    %v321 = vadd.f32 %v145, %v320
    %322 = vdwg.mxu0
    %323 = vmatprep.subr.mxu0 0.0
    %324 = vmatpush1.msra.mxu0 0.0
    %325 = vmatprep.subr.mxu0 0.0
    %326 = vmatpush1.msra.mxu0 0.0
    %327 = vmatprep.subr.mxu0 0.0
    %328 = vmatpush1.msra.mxu0 0.0
    %329 = vmatprep.subr.mxu0 0.0
    %330 = vmatpush1.msra.mxu0 0.0
    %331 = vmatprep.subr.mxu0 0.0
    %332 = vmatpush1.msra.mxu0 0.0
    %333 = vmatprep.subr.mxu0 0.0
    %334 = vmatpush1.msra.mxu0 0.0
    %335 = vmatprep.subr.mxu0 0.0
    %336 = vmatpush1.msra.mxu0 0.0
    %337 = vmatprep.subr.mxu0 0.0
    %338 = vmatpush1.msra.mxu0 0.0
    %339 = vmatprep.subr.mxu0 0.0
    %340 = vmatpush1.msra.mxu0 0.0
    %341 = vmatprep.subr.mxu0 0.0
    %342 = vmatpush1.msra.mxu0 0.0
    %343 = vmatprep.subr.mxu0 0.0
    %344 = vmatpush1.msra.mxu0 0.0
    %345 = vmatprep.subr.mxu0 0.0
    %346 = vmatpush1.msra.mxu0 0.0
    %347 = vmatprep.subr.mxu0 0.0
    %348 = vmatpush1.msra.mxu0 0.0
    %349 = vmatprep.subr.mxu0 0.0
    %350 = vmatpush1.msra.mxu0 0.0
    %351 = vmatprep.subr.mxu0 0.0
    %352 = vmatpush1.msra.mxu0 0.0
    %353 = vmatprep.subr.mxu0 %v208
    %354 = vmatpush1.msra.mxu0 %v206
    %355 = vmatprep.subr.mxu0 0.0
    %356 = vmatpush2.msra.mxu0 0.0
    %357 = vmatprep.subr.mxu0 0.0
    %358 = vmatpush2.msra.mxu0 0.0
    %359 = vmatprep.subr.mxu0 0.0
    %360 = vmatpush2.msra.mxu0 0.0
    %361 = vmatprep.subr.mxu0 0.0
    %362 = vmatpush2.msra.mxu0 0.0
    %363 = vmatprep.subr.mxu0 0.0
    %364 = vmatpush2.msra.mxu0 0.0
    %365 = vmatprep.subr.mxu0 0.0
    %366 = vmatpush2.msra.mxu0 0.0
    %367 = vmatprep.subr.mxu0 0.0
    %368 = vmatpush2.msra.mxu0 0.0
    %369 = vmatprep.subr.mxu0 0.0
    %370 = vmatpush2.msra.mxu0 0.0
    %371 = vmatprep.subr.mxu0 0.0
    %372 = vmatpush2.msra.mxu0 0.0
    %373 = vmatprep.subr.mxu0 0.0
    %374 = vmatpush2.msra.mxu0 0.0
    %375 = vmatprep.subr.mxu0 0.0
    %376 = vmatpush2.msra.mxu0 0.0
    %377 = vmatprep.subr.mxu0 0.0
    %378 = vmatpush2.msra.mxu0 0.0
    %379 = vmatprep.subr.mxu0 0.0
    %380 = vmatpush2.msra.mxu0 0.0
    %381 = vmatprep.subr.mxu0 0.0
    %382 = vmatpush2.msra.mxu0 0.0
    %383 = vmatprep.subr.mxu0 0.0
    %384 = vmatpush2.msra.mxu0 0.0
    %385 = vmatprep.subr.mxu0 0.0
    %386 = vmatpush2.msra.mxu0 0.0
    %387 = vmatprep.mubr.f32.mxu0 0.0
    %388 = vmatmul.mubr.f32.gmra.mxu0 %v178
    %v389 = vpop.f32.mrf.mxu0
    %v390 = vadd.f32 %v149, %v389
    %v391 = vpop.f32.mrf.mxu0
    %v392 = vadd.f32 %v153, %v391
    %393 = vmatprep.mubr.f32.mxu0 0.0
    %394 = vmatmul.mubr.f32.gmra.mxu0 %v181
    %v395 = vpop.f32.mrf.mxu0
    %v396 = vadd.f32 %v149, %v395
    %v397 = vpop.f32.mrf.mxu0
    %v398 = vadd.f32 %v153, %v397
    %399 = vmatprep.mubr.f32.mxu0 0.0
    %400 = vmatmul.mubr.f32.gmra.mxu0 %v184
    %v401 = vpop.f32.mrf.mxu0
    %v402 = vadd.f32 %v149, %v401
    %v403 = vpop.f32.mrf.mxu0
    %v404 = vadd.f32 %v153, %v403
    %405 = vmatprep.mubr.f32.mxu0 0.0
    %406 = vmatmul.mubr.f32.gmra.mxu0 %v187
    %v407 = vpop.f32.mrf.mxu0
    %v408 = vadd.f32 %v149, %v407
    %v409 = vpop.f32.mrf.mxu0
    %v410 = vadd.f32 %v153, %v409
    %411 = vmatprep.mubr.f32.mxu0 0.0
    %412 = vmatmul.mubr.f32.gmra.mxu0 %v190
    %v413 = vpop.f32.mrf.mxu0
    %v414 = vadd.f32 %v149, %v413
    %v415 = vpop.f32.mrf.mxu0
    %v416 = vadd.f32 %v153, %v415
    %417 = vmatprep.mubr.f32.mxu0 0.0
    %418 = vmatmul.mubr.f32.gmra.mxu0 %v193
    %v419 = vpop.f32.mrf.mxu0
    %v420 = vadd.f32 %v149, %v419
    %v421 = vpop.f32.mrf.mxu0
    %v422 = vadd.f32 %v153, %v421
    %423 = vmatprep.mubr.f32.mxu0 0.0
    %424 = vmatmul.mubr.f32.gmra.mxu0 %v196
    %v425 = vpop.f32.mrf.mxu0
    %v426 = vadd.f32 %v149, %v425
    %v427 = vpop.f32.mrf.mxu0
    %v428 = vadd.f32 %v153, %v427
    %429 = vmatprep.mubr.f32.mxu0 0.0
    %430 = vmatmul.mubr.f32.gmra.mxu0 %v199
    %v431 = vpop.f32.mrf.mxu0
    %v432 = vadd.f32 %v149, %v431
    %v433 = vpop.f32.mrf.mxu0
    %v434 = vadd.f32 %v153, %v433
    %435 = vdwg.mxu0
    %436 = vst [vmem:[#allocation2] sm:$0xff] %v277
    %437 = vst [vmem:[#allocation2 + $0x8] sm:$0xff] %v279
    %438 = vst [vmem:[#allocation2 + $0x10] sm:$0xff] %v390
    %439 = vst [vmem:[#allocation2 + $0x18] sm:$0xff] %v392
    %440 = vst [vmem:[#allocation2 + $0x20] sm:$0xff] %v283
    %441 = vst [vmem:[#allocation2 + $0x28] sm:$0xff] %v285
    %442 = vst [vmem:[#allocation2 + $0x30] sm:$0xff] %v396
    %443 = vst [vmem:[#allocation2 + $0x38] sm:$0xff] %v398
    %444 = vst [vmem:[#allocation2 + $0x40] sm:$0xff] %v289
    %445 = vst [vmem:[#allocation2 + $0x48] sm:$0xff] %v291
    %446 = vst [vmem:[#allocation2 + $0x50] sm:$0xff] %v402
    %447 = vst [vmem:[#allocation2 + $0x58] sm:$0xff] %v404
    %448 = vst [vmem:[#allocation2 + $0x60] sm:$0xff] %v295
    %449 = vst [vmem:[#allocation2 + $0x68] sm:$0xff] %v297
    %450 = vst [vmem:[#allocation2 + $0x70] sm:$0xff] %v408
    %451 = vst [vmem:[#allocation2 + $0x78] sm:$0xff] %v410
    %452 = vst [vmem:[#allocation2 + $0x80] sm:$0xff] %v301
    %453 = vst [vmem:[#allocation2 + $0x88] sm:$0xff] %v303
    %454 = vst [vmem:[#allocation2 + $0x90] sm:$0xff] %v414
    %455 = vst [vmem:[#allocation2 + $0x98] sm:$0xff] %v416
    %456 = vst [vmem:[#allocation2 + $0xa0] sm:$0xff] %v307
    %457 = vst [vmem:[#allocation2 + $0xa8] sm:$0xff] %v309
    %458 = vst [vmem:[#allocation2 + $0xb0] sm:$0xff] %v420
    %459 = vst [vmem:[#allocation2 + $0xb8] sm:$0xff] %v422
    %460 = vst [vmem:[#allocation2 + $0xc0] sm:$0xff] %v313
    %461 = vst [vmem:[#allocation2 + $0xc8] sm:$0xff] %v315
    %462 = vst [vmem:[#allocation2 + $0xd0] sm:$0xff] %v426
    %463 = vst [vmem:[#allocation2 + $0xd8] sm:$0xff] %v428
    %464 = vst [vmem:[#allocation2 + $0xe0] sm:$0xff] %v319
    %465 = vst [vmem:[#allocation2 + $0xe8] sm:$0xff] %v321
    %466 = vst [vmem:[#allocation2 + $0xf0] sm:$0xff] %v432
    %467 = vst [vmem:[#allocation2 + $0xf8] sm:$0xff] %v434
    %v468 = vld [vmem:[%s1] sm:$0xff]
    %v469 = vld [vmem:[%s2] sm:$0xff]
    %v470 = vld [vmem:[#allocation2] sm:$0xff]
    %v471 = vld [vmem:[%s5] sm:$0xff]
    %v472 = vld [vmem:[%s5 + $0x8] sm:$0xff]
    %v473 = vld [vmem:[%s5 + $0x10] sm:$0xff]
    %v474 = vld [vmem:[%s5 + $0x18] sm:$0xff]
    %v475 = vld [vmem:[%s5 + $0x20] sm:$0xff]
    %v476 = vld [vmem:[%s5 + $0x28] sm:$0xff]
    %v477 = vld [vmem:[%s5 + $0x30] sm:$0xff]
    %v478 = vld [vmem:[%s5 + $0x38] sm:$0xff]
    %v479 = vld [vmem:[%s5 + $0x40] sm:$0xff]
    %v480 = vld [vmem:[%s5 + $0x48] sm:$0xff]
    %v481 = vld [vmem:[%s5 + $0x50] sm:$0xff]
    %v482 = vld [vmem:[%s5 + $0x58] sm:$0xff]
    %v483 = vld [vmem:[%s5 + $0x60] sm:$0xff]
    %v484 = vld [vmem:[%s5 + $0x68] sm:$0xff]
    %v485 = vld [vmem:[%s5 + $0x70] sm:$0xff]
    %v486 = vld [vmem:[%s5 + $0x78] sm:$0xff]
    %487 = vmatprep.subr.mxu0 0.0
    %488 = vmatpush1.msra.mxu0 %v486
    %489 = vmatprep.subr.mxu0 0.0
    %490 = vmatpush1.msra.mxu0 %v485
    %491 = vmatprep.subr.mxu0 0.0
    %492 = vmatpush1.msra.mxu0 %v484
    %493 = vmatprep.subr.mxu0 0.0
    %494 = vmatpush1.msra.mxu0 %v483
    %495 = vmatprep.subr.mxu0 0.0
    %496 = vmatpush1.msra.mxu0 %v482
    %497 = vmatprep.subr.mxu0 0.0
    %498 = vmatpush1.msra.mxu0 %v481
    %499 = vmatprep.subr.mxu0 0.0
    %500 = vmatpush1.msra.mxu0 %v480
    %501 = vmatprep.subr.mxu0 0.0
    %502 = vmatpush1.msra.mxu0 %v479
    %503 = vmatprep.subr.mxu0 0.0
    %504 = vmatpush1.msra.mxu0 %v478
    %505 = vmatprep.subr.mxu0 0.0
    %506 = vmatpush1.msra.mxu0 %v477
    %507 = vmatprep.subr.mxu0 0.0
    %508 = vmatpush1.msra.mxu0 %v476
    %509 = vmatprep.subr.mxu0 0.0
    %510 = vmatpush1.msra.mxu0 %v475
    %511 = vmatprep.subr.mxu0 0.0
    %512 = vmatpush1.msra.mxu0 %v474
    %513 = vmatprep.subr.mxu0 0.0
    %514 = vmatpush1.msra.mxu0 %v473
    %515 = vmatprep.subr.mxu0 0.0
    %516 = vmatpush1.msra.mxu0 %v472
    %517 = vmatprep.subr.mxu0 0.0
    %518 = vmatpush1.msra.mxu0 %v471
    %519 = vmatprep.subr.mxu0 0.0
    %520 = vmatpush2.msra.mxu0 0.0
    %521 = vmatprep.subr.mxu0 0.0
    %522 = vmatpush2.msra.mxu0 0.0
    %523 = vmatprep.subr.mxu0 0.0
    %524 = vmatpush2.msra.mxu0 0.0
    %525 = vmatprep.subr.mxu0 0.0
    %526 = vmatpush2.msra.mxu0 0.0
    %527 = vmatprep.subr.mxu0 0.0
    %528 = vmatpush2.msra.mxu0 0.0
    %529 = vmatprep.subr.mxu0 0.0
    %530 = vmatpush2.msra.mxu0 0.0
    %531 = vmatprep.subr.mxu0 0.0
    %532 = vmatpush2.msra.mxu0 0.0
    %533 = vmatprep.subr.mxu0 0.0
    %534 = vmatpush2.msra.mxu0 0.0
    %535 = vmatprep.subr.mxu0 0.0
    %536 = vmatpush2.msra.mxu0 0.0
    %537 = vmatprep.subr.mxu0 0.0
    %538 = vmatpush2.msra.mxu0 0.0
    %539 = vmatprep.subr.mxu0 0.0
    %540 = vmatpush2.msra.mxu0 0.0
    %541 = vmatprep.subr.mxu0 0.0
    %542 = vmatpush2.msra.mxu0 0.0
    %543 = vmatprep.subr.mxu0 0.0
    %544 = vmatpush2.msra.mxu0 0.0
    %545 = vmatprep.subr.mxu0 0.0
    %546 = vmatpush2.msra.mxu0 0.0
    %547 = vmatprep.subr.mxu0 0.0
    %548 = vmatpush2.msra.mxu0 0.0
    %549 = vmatprep.subr.mxu0 0.0
    %550 = vmatpush2.msra.mxu0 0.0
    %551 = vmatprep.mubr.f32.mxu0 0.0
    %552 = vmatmul.mubr.f32.gmra.mxu0 %v468
    %v553 = vpop.f32.mrf.mxu0
    %v554 = vadd.f32 0.0, %v553
    %v555 = vpop.f32.mrf.mxu0
    %556 = vdwg.mxu0
    %v557 = vadd.f32 %v470, %v554
    %v558 = vld [vmem:[#allocation2 + $0x8] sm:$0xff]
    %v559 = vld [vmem:[#allocation5] sm:$0xff]
    %v560 = vld [vmem:[#allocation5 + $0x8] sm:$0xff]
    %v561 = vld [vmem:[#allocation5 + $0x10] sm:$0xff]
    %v562 = vld [vmem:[#allocation5 + $0x18] sm:$0xff]
    %v563 = vld [vmem:[#allocation5 + $0x20] sm:$0xff]
    %v564 = vld [vmem:[#allocation5 + $0x28] sm:$0xff]
    %v565 = vld [vmem:[#allocation5 + $0x30] sm:$0xff]
    %v566 = vld [vmem:[#allocation5 + $0x38] sm:$0xff]
    %v567 = vld [vmem:[#allocation5 + $0x40] sm:$0xff]
    %v568 = vld [vmem:[#allocation5 + $0x48] sm:$0xff]
    %v569 = vld [vmem:[#allocation5 + $0x50] sm:$0xff]
    %v570 = vld [vmem:[#allocation5 + $0x58] sm:$0xff]
    %v571 = vld [vmem:[#allocation5 + $0x60] sm:$0xff]
    %v572 = vld [vmem:[#allocation5 + $0x68] sm:$0xff]
    %v573 = vld [vmem:[#allocation5 + $0x70] sm:$0xff]
    %v574 = vld [vmem:[#allocation5 + $0x78] sm:$0xff]
    %575 = vmatprep.subr.mxu0 0.0
    %576 = vmatpush1.msra.mxu0 %v574
    %577 = vmatprep.subr.mxu0 0.0
    %578 = vmatpush1.msra.mxu0 %v573
    %579 = vmatprep.subr.mxu0 0.0
    %580 = vmatpush1.msra.mxu0 %v572
    %581 = vmatprep.subr.mxu0 0.0
    %582 = vmatpush1.msra.mxu0 %v571
    %583 = vmatprep.subr.mxu0 0.0
    %584 = vmatpush1.msra.mxu0 %v570
    %585 = vmatprep.subr.mxu0 0.0
    %586 = vmatpush1.msra.mxu0 %v569
    %587 = vmatprep.subr.mxu0 0.0
    %588 = vmatpush1.msra.mxu0 %v568
    %589 = vmatprep.subr.mxu0 0.0
    %590 = vmatpush1.msra.mxu0 %v567
    %591 = vmatprep.subr.mxu0 0.0
    %592 = vmatpush1.msra.mxu0 %v566
    %593 = vmatprep.subr.mxu0 0.0
    %594 = vmatpush1.msra.mxu0 %v565
    %595 = vmatprep.subr.mxu0 0.0
    %596 = vmatpush1.msra.mxu0 %v564
    %597 = vmatprep.subr.mxu0 0.0
    %598 = vmatpush1.msra.mxu0 %v563
    %599 = vmatprep.subr.mxu0 0.0
    %600 = vmatpush1.msra.mxu0 %v562
    %601 = vmatprep.subr.mxu0 0.0
    %602 = vmatpush1.msra.mxu0 %v561
    %603 = vmatprep.subr.mxu0 0.0
    %604 = vmatpush1.msra.mxu0 %v560
    %605 = vmatprep.subr.mxu0 0.0
    %606 = vmatpush1.msra.mxu0 %v559
    %607 = vmatprep.subr.mxu0 0.0
    %608 = vmatpush2.msra.mxu0 0.0
    %609 = vmatprep.subr.mxu0 0.0
    %610 = vmatpush2.msra.mxu0 0.0
    %611 = vmatprep.subr.mxu0 0.0
    %612 = vmatpush2.msra.mxu0 0.0
    %613 = vmatprep.subr.mxu0 0.0
    %614 = vmatpush2.msra.mxu0 0.0
    %615 = vmatprep.subr.mxu0 0.0
    %616 = vmatpush2.msra.mxu0 0.0
    %617 = vmatprep.subr.mxu0 0.0
    %618 = vmatpush2.msra.mxu0 0.0
    %619 = vmatprep.subr.mxu0 0.0
    %620 = vmatpush2.msra.mxu0 0.0
    %621 = vmatprep.subr.mxu0 0.0
    %622 = vmatpush2.msra.mxu0 0.0
    %623 = vmatprep.subr.mxu0 0.0
    %624 = vmatpush2.msra.mxu0 0.0
    %625 = vmatprep.subr.mxu0 0.0
    %626 = vmatpush2.msra.mxu0 0.0
    %627 = vmatprep.subr.mxu0 0.0
    %628 = vmatpush2.msra.mxu0 0.0
    %629 = vmatprep.subr.mxu0 0.0
    %630 = vmatpush2.msra.mxu0 0.0
    %631 = vmatprep.subr.mxu0 0.0
    %632 = vmatpush2.msra.mxu0 0.0
    %633 = vmatprep.subr.mxu0 0.0
    %634 = vmatpush2.msra.mxu0 0.0
    %635 = vmatprep.subr.mxu0 0.0
    %636 = vmatpush2.msra.mxu0 0.0
    %637 = vmatprep.subr.mxu0 0.0
    %638 = vmatpush2.msra.mxu0 0.0
    %639 = vmatprep.mubr.f32.mxu0 0.0
    %640 = vmatmul.mubr.f32.gmra.mxu0 %v468
    %v641 = vpop.f32.mrf.mxu0
    %v642 = vadd.f32 0.0, %v641
    %v643 = vpop.f32.mrf.mxu0
    %644 = vdwg.mxu0
    %v645 = vadd.f32 %v558, %v642
    %v646 = vld [vmem:[#allocation2 + $0x10] sm:$0xff]
    %v647 = vld [vmem:[#allocation7] sm:$0xff]
    %v648 = vld [vmem:[#allocation7 + $0x8] sm:$0xff]
    %v649 = vld [vmem:[#allocation7 + $0x10] sm:$0xff]
    %v650 = vld [vmem:[#allocation7 + $0x18] sm:$0xff]
    %v651 = vld [vmem:[#allocation7 + $0x20] sm:$0xff]
    %v652 = vld [vmem:[#allocation7 + $0x28] sm:$0xff]
    %v653 = vld [vmem:[#allocation7 + $0x30] sm:$0xff]
    %v654 = vld [vmem:[#allocation7 + $0x38] sm:$0xff]
    %v655 = vld [vmem:[#allocation7 + $0x40] sm:$0xff]
    %v656 = vld [vmem:[#allocation7 + $0x48] sm:$0xff]
    %v657 = vld [vmem:[#allocation7 + $0x50] sm:$0xff]
    %v658 = vld [vmem:[#allocation7 + $0x58] sm:$0xff]
    %v659 = vld [vmem:[#allocation7 + $0x60] sm:$0xff]
    %v660 = vld [vmem:[#allocation7 + $0x68] sm:$0xff]
    %v661 = vld [vmem:[#allocation7 + $0x70] sm:$0xff]
    %v662 = vld [vmem:[#allocation7 + $0x78] sm:$0xff]
    %663 = vmatprep.subr.mxu0 0.0
    %664 = vmatpush1.msra.mxu0 %v662
    %665 = vmatprep.subr.mxu0 0.0
    %666 = vmatpush1.msra.mxu0 %v661
    %667 = vmatprep.subr.mxu0 0.0
    %668 = vmatpush1.msra.mxu0 %v660
    %669 = vmatprep.subr.mxu0 0.0
    %670 = vmatpush1.msra.mxu0 %v659
    %671 = vmatprep.subr.mxu0 0.0
    %672 = vmatpush1.msra.mxu0 %v658
    %673 = vmatprep.subr.mxu0 0.0
    %674 = vmatpush1.msra.mxu0 %v657
    %675 = vmatprep.subr.mxu0 0.0
    %676 = vmatpush1.msra.mxu0 %v656
    %677 = vmatprep.subr.mxu0 0.0
    %678 = vmatpush1.msra.mxu0 %v655
    %679 = vmatprep.subr.mxu0 0.0
    %680 = vmatpush1.msra.mxu0 %v654
    %681 = vmatprep.subr.mxu0 0.0
    %682 = vmatpush1.msra.mxu0 %v653
    %683 = vmatprep.subr.mxu0 0.0
    %684 = vmatpush1.msra.mxu0 %v652
    %685 = vmatprep.subr.mxu0 0.0
    %686 = vmatpush1.msra.mxu0 %v651
    %687 = vmatprep.subr.mxu0 0.0
    %688 = vmatpush1.msra.mxu0 %v650
    %689 = vmatprep.subr.mxu0 0.0
    %690 = vmatpush1.msra.mxu0 %v649
    %691 = vmatprep.subr.mxu0 0.0
    %692 = vmatpush1.msra.mxu0 %v648
    %693 = vmatprep.subr.mxu0 0.0
    %694 = vmatpush1.msra.mxu0 %v647
    %695 = vmatprep.subr.mxu0 0.0
    %696 = vmatpush2.msra.mxu0 0.0
    %697 = vmatprep.subr.mxu0 0.0
    %698 = vmatpush2.msra.mxu0 0.0
    %699 = vmatprep.subr.mxu0 0.0
    %700 = vmatpush2.msra.mxu0 0.0
    %701 = vmatprep.subr.mxu0 0.0
    %702 = vmatpush2.msra.mxu0 0.0
    %703 = vmatprep.subr.mxu0 0.0
    %704 = vmatpush2.msra.mxu0 0.0
    %705 = vmatprep.subr.mxu0 0.0
    %706 = vmatpush2.msra.mxu0 0.0
    %707 = vmatprep.subr.mxu0 0.0
    %708 = vmatpush2.msra.mxu0 0.0
    %709 = vmatprep.subr.mxu0 0.0
    %710 = vmatpush2.msra.mxu0 0.0
    %711 = vmatprep.subr.mxu0 0.0
    %712 = vmatpush2.msra.mxu0 0.0
    %713 = vmatprep.subr.mxu0 0.0
    %714 = vmatpush2.msra.mxu0 0.0
    %715 = vmatprep.subr.mxu0 0.0
    %716 = vmatpush2.msra.mxu0 0.0
    %717 = vmatprep.subr.mxu0 0.0
    %718 = vmatpush2.msra.mxu0 0.0
    %719 = vmatprep.subr.mxu0 0.0
    %720 = vmatpush2.msra.mxu0 0.0
    %721 = vmatprep.subr.mxu0 0.0
    %722 = vmatpush2.msra.mxu0 0.0
    %723 = vmatprep.subr.mxu0 0.0
    %724 = vmatpush2.msra.mxu0 0.0
    %725 = vmatprep.subr.mxu0 0.0
    %726 = vmatpush2.msra.mxu0 0.0
    %727 = vmatprep.mubr.f32.mxu0 0.0
    %728 = vmatmul.mubr.f32.gmra.mxu0 %v468
    %v729 = vpop.f32.mrf.mxu0
    %v730 = vadd.f32 0.0, %v729
    %v731 = vpop.f32.mrf.mxu0
    %732 = vdwg.mxu0
    %v733 = vadd.f32 %v646, %v730
    %v734 = vmul.f32 %v557, 0.5
    %v735 = vtanh.pop %v734
    %v736 = vmul.f32 %v735, 0.5
    %v737 = vadd.f32 %v736, 0.5
    %v738 = vmul.f32 %v645, 0.5
    %v739 = vtanh.pop %v738
    %v740 = vmul.f32 %v739, 0.5
    %v741 = vadd.f32 %v740, 0.5
    %v742 = vtanh.pop %v733
    %v743 = vmul.f32 %v741, %v469
    %v744 = vmul.f32 %v737, %v742
    %v745 = vadd.f32 %v743, %v744
    %v746 = vld [vmem:[#allocation2 + $0x18] sm:$0xff]
    %v747 = vld [vmem:[#allocation8] sm:$0xff]
    %v748 = vld [vmem:[#allocation8 + $0x8] sm:$0xff]
    %v749 = vld [vmem:[#allocation8 + $0x10] sm:$0xff]
    %v750 = vld [vmem:[#allocation8 + $0x18] sm:$0xff]
    %v751 = vld [vmem:[#allocation8 + $0x20] sm:$0xff]
    %v752 = vld [vmem:[#allocation8 + $0x28] sm:$0xff]
    %v753 = vld [vmem:[#allocation8 + $0x30] sm:$0xff]
    %v754 = vld [vmem:[#allocation8 + $0x38] sm:$0xff]
    %v755 = vld [vmem:[#allocation8 + $0x40] sm:$0xff]
    %v756 = vld [vmem:[#allocation8 + $0x48] sm:$0xff]
    %v757 = vld [vmem:[#allocation8 + $0x50] sm:$0xff]
    %v758 = vld [vmem:[#allocation8 + $0x58] sm:$0xff]
    %v759 = vld [vmem:[#allocation8 + $0x60] sm:$0xff]
    %v760 = vld [vmem:[#allocation8 + $0x68] sm:$0xff]
    %v761 = vld [vmem:[#allocation8 + $0x70] sm:$0xff]
    %v762 = vld [vmem:[#allocation8 + $0x78] sm:$0xff]
    %763 = vmatprep.subr.mxu0 0.0
    %764 = vmatpush1.msra.mxu0 %v762
    %765 = vmatprep.subr.mxu0 0.0
    %766 = vmatpush1.msra.mxu0 %v761
    %767 = vmatprep.subr.mxu0 0.0
    %768 = vmatpush1.msra.mxu0 %v760
    %769 = vmatprep.subr.mxu0 0.0
    %770 = vmatpush1.msra.mxu0 %v759
    %771 = vmatprep.subr.mxu0 0.0
    %772 = vmatpush1.msra.mxu0 %v758
    %773 = vmatprep.subr.mxu0 0.0
    %774 = vmatpush1.msra.mxu0 %v757
    %775 = vmatprep.subr.mxu0 0.0
    %776 = vmatpush1.msra.mxu0 %v756
    %777 = vmatprep.subr.mxu0 0.0
    %778 = vmatpush1.msra.mxu0 %v755
    %779 = vmatprep.subr.mxu0 0.0
    %780 = vmatpush1.msra.mxu0 %v754
    %781 = vmatprep.subr.mxu0 0.0
    %782 = vmatpush1.msra.mxu0 %v753
    %783 = vmatprep.subr.mxu0 0.0
    %784 = vmatpush1.msra.mxu0 %v752
    %785 = vmatprep.subr.mxu0 0.0
    %786 = vmatpush1.msra.mxu0 %v751
    %787 = vmatprep.subr.mxu0 0.0
    %788 = vmatpush1.msra.mxu0 %v750
    %789 = vmatprep.subr.mxu0 0.0
    %790 = vmatpush1.msra.mxu0 %v749
    %791 = vmatprep.subr.mxu0 0.0
    %792 = vmatpush1.msra.mxu0 %v748
    %793 = vmatprep.subr.mxu0 0.0
    %794 = vmatpush1.msra.mxu0 %v747
    %795 = vmatprep.subr.mxu0 0.0
    %796 = vmatpush2.msra.mxu0 0.0
    %797 = vmatprep.subr.mxu0 0.0
    %798 = vmatpush2.msra.mxu0 0.0
    %799 = vmatprep.subr.mxu0 0.0
    %800 = vmatpush2.msra.mxu0 0.0
    %801 = vmatprep.subr.mxu0 0.0
    %802 = vmatpush2.msra.mxu0 0.0
    %803 = vmatprep.subr.mxu0 0.0
    %804 = vmatpush2.msra.mxu0 0.0
    %805 = vmatprep.subr.mxu0 0.0
    %806 = vmatpush2.msra.mxu0 0.0
    %807 = vmatprep.subr.mxu0 0.0
    %808 = vmatpush2.msra.mxu0 0.0
    %809 = vmatprep.subr.mxu0 0.0
    %810 = vmatpush2.msra.mxu0 0.0
    %811 = vmatprep.subr.mxu0 0.0
    %812 = vmatpush2.msra.mxu0 0.0
    %813 = vmatprep.subr.mxu0 0.0
    %814 = vmatpush2.msra.mxu0 0.0
    %815 = vmatprep.subr.mxu0 0.0
    %816 = vmatpush2.msra.mxu0 0.0
    %817 = vmatprep.subr.mxu0 0.0
    %818 = vmatpush2.msra.mxu0 0.0
    %819 = vmatprep.subr.mxu0 0.0
    %820 = vmatpush2.msra.mxu0 0.0
    %821 = vmatprep.subr.mxu0 0.0
    %822 = vmatpush2.msra.mxu0 0.0
    %823 = vmatprep.subr.mxu0 0.0
    %824 = vmatpush2.msra.mxu0 0.0
    %825 = vmatprep.subr.mxu0 0.0
    %826 = vmatpush2.msra.mxu0 0.0
    %827 = vmatprep.mubr.f32.mxu0 0.0
    %828 = vmatmul.mubr.f32.gmra.mxu0 %v468
    %v829 = vpop.f32.mrf.mxu0
    %v830 = vadd.f32 0.0, %v829
    %v831 = vpop.f32.mrf.mxu0
    %832 = vdwg.mxu0
    %v833 = vadd.f32 %v746, %v830
    %v834 = vmul.f32 %v833, 0.5
    %v835 = vtanh.pop %v834
    %v836 = vmul.f32 %v835, 0.5
    %v837 = vadd.f32 %v836, 0.5
    %v838 = vtanh.pop %v745
    %v839 = vmul.f32 %v837, %v838
    %v840 = vld [vmem:[#allocation10] sm:$0xff]
    %v841 = vld [vmem:[#allocation10 + $0x8] sm:$0xff]
    %v842 = vld [vmem:[#allocation10 + $0x10] sm:$0xff]
    %v843 = vld [vmem:[#allocation10 + $0x18] sm:$0xff]
    %v844 = vld [vmem:[#allocation10 + $0x20] sm:$0xff]
    %v845 = vld [vmem:[#allocation10 + $0x28] sm:$0xff]
    %v846 = vld [vmem:[#allocation10 + $0x30] sm:$0xff]
    %v847 = vld [vmem:[#allocation10 + $0x38] sm:$0xff]
    %v848 = vld [vmem:[#allocation10 + $0x40] sm:$0xff]
    %v849 = vld [vmem:[#allocation10 + $0x48] sm:$0xff]
    %v850 = vld [vmem:[#allocation10 + $0x50] sm:$0xff]
    %v851 = vld [vmem:[#allocation10 + $0x58] sm:$0xff]
    %v852 = vld [vmem:[#allocation10 + $0x60] sm:$0xff]
    %v853 = vld [vmem:[#allocation10 + $0x68] sm:$0xff]
    %v854 = vld [vmem:[#allocation10 + $0x70] sm:$0xff]
    %v855 = vld [vmem:[#allocation10 + $0x78] sm:$0xff]
    %v856 = vld [vmem:[%s10] sm:$0x1]
    %v858 = vlaneseq
    %v859 = vshrl.u32 %v858, 7
    %v860 = vsub.s32 0, %v859
    %v861 = vrot.slane %v856, %v860
    %863 = vmatprep.subr.mxu0 0.0
    %864 = vmatpush1.msra.mxu0 %v855
    %865 = vmatprep.subr.mxu0 0.0
    %866 = vmatpush1.msra.mxu0 %v854
    %867 = vmatprep.subr.mxu0 0.0
    %868 = vmatpush1.msra.mxu0 %v853
    %869 = vmatprep.subr.mxu0 0.0
    %870 = vmatpush1.msra.mxu0 %v852
    %871 = vmatprep.subr.mxu0 0.0
    %872 = vmatpush1.msra.mxu0 %v851
    %873 = vmatprep.subr.mxu0 0.0
    %874 = vmatpush1.msra.mxu0 %v850
    %875 = vmatprep.subr.mxu0 0.0
    %876 = vmatpush1.msra.mxu0 %v849
    %877 = vmatprep.subr.mxu0 0.0
    %878 = vmatpush1.msra.mxu0 %v848
    %879 = vmatprep.subr.mxu0 0.0
    %880 = vmatpush1.msra.mxu0 %v847
    %881 = vmatprep.subr.mxu0 0.0
    %882 = vmatpush1.msra.mxu0 %v846
    %883 = vmatprep.subr.mxu0 0.0
    %884 = vmatpush1.msra.mxu0 %v845
    %885 = vmatprep.subr.mxu0 0.0
    %886 = vmatpush1.msra.mxu0 %v844
    %887 = vmatprep.subr.mxu0 0.0
    %888 = vmatpush1.msra.mxu0 %v843
    %889 = vmatprep.subr.mxu0 0.0
    %890 = vmatpush1.msra.mxu0 %v842
    %891 = vmatprep.subr.mxu0 0.0
    %892 = vmatpush1.msra.mxu0 %v841
    %893 = vmatprep.subr.mxu0 0.0
    %894 = vmatpush1.msra.mxu0 %v840
    %895 = vmatprep.subr.mxu0 0.0
    %896 = vmatpush2.msra.mxu0 0.0
    %897 = vmatprep.subr.mxu0 0.0
    %898 = vmatpush2.msra.mxu0 0.0
    %899 = vmatprep.subr.mxu0 0.0
    %900 = vmatpush2.msra.mxu0 0.0
    %901 = vmatprep.subr.mxu0 0.0
    %902 = vmatpush2.msra.mxu0 0.0
    %903 = vmatprep.subr.mxu0 0.0
    %904 = vmatpush2.msra.mxu0 0.0
    %905 = vmatprep.subr.mxu0 0.0
    %906 = vmatpush2.msra.mxu0 0.0
    %907 = vmatprep.subr.mxu0 0.0
    %908 = vmatpush2.msra.mxu0 0.0
    %909 = vmatprep.subr.mxu0 0.0
    %910 = vmatpush2.msra.mxu0 0.0
    %911 = vmatprep.subr.mxu0 0.0
    %912 = vmatpush2.msra.mxu0 0.0
    %913 = vmatprep.subr.mxu0 0.0
    %914 = vmatpush2.msra.mxu0 0.0
    %915 = vmatprep.subr.mxu0 0.0
    %916 = vmatpush2.msra.mxu0 0.0
    %917 = vmatprep.subr.mxu0 0.0
    %918 = vmatpush2.msra.mxu0 0.0
    %919 = vmatprep.subr.mxu0 0.0
    %920 = vmatpush2.msra.mxu0 0.0
    %921 = vmatprep.subr.mxu0 0.0
    %922 = vmatpush2.msra.mxu0 0.0
    %923 = vmatprep.subr.mxu0 0.0
    %924 = vmatpush2.msra.mxu0 0.0
    %925 = vmatprep.subr.mxu0 0.0
    %926 = vmatpush2.msra.mxu0 0.0
    %927 = vmatprep.mubr.f32.mxu0 0.0
    %928 = vmatmul.mubr.f32.gmra.mxu0 %v839
    %v929 = vpop.f32.mrf.mxu0
    %v930 = vadd.f32 %v861, %v929
    %v931 = vpop.f32.mrf.mxu0
    %932 = vdwg.mxu0
    %v933 = vtanh.pop %v930
    %v934 = vld [vmem:[#allocation11] sm:$0xff]
    %v935 = vld [vmem:[#allocation11 + $0x8] sm:$0xff]
    %v936 = vld [vmem:[#allocation11 + $0x10] sm:$0xff]
    %v937 = vld [vmem:[#allocation11 + $0x18] sm:$0xff]
    %v938 = vld [vmem:[#allocation11 + $0x20] sm:$0xff]
    %v939 = vld [vmem:[#allocation11 + $0x28] sm:$0xff]
    %v940 = vld [vmem:[#allocation11 + $0x30] sm:$0xff]
    %v941 = vld [vmem:[#allocation11 + $0x38] sm:$0xff]
    %v942 = vld [vmem:[#allocation11 + $0x40] sm:$0xff]
    %v943 = vld [vmem:[#allocation11 + $0x48] sm:$0xff]
    %v944 = vld [vmem:[#allocation11 + $0x50] sm:$0xff]
    %v945 = vld [vmem:[#allocation11 + $0x58] sm:$0xff]
    %v946 = vld [vmem:[#allocation11 + $0x60] sm:$0xff]
    %v947 = vld [vmem:[#allocation11 + $0x68] sm:$0xff]
    %v948 = vld [vmem:[#allocation11 + $0x70] sm:$0xff]
    %v949 = vld [vmem:[#allocation11 + $0x78] sm:$0xff]
    %v950 = vld [vmem:[%s12] sm:$0x1]
    %v952 = vlaneseq
    %v953 = vshrl.u32 %v952, 7
    %v954 = vsub.s32 0, %v953
    %v955 = vrot.slane %v950, %v954
    %957 = vmatprep.subr.mxu0 0.0
    %958 = vmatpush1.msra.mxu0 %v949
    %959 = vmatprep.subr.mxu0 0.0
    %960 = vmatpush1.msra.mxu0 %v948
    %961 = vmatprep.subr.mxu0 0.0
    %962 = vmatpush1.msra.mxu0 %v947
    %963 = vmatprep.subr.mxu0 0.0
    %964 = vmatpush1.msra.mxu0 %v946
    %965 = vmatprep.subr.mxu0 0.0
    %966 = vmatpush1.msra.mxu0 %v945
    %967 = vmatprep.subr.mxu0 0.0
    %968 = vmatpush1.msra.mxu0 %v944
    %969 = vmatprep.subr.mxu0 0.0
    %970 = vmatpush1.msra.mxu0 %v943
    %971 = vmatprep.subr.mxu0 0.0
    %972 = vmatpush1.msra.mxu0 %v942
    %973 = vmatprep.subr.mxu0 0.0
    %974 = vmatpush1.msra.mxu0 %v941
    %975 = vmatprep.subr.mxu0 0.0
    %976 = vmatpush1.msra.mxu0 %v940
    %977 = vmatprep.subr.mxu0 0.0
    %978 = vmatpush1.msra.mxu0 %v939
    %979 = vmatprep.subr.mxu0 0.0
    %980 = vmatpush1.msra.mxu0 %v938
    %981 = vmatprep.subr.mxu0 0.0
    %982 = vmatpush1.msra.mxu0 %v937
    %983 = vmatprep.subr.mxu0 0.0
    %984 = vmatpush1.msra.mxu0 %v936
    %985 = vmatprep.subr.mxu0 0.0
    %986 = vmatpush1.msra.mxu0 %v935
    %987 = vmatprep.subr.mxu0 0.0
    %988 = vmatpush1.msra.mxu0 %v934
    %989 = vmatprep.subr.mxu0 0.0
    %990 = vmatpush2.msra.mxu0 0.0
    %991 = vmatprep.subr.mxu0 0.0
    %992 = vmatpush2.msra.mxu0 0.0
    %993 = vmatprep.subr.mxu0 0.0
    %994 = vmatpush2.msra.mxu0 0.0
    %995 = vmatprep.subr.mxu0 0.0
    %996 = vmatpush2.msra.mxu0 0.0
    %997 = vmatprep.subr.mxu0 0.0
    %998 = vmatpush2.msra.mxu0 0.0
    %999 = vmatprep.subr.mxu0 0.0
    %1000 = vmatpush2.msra.mxu0 0.0
    %1001 = vmatprep.subr.mxu0 0.0
    %1002 = vmatpush2.msra.mxu0 0.0
    %1003 = vmatprep.subr.mxu0 0.0
    %1004 = vmatpush2.msra.mxu0 0.0
    %1005 = vmatprep.subr.mxu0 0.0
    %1006 = vmatpush2.msra.mxu0 0.0
    %1007 = vmatprep.subr.mxu0 0.0
    %1008 = vmatpush2.msra.mxu0 0.0
    %1009 = vmatprep.subr.mxu0 0.0
    %1010 = vmatpush2.msra.mxu0 0.0
    %1011 = vmatprep.subr.mxu0 0.0
    %1012 = vmatpush2.msra.mxu0 0.0
    %1013 = vmatprep.subr.mxu0 0.0
    %1014 = vmatpush2.msra.mxu0 0.0
    %1015 = vmatprep.subr.mxu0 0.0
    %1016 = vmatpush2.msra.mxu0 0.0
    %1017 = vmatprep.subr.mxu0 0.0
    %1018 = vmatpush2.msra.mxu0 0.0
    %1019 = vmatprep.subr.mxu0 0.0
    %1020 = vmatpush2.msra.mxu0 0.0
    %1021 = vmatprep.mubr.f32.mxu0 0.0
    %1022 = vmatmul.mubr.f32.gmra.mxu0 %v933
    %v1023 = vpop.f32.mrf.mxu0
    %v1024 = vadd.f32 %v955, %v1023
    %v1025 = vpop.f32.mrf.mxu0
    %1026 = vdwg.mxu0
    %1027 = vst [vmem:[%s13] sm:$0xff] %v1024
    %v1028 = vld [vmem:[#allocation2 + $0x20] sm:$0xff]
    %v1029 = vld [vmem:[%s5] sm:$0xff]
    %v1030 = vld [vmem:[%s5 + $0x8] sm:$0xff]
    %v1031 = vld [vmem:[%s5 + $0x10] sm:$0xff]
    %v1032 = vld [vmem:[%s5 + $0x18] sm:$0xff]
    %v1033 = vld [vmem:[%s5 + $0x20] sm:$0xff]
    %v1034 = vld [vmem:[%s5 + $0x28] sm:$0xff]
    %v1035 = vld [vmem:[%s5 + $0x30] sm:$0xff]
    %v1036 = vld [vmem:[%s5 + $0x38] sm:$0xff]
    %v1037 = vld [vmem:[%s5 + $0x40] sm:$0xff]
    %v1038 = vld [vmem:[%s5 + $0x48] sm:$0xff]
    %v1039 = vld [vmem:[%s5 + $0x50] sm:$0xff]
    %v1040 = vld [vmem:[%s5 + $0x58] sm:$0xff]
    %v1041 = vld [vmem:[%s5 + $0x60] sm:$0xff]
    %v1042 = vld [vmem:[%s5 + $0x68] sm:$0xff]
    %v1043 = vld [vmem:[%s5 + $0x70] sm:$0xff]
    %v1044 = vld [vmem:[%s5 + $0x78] sm:$0xff]
    %1045 = vmatprep.subr.mxu0 0.0
    %1046 = vmatpush1.msra.mxu0 %v1044
    %1047 = vmatprep.subr.mxu0 0.0
    %1048 = vmatpush1.msra.mxu0 %v1043
    %1049 = vmatprep.subr.mxu0 0.0
    %1050 = vmatpush1.msra.mxu0 %v1042
    %1051 = vmatprep.subr.mxu0 0.0
    %1052 = vmatpush1.msra.mxu0 %v1041
    %1053 = vmatprep.subr.mxu0 0.0
    %1054 = vmatpush1.msra.mxu0 %v1040
    %1055 = vmatprep.subr.mxu0 0.0
    %1056 = vmatpush1.msra.mxu0 %v1039
    %1057 = vmatprep.subr.mxu0 0.0
    %1058 = vmatpush1.msra.mxu0 %v1038
    %1059 = vmatprep.subr.mxu0 0.0
    %1060 = vmatpush1.msra.mxu0 %v1037
    %1061 = vmatprep.subr.mxu0 0.0
    %1062 = vmatpush1.msra.mxu0 %v1036
    %1063 = vmatprep.subr.mxu0 0.0
    %1064 = vmatpush1.msra.mxu0 %v1035
    %1065 = vmatprep.subr.mxu0 0.0
    %1066 = vmatpush1.msra.mxu0 %v1034
    %1067 = vmatprep.subr.mxu0 0.0
    %1068 = vmatpush1.msra.mxu0 %v1033
    %1069 = vmatprep.subr.mxu0 0.0
    %1070 = vmatpush1.msra.mxu0 %v1032
    %1071 = vmatprep.subr.mxu0 0.0
    %1072 = vmatpush1.msra.mxu0 %v1031
    %1073 = vmatprep.subr.mxu0 0.0
    %1074 = vmatpush1.msra.mxu0 %v1030
    %1075 = vmatprep.subr.mxu0 0.0
    %1076 = vmatpush1.msra.mxu0 %v1029
    %1077 = vmatprep.subr.mxu0 0.0
    %1078 = vmatpush2.msra.mxu0 0.0
    %1079 = vmatprep.subr.mxu0 0.0
    %1080 = vmatpush2.msra.mxu0 0.0
    %1081 = vmatprep.subr.mxu0 0.0
    %1082 = vmatpush2.msra.mxu0 0.0
    %1083 = vmatprep.subr.mxu0 0.0
    %1084 = vmatpush2.msra.mxu0 0.0
    %1085 = vmatprep.subr.mxu0 0.0
    %1086 = vmatpush2.msra.mxu0 0.0
    %1087 = vmatprep.subr.mxu0 0.0
    %1088 = vmatpush2.msra.mxu0 0.0
    %1089 = vmatprep.subr.mxu0 0.0
    %1090 = vmatpush2.msra.mxu0 0.0
    %1091 = vmatprep.subr.mxu0 0.0
    %1092 = vmatpush2.msra.mxu0 0.0
    %1093 = vmatprep.subr.mxu0 0.0
    %1094 = vmatpush2.msra.mxu0 0.0
    %1095 = vmatprep.subr.mxu0 0.0
    %1096 = vmatpush2.msra.mxu0 0.0
    %1097 = vmatprep.subr.mxu0 0.0
    %1098 = vmatpush2.msra.mxu0 0.0
    %1099 = vmatprep.subr.mxu0 0.0
    %1100 = vmatpush2.msra.mxu0 0.0
    %1101 = vmatprep.subr.mxu0 0.0
    %1102 = vmatpush2.msra.mxu0 0.0
    %1103 = vmatprep.subr.mxu0 0.0
    %1104 = vmatpush2.msra.mxu0 0.0
    %1105 = vmatprep.subr.mxu0 0.0
    %1106 = vmatpush2.msra.mxu0 0.0
    %1107 = vmatprep.subr.mxu0 0.0
    %1108 = vmatpush2.msra.mxu0 0.0
    %1109 = vmatprep.mubr.f32.mxu0 0.0
    %1110 = vmatmul.mubr.f32.gmra.mxu0 %v839
    %v1111 = vpop.f32.mrf.mxu0
    %v1112 = vadd.f32 0.0, %v1111
    %v1113 = vpop.f32.mrf.mxu0
    %1114 = vdwg.mxu0
    %v1115 = vadd.f32 %v1028, %v1112
    %v1116 = vld [vmem:[#allocation2 + $0x28] sm:$0xff]
    %v1117 = vld [vmem:[#allocation5] sm:$0xff]
    %v1118 = vld [vmem:[#allocation5 + $0x8] sm:$0xff]
    %v1119 = vld [vmem:[#allocation5 + $0x10] sm:$0xff]
    %v1120 = vld [vmem:[#allocation5 + $0x18] sm:$0xff]
    %v1121 = vld [vmem:[#allocation5 + $0x20] sm:$0xff]
    %v1122 = vld [vmem:[#allocation5 + $0x28] sm:$0xff]
    %v1123 = vld [vmem:[#allocation5 + $0x30] sm:$0xff]
    %v1124 = vld [vmem:[#allocation5 + $0x38] sm:$0xff]
    %v1125 = vld [vmem:[#allocation5 + $0x40] sm:$0xff]
    %v1126 = vld [vmem:[#allocation5 + $0x48] sm:$0xff]
    %v1127 = vld [vmem:[#allocation5 + $0x50] sm:$0xff]
    %v1128 = vld [vmem:[#allocation5 + $0x58] sm:$0xff]
    %v1129 = vld [vmem:[#allocation5 + $0x60] sm:$0xff]
    %v1130 = vld [vmem:[#allocation5 + $0x68] sm:$0xff]
    %v1131 = vld [vmem:[#allocation5 + $0x70] sm:$0xff]
    %v1132 = vld [vmem:[#allocation5 + $0x78] sm:$0xff]
    %1133 = vmatprep.subr.mxu0 0.0
    %1134 = vmatpush1.msra.mxu0 %v1132
    %1135 = vmatprep.subr.mxu0 0.0
    %1136 = vmatpush1.msra.mxu0 %v1131
    %1137 = vmatprep.subr.mxu0 0.0
    %1138 = vmatpush1.msra.mxu0 %v1130
    %1139 = vmatprep.subr.mxu0 0.0
    %1140 = vmatpush1.msra.mxu0 %v1129
    %1141 = vmatprep.subr.mxu0 0.0
    %1142 = vmatpush1.msra.mxu0 %v1128
    %1143 = vmatprep.subr.mxu0 0.0
    %1144 = vmatpush1.msra.mxu0 %v1127
    %1145 = vmatprep.subr.mxu0 0.0
    %1146 = vmatpush1.msra.mxu0 %v1126
    %1147 = vmatprep.subr.mxu0 0.0
    %1148 = vmatpush1.msra.mxu0 %v1125
    %1149 = vmatprep.subr.mxu0 0.0
    %1150 = vmatpush1.msra.mxu0 %v1124
    %1151 = vmatprep.subr.mxu0 0.0
    %1152 = vmatpush1.msra.mxu0 %v1123
    %1153 = vmatprep.subr.mxu0 0.0
    %1154 = vmatpush1.msra.mxu0 %v1122
    %1155 = vmatprep.subr.mxu0 0.0
    %1156 = vmatpush1.msra.mxu0 %v1121
    %1157 = vmatprep.subr.mxu0 0.0
    %1158 = vmatpush1.msra.mxu0 %v1120
    %1159 = vmatprep.subr.mxu0 0.0
    %1160 = vmatpush1.msra.mxu0 %v1119
    %1161 = vmatprep.subr.mxu0 0.0
    %1162 = vmatpush1.msra.mxu0 %v1118
    %1163 = vmatprep.subr.mxu0 0.0
    %1164 = vmatpush1.msra.mxu0 %v1117
    %1165 = vmatprep.subr.mxu0 0.0
    %1166 = vmatpush2.msra.mxu0 0.0
    %1167 = vmatprep.subr.mxu0 0.0
    %1168 = vmatpush2.msra.mxu0 0.0
    %1169 = vmatprep.subr.mxu0 0.0
    %1170 = vmatpush2.msra.mxu0 0.0
    %1171 = vmatprep.subr.mxu0 0.0
    %1172 = vmatpush2.msra.mxu0 0.0
    %1173 = vmatprep.subr.mxu0 0.0
    %1174 = vmatpush2.msra.mxu0 0.0
    %1175 = vmatprep.subr.mxu0 0.0
    %1176 = vmatpush2.msra.mxu0 0.0
    %1177 = vmatprep.subr.mxu0 0.0
    %1178 = vmatpush2.msra.mxu0 0.0
    %1179 = vmatprep.subr.mxu0 0.0
    %1180 = vmatpush2.msra.mxu0 0.0
    %1181 = vmatprep.subr.mxu0 0.0
    %1182 = vmatpush2.msra.mxu0 0.0
    %1183 = vmatprep.subr.mxu0 0.0
    %1184 = vmatpush2.msra.mxu0 0.0
    %1185 = vmatprep.subr.mxu0 0.0
    %1186 = vmatpush2.msra.mxu0 0.0
    %1187 = vmatprep.subr.mxu0 0.0
    %1188 = vmatpush2.msra.mxu0 0.0
    %1189 = vmatprep.subr.mxu0 0.0
    %1190 = vmatpush2.msra.mxu0 0.0
    %1191 = vmatprep.subr.mxu0 0.0
    %1192 = vmatpush2.msra.mxu0 0.0
    %1193 = vmatprep.subr.mxu0 0.0
    %1194 = vmatpush2.msra.mxu0 0.0
    %1195 = vmatprep.subr.mxu0 0.0
    %1196 = vmatpush2.msra.mxu0 0.0
    %1197 = vmatprep.mubr.f32.mxu0 0.0
    %1198 = vmatmul.mubr.f32.gmra.mxu0 %v839
    %v1199 = vpop.f32.mrf.mxu0
    %v1200 = vadd.f32 0.0, %v1199
    %v1201 = vpop.f32.mrf.mxu0
    %1202 = vdwg.mxu0
    %v1203 = vadd.f32 %v1116, %v1200
    %v1204 = vld [vmem:[#allocation2 + $0x30] sm:$0xff]
    %v1205 = vld [vmem:[#allocation7] sm:$0xff]
    %v1206 = vld [vmem:[#allocation7 + $0x8] sm:$0xff]
    %v1207 = vld [vmem:[#allocation7 + $0x10] sm:$0xff]
    %v1208 = vld [vmem:[#allocation7 + $0x18] sm:$0xff]
    %v1209 = vld [vmem:[#allocation7 + $0x20] sm:$0xff]
    %v1210 = vld [vmem:[#allocation7 + $0x28] sm:$0xff]
    %v1211 = vld [vmem:[#allocation7 + $0x30] sm:$0xff]
    %v1212 = vld [vmem:[#allocation7 + $0x38] sm:$0xff]
    %v1213 = vld [vmem:[#allocation7 + $0x40] sm:$0xff]
    %v1214 = vld [vmem:[#allocation7 + $0x48] sm:$0xff]
    %v1215 = vld [vmem:[#allocation7 + $0x50] sm:$0xff]
    %v1216 = vld [vmem:[#allocation7 + $0x58] sm:$0xff]
    %v1217 = vld [vmem:[#allocation7 + $0x60] sm:$0xff]
    %v1218 = vld [vmem:[#allocation7 + $0x68] sm:$0xff]
    %v1219 = vld [vmem:[#allocation7 + $0x70] sm:$0xff]
    %v1220 = vld [vmem:[#allocation7 + $0x78] sm:$0xff]
    %1221 = vmatprep.subr.mxu0 0.0
    %1222 = vmatpush1.msra.mxu0 %v1220
    %1223 = vmatprep.subr.mxu0 0.0
    %1224 = vmatpush1.msra.mxu0 %v1219
    %1225 = vmatprep.subr.mxu0 0.0
    %1226 = vmatpush1.msra.mxu0 %v1218
    %1227 = vmatprep.subr.mxu0 0.0
    %1228 = vmatpush1.msra.mxu0 %v1217
    %1229 = vmatprep.subr.mxu0 0.0
    %1230 = vmatpush1.msra.mxu0 %v1216
    %1231 = vmatprep.subr.mxu0 0.0
    %1232 = vmatpush1.msra.mxu0 %v1215
    %1233 = vmatprep.subr.mxu0 0.0
    %1234 = vmatpush1.msra.mxu0 %v1214
    %1235 = vmatprep.subr.mxu0 0.0
    %1236 = vmatpush1.msra.mxu0 %v1213
    %1237 = vmatprep.subr.mxu0 0.0
    %1238 = vmatpush1.msra.mxu0 %v1212
    %1239 = vmatprep.subr.mxu0 0.0
    %1240 = vmatpush1.msra.mxu0 %v1211
    %1241 = vmatprep.subr.mxu0 0.0
    %1242 = vmatpush1.msra.mxu0 %v1210
    %1243 = vmatprep.subr.mxu0 0.0
    %1244 = vmatpush1.msra.mxu0 %v1209
    %1245 = vmatprep.subr.mxu0 0.0
    %1246 = vmatpush1.msra.mxu0 %v1208
    %1247 = vmatprep.subr.mxu0 0.0
    %1248 = vmatpush1.msra.mxu0 %v1207
    %1249 = vmatprep.subr.mxu0 0.0
    %1250 = vmatpush1.msra.mxu0 %v1206
    %1251 = vmatprep.subr.mxu0 0.0
    %1252 = vmatpush1.msra.mxu0 %v1205
    %1253 = vmatprep.subr.mxu0 0.0
    %1254 = vmatpush2.msra.mxu0 0.0
    %1255 = vmatprep.subr.mxu0 0.0
    %1256 = vmatpush2.msra.mxu0 0.0
    %1257 = vmatprep.subr.mxu0 0.0
    %1258 = vmatpush2.msra.mxu0 0.0
    %1259 = vmatprep.subr.mxu0 0.0
    %1260 = vmatpush2.msra.mxu0 0.0
    %1261 = vmatprep.subr.mxu0 0.0
    %1262 = vmatpush2.msra.mxu0 0.0
    %1263 = vmatprep.subr.mxu0 0.0
    %1264 = vmatpush2.msra.mxu0 0.0
    %1265 = vmatprep.subr.mxu0 0.0
    %1266 = vmatpush2.msra.mxu0 0.0
    %1267 = vmatprep.subr.mxu0 0.0
    %1268 = vmatpush2.msra.mxu0 0.0
    %1269 = vmatprep.subr.mxu0 0.0
    %1270 = vmatpush2.msra.mxu0 0.0
    %1271 = vmatprep.subr.mxu0 0.0
    %1272 = vmatpush2.msra.mxu0 0.0
    %1273 = vmatprep.subr.mxu0 0.0
    %1274 = vmatpush2.msra.mxu0 0.0
    %1275 = vmatprep.subr.mxu0 0.0
    %1276 = vmatpush2.msra.mxu0 0.0
    %1277 = vmatprep.subr.mxu0 0.0
    %1278 = vmatpush2.msra.mxu0 0.0
    %1279 = vmatprep.subr.mxu0 0.0
    %1280 = vmatpush2.msra.mxu0 0.0
    %1281 = vmatprep.subr.mxu0 0.0
    %1282 = vmatpush2.msra.mxu0 0.0
    %1283 = vmatprep.subr.mxu0 0.0
    %1284 = vmatpush2.msra.mxu0 0.0
    %1285 = vmatprep.mubr.f32.mxu0 0.0
    %1286 = vmatmul.mubr.f32.gmra.mxu0 %v839
    %v1287 = vpop.f32.mrf.mxu0
    %v1288 = vadd.f32 0.0, %v1287
    %v1289 = vpop.f32.mrf.mxu0
    %1290 = vdwg.mxu0
    %v1291 = vadd.f32 %v1204, %v1288
    %v1292 = vmul.f32 %v1115, 0.5
    %v1293 = vtanh.pop %v1292
    %v1294 = vmul.f32 %v1293, 0.5
    %v1295 = vadd.f32 %v1294, 0.5
    %v1296 = vmul.f32 %v1203, 0.5
    %v1297 = vtanh.pop %v1296
    %v1298 = vmul.f32 %v1297, 0.5
    %v1299 = vadd.f32 %v1298, 0.5
    %v1300 = vtanh.pop %v1291
    %v1301 = vmul.f32 %v1299, %v745
    %v1302 = vmul.f32 %v1295, %v1300
    %v1303 = vadd.f32 %v1301, %v1302
    %v1304 = vld [vmem:[#allocation2 + $0x38] sm:$0xff]
    %v1305 = vld [vmem:[#allocation8] sm:$0xff]
    %v1306 = vld [vmem:[#allocation8 + $0x8] sm:$0xff]
    %v1307 = vld [vmem:[#allocation8 + $0x10] sm:$0xff]
    %v1308 = vld [vmem:[#allocation8 + $0x18] sm:$0xff]
    %v1309 = vld [vmem:[#allocation8 + $0x20] sm:$0xff]
    %v1310 = vld [vmem:[#allocation8 + $0x28] sm:$0xff]
    %v1311 = vld [vmem:[#allocation8 + $0x30] sm:$0xff]
    %v1312 = vld [vmem:[#allocation8 + $0x38] sm:$0xff]
    %v1313 = vld [vmem:[#allocation8 + $0x40] sm:$0xff]
    %v1314 = vld [vmem:[#allocation8 + $0x48] sm:$0xff]
    %v1315 = vld [vmem:[#allocation8 + $0x50] sm:$0xff]
    %v1316 = vld [vmem:[#allocation8 + $0x58] sm:$0xff]
    %v1317 = vld [vmem:[#allocation8 + $0x60] sm:$0xff]
    %v1318 = vld [vmem:[#allocation8 + $0x68] sm:$0xff]
    %v1319 = vld [vmem:[#allocation8 + $0x70] sm:$0xff]
    %v1320 = vld [vmem:[#allocation8 + $0x78] sm:$0xff]
    %1321 = vmatprep.subr.mxu0 0.0
    %1322 = vmatpush1.msra.mxu0 %v1320
    %1323 = vmatprep.subr.mxu0 0.0
    %1324 = vmatpush1.msra.mxu0 %v1319
    %1325 = vmatprep.subr.mxu0 0.0
    %1326 = vmatpush1.msra.mxu0 %v1318
    %1327 = vmatprep.subr.mxu0 0.0
    %1328 = vmatpush1.msra.mxu0 %v1317
    %1329 = vmatprep.subr.mxu0 0.0
    %1330 = vmatpush1.msra.mxu0 %v1316
    %1331 = vmatprep.subr.mxu0 0.0
    %1332 = vmatpush1.msra.mxu0 %v1315
    %1333 = vmatprep.subr.mxu0 0.0
    %1334 = vmatpush1.msra.mxu0 %v1314
    %1335 = vmatprep.subr.mxu0 0.0
    %1336 = vmatpush1.msra.mxu0 %v1313
    %1337 = vmatprep.subr.mxu0 0.0
    %1338 = vmatpush1.msra.mxu0 %v1312
    %1339 = vmatprep.subr.mxu0 0.0
    %1340 = vmatpush1.msra.mxu0 %v1311
    %1341 = vmatprep.subr.mxu0 0.0
    %1342 = vmatpush1.msra.mxu0 %v1310
    %1343 = vmatprep.subr.mxu0 0.0
    %1344 = vmatpush1.msra.mxu0 %v1309
    %1345 = vmatprep.subr.mxu0 0.0
    %1346 = vmatpush1.msra.mxu0 %v1308
    %1347 = vmatprep.subr.mxu0 0.0
    %1348 = vmatpush1.msra.mxu0 %v1307
    %1349 = vmatprep.subr.mxu0 0.0
    %1350 = vmatpush1.msra.mxu0 %v1306
    %1351 = vmatprep.subr.mxu0 0.0
    %1352 = vmatpush1.msra.mxu0 %v1305
    %1353 = vmatprep.subr.mxu0 0.0
    %1354 = vmatpush2.msra.mxu0 0.0
    %1355 = vmatprep.subr.mxu0 0.0
    %1356 = vmatpush2.msra.mxu0 0.0
    %1357 = vmatprep.subr.mxu0 0.0
    %1358 = vmatpush2.msra.mxu0 0.0
    %1359 = vmatprep.subr.mxu0 0.0
    %1360 = vmatpush2.msra.mxu0 0.0
    %1361 = vmatprep.subr.mxu0 0.0
    %1362 = vmatpush2.msra.mxu0 0.0
    %1363 = vmatprep.subr.mxu0 0.0
    %1364 = vmatpush2.msra.mxu0 0.0
    %1365 = vmatprep.subr.mxu0 0.0
    %1366 = vmatpush2.msra.mxu0 0.0
    %1367 = vmatprep.subr.mxu0 0.0
    %1368 = vmatpush2.msra.mxu0 0.0
    %1369 = vmatprep.subr.mxu0 0.0
    %1370 = vmatpush2.msra.mxu0 0.0
    %1371 = vmatprep.subr.mxu0 0.0
    %1372 = vmatpush2.msra.mxu0 0.0
    %1373 = vmatprep.subr.mxu0 0.0
    %1374 = vmatpush2.msra.mxu0 0.0
    %1375 = vmatprep.subr.mxu0 0.0
    %1376 = vmatpush2.msra.mxu0 0.0
    %1377 = vmatprep.subr.mxu0 0.0
    %1378 = vmatpush2.msra.mxu0 0.0
    %1379 = vmatprep.subr.mxu0 0.0
    %1380 = vmatpush2.msra.mxu0 0.0
    %1381 = vmatprep.subr.mxu0 0.0
    %1382 = vmatpush2.msra.mxu0 0.0
    %1383 = vmatprep.subr.mxu0 0.0
    %1384 = vmatpush2.msra.mxu0 0.0
    %1385 = vmatprep.mubr.f32.mxu0 0.0
    %1386 = vmatmul.mubr.f32.gmra.mxu0 %v839
    %v1387 = vpop.f32.mrf.mxu0
    %v1388 = vadd.f32 0.0, %v1387
    %v1389 = vpop.f32.mrf.mxu0
    %1390 = vdwg.mxu0
    %v1391 = vadd.f32 %v1304, %v1388
    %v1392 = vmul.f32 %v1391, 0.5
    %v1393 = vtanh.pop %v1392
    %v1394 = vmul.f32 %v1393, 0.5
    %v1395 = vadd.f32 %v1394, 0.5
    %v1396 = vtanh.pop %v1303
    %v1397 = vmul.f32 %v1395, %v1396
    %v1398 = vld [vmem:[#allocation10] sm:$0xff]
    %v1399 = vld [vmem:[#allocation10 + $0x8] sm:$0xff]
    %v1400 = vld [vmem:[#allocation10 + $0x10] sm:$0xff]
    %v1401 = vld [vmem:[#allocation10 + $0x18] sm:$0xff]
    %v1402 = vld [vmem:[#allocation10 + $0x20] sm:$0xff]
    %v1403 = vld [vmem:[#allocation10 + $0x28] sm:$0xff]
    %v1404 = vld [vmem:[#allocation10 + $0x30] sm:$0xff]
    %v1405 = vld [vmem:[#allocation10 + $0x38] sm:$0xff]
    %v1406 = vld [vmem:[#allocation10 + $0x40] sm:$0xff]
    %v1407 = vld [vmem:[#allocation10 + $0x48] sm:$0xff]
    %v1408 = vld [vmem:[#allocation10 + $0x50] sm:$0xff]
    %v1409 = vld [vmem:[#allocation10 + $0x58] sm:$0xff]
    %v1410 = vld [vmem:[#allocation10 + $0x60] sm:$0xff]
    %v1411 = vld [vmem:[#allocation10 + $0x68] sm:$0xff]
    %v1412 = vld [vmem:[#allocation10 + $0x70] sm:$0xff]
    %v1413 = vld [vmem:[#allocation10 + $0x78] sm:$0xff]
    %v1414 = vld [vmem:[%s10] sm:$0x1]
    %v1416 = vlaneseq
    %v1417 = vshrl.u32 %v1416, 7
    %v1418 = vsub.s32 0, %v1417
    %v1419 = vrot.slane %v1414, %v1418
    %1421 = vmatprep.subr.mxu0 0.0
    %1422 = vmatpush1.msra.mxu0 %v1413
    %1423 = vmatprep.subr.mxu0 0.0
    %1424 = vmatpush1.msra.mxu0 %v1412
    %1425 = vmatprep.subr.mxu0 0.0
    %1426 = vmatpush1.msra.mxu0 %v1411
    %1427 = vmatprep.subr.mxu0 0.0
    %1428 = vmatpush1.msra.mxu0 %v1410
    %1429 = vmatprep.subr.mxu0 0.0
    %1430 = vmatpush1.msra.mxu0 %v1409
    %1431 = vmatprep.subr.mxu0 0.0
    %1432 = vmatpush1.msra.mxu0 %v1408
    %1433 = vmatprep.subr.mxu0 0.0
    %1434 = vmatpush1.msra.mxu0 %v1407
    %1435 = vmatprep.subr.mxu0 0.0
    %1436 = vmatpush1.msra.mxu0 %v1406
    %1437 = vmatprep.subr.mxu0 0.0
    %1438 = vmatpush1.msra.mxu0 %v1405
    %1439 = vmatprep.subr.mxu0 0.0
    %1440 = vmatpush1.msra.mxu0 %v1404
    %1441 = vmatprep.subr.mxu0 0.0
    %1442 = vmatpush1.msra.mxu0 %v1403
    %1443 = vmatprep.subr.mxu0 0.0
    %1444 = vmatpush1.msra.mxu0 %v1402
    %1445 = vmatprep.subr.mxu0 0.0
    %1446 = vmatpush1.msra.mxu0 %v1401
    %1447 = vmatprep.subr.mxu0 0.0
    %1448 = vmatpush1.msra.mxu0 %v1400
    %1449 = vmatprep.subr.mxu0 0.0
    %1450 = vmatpush1.msra.mxu0 %v1399
    %1451 = vmatprep.subr.mxu0 0.0
    %1452 = vmatpush1.msra.mxu0 %v1398
    %1453 = vmatprep.subr.mxu0 0.0
    %1454 = vmatpush2.msra.mxu0 0.0
    %1455 = vmatprep.subr.mxu0 0.0
    %1456 = vmatpush2.msra.mxu0 0.0
    %1457 = vmatprep.subr.mxu0 0.0
    %1458 = vmatpush2.msra.mxu0 0.0
    %1459 = vmatprep.subr.mxu0 0.0
    %1460 = vmatpush2.msra.mxu0 0.0
    %1461 = vmatprep.subr.mxu0 0.0
    %1462 = vmatpush2.msra.mxu0 0.0
    %1463 = vmatprep.subr.mxu0 0.0
    %1464 = vmatpush2.msra.mxu0 0.0
    %1465 = vmatprep.subr.mxu0 0.0
    %1466 = vmatpush2.msra.mxu0 0.0
    %1467 = vmatprep.subr.mxu0 0.0
    %1468 = vmatpush2.msra.mxu0 0.0
    %1469 = vmatprep.subr.mxu0 0.0
    %1470 = vmatpush2.msra.mxu0 0.0
    %1471 = vmatprep.subr.mxu0 0.0
    %1472 = vmatpush2.msra.mxu0 0.0
    %1473 = vmatprep.subr.mxu0 0.0
    %1474 = vmatpush2.msra.mxu0 0.0
    %1475 = vmatprep.subr.mxu0 0.0
    %1476 = vmatpush2.msra.mxu0 0.0
    %1477 = vmatprep.subr.mxu0 0.0
    %1478 = vmatpush2.msra.mxu0 0.0
    %1479 = vmatprep.subr.mxu0 0.0
    %1480 = vmatpush2.msra.mxu0 0.0
    %1481 = vmatprep.subr.mxu0 0.0
    %1482 = vmatpush2.msra.mxu0 0.0
    %1483 = vmatprep.subr.mxu0 0.0
    %1484 = vmatpush2.msra.mxu0 0.0
    %1485 = vmatprep.mubr.f32.mxu0 0.0
    %1486 = vmatmul.mubr.f32.gmra.mxu0 %v1397
    %v1487 = vpop.f32.mrf.mxu0
    %v1488 = vadd.f32 %v1419, %v1487
    %v1489 = vpop.f32.mrf.mxu0
    %1490 = vdwg.mxu0
    %v1491 = vtanh.pop %v1488
    %v1492 = vld [vmem:[#allocation11] sm:$0xff]
    %v1493 = vld [vmem:[#allocation11 + $0x8] sm:$0xff]
    %v1494 = vld [vmem:[#allocation11 + $0x10] sm:$0xff]
    %v1495 = vld [vmem:[#allocation11 + $0x18] sm:$0xff]
    %v1496 = vld [vmem:[#allocation11 + $0x20] sm:$0xff]
    %v1497 = vld [vmem:[#allocation11 + $0x28] sm:$0xff]
    %v1498 = vld [vmem:[#allocation11 + $0x30] sm:$0xff]
    %v1499 = vld [vmem:[#allocation11 + $0x38] sm:$0xff]
    %v1500 = vld [vmem:[#allocation11 + $0x40] sm:$0xff]
    %v1501 = vld [vmem:[#allocation11 + $0x48] sm:$0xff]
    %v1502 = vld [vmem:[#allocation11 + $0x50] sm:$0xff]
    %v1503 = vld [vmem:[#allocation11 + $0x58] sm:$0xff]
    %v1504 = vld [vmem:[#allocation11 + $0x60] sm:$0xff]
    %v1505 = vld [vmem:[#allocation11 + $0x68] sm:$0xff]
    %v1506 = vld [vmem:[#allocation11 + $0x70] sm:$0xff]
    %v1507 = vld [vmem:[#allocation11 + $0x78] sm:$0xff]
    %v1508 = vld [vmem:[%s12] sm:$0x1]
    %v1510 = vlaneseq
    %v1511 = vshrl.u32 %v1510, 7
    %v1512 = vsub.s32 0, %v1511
    %v1513 = vrot.slane %v1508, %v1512
    %1515 = vmatprep.subr.mxu0 0.0
    %1516 = vmatpush1.msra.mxu0 %v1507
    %1517 = vmatprep.subr.mxu0 0.0
    %1518 = vmatpush1.msra.mxu0 %v1506
    %1519 = vmatprep.subr.mxu0 0.0
    %1520 = vmatpush1.msra.mxu0 %v1505
    %1521 = vmatprep.subr.mxu0 0.0
    %1522 = vmatpush1.msra.mxu0 %v1504
    %1523 = vmatprep.subr.mxu0 0.0
    %1524 = vmatpush1.msra.mxu0 %v1503
    %1525 = vmatprep.subr.mxu0 0.0
    %1526 = vmatpush1.msra.mxu0 %v1502
    %1527 = vmatprep.subr.mxu0 0.0
    %1528 = vmatpush1.msra.mxu0 %v1501
    %1529 = vmatprep.subr.mxu0 0.0
    %1530 = vmatpush1.msra.mxu0 %v1500
    %1531 = vmatprep.subr.mxu0 0.0
    %1532 = vmatpush1.msra.mxu0 %v1499
    %1533 = vmatprep.subr.mxu0 0.0
    %1534 = vmatpush1.msra.mxu0 %v1498
    %1535 = vmatprep.subr.mxu0 0.0
    %1536 = vmatpush1.msra.mxu0 %v1497
    %1537 = vmatprep.subr.mxu0 0.0
    %1538 = vmatpush1.msra.mxu0 %v1496
    %1539 = vmatprep.subr.mxu0 0.0
    %1540 = vmatpush1.msra.mxu0 %v1495
    %1541 = vmatprep.subr.mxu0 0.0
    %1542 = vmatpush1.msra.mxu0 %v1494
    %1543 = vmatprep.subr.mxu0 0.0
    %1544 = vmatpush1.msra.mxu0 %v1493
    %1545 = vmatprep.subr.mxu0 0.0
    %1546 = vmatpush1.msra.mxu0 %v1492
    %1547 = vmatprep.subr.mxu0 0.0
    %1548 = vmatpush2.msra.mxu0 0.0
    %1549 = vmatprep.subr.mxu0 0.0
    %1550 = vmatpush2.msra.mxu0 0.0
    %1551 = vmatprep.subr.mxu0 0.0
    %1552 = vmatpush2.msra.mxu0 0.0
    %1553 = vmatprep.subr.mxu0 0.0
    %1554 = vmatpush2.msra.mxu0 0.0
    %1555 = vmatprep.subr.mxu0 0.0
    %1556 = vmatpush2.msra.mxu0 0.0
    %1557 = vmatprep.subr.mxu0 0.0
    %1558 = vmatpush2.msra.mxu0 0.0
    %1559 = vmatprep.subr.mxu0 0.0
    %1560 = vmatpush2.msra.mxu0 0.0
    %1561 = vmatprep.subr.mxu0 0.0
    %1562 = vmatpush2.msra.mxu0 0.0
    %1563 = vmatprep.subr.mxu0 0.0
    %1564 = vmatpush2.msra.mxu0 0.0
    %1565 = vmatprep.subr.mxu0 0.0
    %1566 = vmatpush2.msra.mxu0 0.0
    %1567 = vmatprep.subr.mxu0 0.0
    %1568 = vmatpush2.msra.mxu0 0.0
    %1569 = vmatprep.subr.mxu0 0.0
    %1570 = vmatpush2.msra.mxu0 0.0
    %1571 = vmatprep.subr.mxu0 0.0
    %1572 = vmatpush2.msra.mxu0 0.0
    %1573 = vmatprep.subr.mxu0 0.0
    %1574 = vmatpush2.msra.mxu0 0.0
    %1575 = vmatprep.subr.mxu0 0.0
    %1576 = vmatpush2.msra.mxu0 0.0
    %1577 = vmatprep.subr.mxu0 0.0
    %1578 = vmatpush2.msra.mxu0 0.0
    %1579 = vmatprep.mubr.f32.mxu0 0.0
    %1580 = vmatmul.mubr.f32.gmra.mxu0 %v1491
    %v1581 = vpop.f32.mrf.mxu0
    %v1582 = vadd.f32 %v1513, %v1581
    %v1583 = vpop.f32.mrf.mxu0
    %1584 = vdwg.mxu0
    %1585 = vst [vmem:[%s13 + $0x8] sm:$0xff] %v1582
    %v1586 = vld [vmem:[#allocation2 + $0x40] sm:$0xff]
    %v1587 = vld [vmem:[%s5] sm:$0xff]
    %v1588 = vld [vmem:[%s5 + $0x8] sm:$0xff]
    %v1589 = vld [vmem:[%s5 + $0x10] sm:$0xff]
    %v1590 = vld [vmem:[%s5 + $0x18] sm:$0xff]
    %v1591 = vld [vmem:[%s5 + $0x20] sm:$0xff]
    %v1592 = vld [vmem:[%s5 + $0x28] sm:$0xff]
    %v1593 = vld [vmem:[%s5 + $0x30] sm:$0xff]
    %v1594 = vld [vmem:[%s5 + $0x38] sm:$0xff]
    %v1595 = vld [vmem:[%s5 + $0x40] sm:$0xff]
    %v1596 = vld [vmem:[%s5 + $0x48] sm:$0xff]
    %v1597 = vld [vmem:[%s5 + $0x50] sm:$0xff]
    %v1598 = vld [vmem:[%s5 + $0x58] sm:$0xff]
    %v1599 = vld [vmem:[%s5 + $0x60] sm:$0xff]
    %v1600 = vld [vmem:[%s5 + $0x68] sm:$0xff]
    %v1601 = vld [vmem:[%s5 + $0x70] sm:$0xff]
    %v1602 = vld [vmem:[%s5 + $0x78] sm:$0xff]
    %1603 = vmatprep.subr.mxu0 0.0
    %1604 = vmatpush1.msra.mxu0 %v1602
    %1605 = vmatprep.subr.mxu0 0.0
    %1606 = vmatpush1.msra.mxu0 %v1601
    %1607 = vmatprep.subr.mxu0 0.0
    %1608 = vmatpush1.msra.mxu0 %v1600
    %1609 = vmatprep.subr.mxu0 0.0
    %1610 = vmatpush1.msra.mxu0 %v1599
    %1611 = vmatprep.subr.mxu0 0.0
    %1612 = vmatpush1.msra.mxu0 %v1598
    %1613 = vmatprep.subr.mxu0 0.0
    %1614 = vmatpush1.msra.mxu0 %v1597
    %1615 = vmatprep.subr.mxu0 0.0
    %1616 = vmatpush1.msra.mxu0 %v1596
    %1617 = vmatprep.subr.mxu0 0.0
    %1618 = vmatpush1.msra.mxu0 %v1595
    %1619 = vmatprep.subr.mxu0 0.0
    %1620 = vmatpush1.msra.mxu0 %v1594
    %1621 = vmatprep.subr.mxu0 0.0
    %1622 = vmatpush1.msra.mxu0 %v1593
    %1623 = vmatprep.subr.mxu0 0.0
    %1624 = vmatpush1.msra.mxu0 %v1592
    %1625 = vmatprep.subr.mxu0 0.0
    %1626 = vmatpush1.msra.mxu0 %v1591
    %1627 = vmatprep.subr.mxu0 0.0
    %1628 = vmatpush1.msra.mxu0 %v1590
    %1629 = vmatprep.subr.mxu0 0.0
    %1630 = vmatpush1.msra.mxu0 %v1589
    %1631 = vmatprep.subr.mxu0 0.0
    %1632 = vmatpush1.msra.mxu0 %v1588
    %1633 = vmatprep.subr.mxu0 0.0
    %1634 = vmatpush1.msra.mxu0 %v1587
    %1635 = vmatprep.subr.mxu0 0.0
    %1636 = vmatpush2.msra.mxu0 0.0
    %1637 = vmatprep.subr.mxu0 0.0
    %1638 = vmatpush2.msra.mxu0 0.0
    %1639 = vmatprep.subr.mxu0 0.0
    %1640 = vmatpush2.msra.mxu0 0.0
    %1641 = vmatprep.subr.mxu0 0.0
    %1642 = vmatpush2.msra.mxu0 0.0
    %1643 = vmatprep.subr.mxu0 0.0
    %1644 = vmatpush2.msra.mxu0 0.0
    %1645 = vmatprep.subr.mxu0 0.0
    %1646 = vmatpush2.msra.mxu0 0.0
    %1647 = vmatprep.subr.mxu0 0.0
    %1648 = vmatpush2.msra.mxu0 0.0
    %1649 = vmatprep.subr.mxu0 0.0
    %1650 = vmatpush2.msra.mxu0 0.0
    %1651 = vmatprep.subr.mxu0 0.0
    %1652 = vmatpush2.msra.mxu0 0.0
    %1653 = vmatprep.subr.mxu0 0.0
    %1654 = vmatpush2.msra.mxu0 0.0
    %1655 = vmatprep.subr.mxu0 0.0
    %1656 = vmatpush2.msra.mxu0 0.0
    %1657 = vmatprep.subr.mxu0 0.0
    %1658 = vmatpush2.msra.mxu0 0.0
    %1659 = vmatprep.subr.mxu0 0.0
    %1660 = vmatpush2.msra.mxu0 0.0
    %1661 = vmatprep.subr.mxu0 0.0
    %1662 = vmatpush2.msra.mxu0 0.0
    %1663 = vmatprep.subr.mxu0 0.0
    %1664 = vmatpush2.msra.mxu0 0.0
    %1665 = vmatprep.subr.mxu0 0.0
    %1666 = vmatpush2.msra.mxu0 0.0
    %1667 = vmatprep.mubr.f32.mxu0 0.0
    %1668 = vmatmul.mubr.f32.gmra.mxu0 %v1397
    %v1669 = vpop.f32.mrf.mxu0
    %v1670 = vadd.f32 0.0, %v1669
    %v1671 = vpop.f32.mrf.mxu0
    %1672 = vdwg.mxu0
    %v1673 = vadd.f32 %v1586, %v1670
    %v1674 = vld [vmem:[#allocation2 + $0x48] sm:$0xff]
    %v1675 = vld [vmem:[#allocation5] sm:$0xff]
    %v1676 = vld [vmem:[#allocation5 + $0x8] sm:$0xff]
    %v1677 = vld [vmem:[#allocation5 + $0x10] sm:$0xff]
    %v1678 = vld [vmem:[#allocation5 + $0x18] sm:$0xff]
    %v1679 = vld [vmem:[#allocation5 + $0x20] sm:$0xff]
    %v1680 = vld [vmem:[#allocation5 + $0x28] sm:$0xff]
    %v1681 = vld [vmem:[#allocation5 + $0x30] sm:$0xff]
    %v1682 = vld [vmem:[#allocation5 + $0x38] sm:$0xff]
    %v1683 = vld [vmem:[#allocation5 + $0x40] sm:$0xff]
    %v1684 = vld [vmem:[#allocation5 + $0x48] sm:$0xff]
    %v1685 = vld [vmem:[#allocation5 + $0x50] sm:$0xff]
    %v1686 = vld [vmem:[#allocation5 + $0x58] sm:$0xff]
    %v1687 = vld [vmem:[#allocation5 + $0x60] sm:$0xff]
    %v1688 = vld [vmem:[#allocation5 + $0x68] sm:$0xff]
    %v1689 = vld [vmem:[#allocation5 + $0x70] sm:$0xff]
    %v1690 = vld [vmem:[#allocation5 + $0x78] sm:$0xff]
    %1691 = vmatprep.subr.mxu0 0.0
    %1692 = vmatpush1.msra.mxu0 %v1690
    %1693 = vmatprep.subr.mxu0 0.0
    %1694 = vmatpush1.msra.mxu0 %v1689
    %1695 = vmatprep.subr.mxu0 0.0
    %1696 = vmatpush1.msra.mxu0 %v1688
    %1697 = vmatprep.subr.mxu0 0.0
    %1698 = vmatpush1.msra.mxu0 %v1687
    %1699 = vmatprep.subr.mxu0 0.0
    %1700 = vmatpush1.msra.mxu0 %v1686
    %1701 = vmatprep.subr.mxu0 0.0
    %1702 = vmatpush1.msra.mxu0 %v1685
    %1703 = vmatprep.subr.mxu0 0.0
    %1704 = vmatpush1.msra.mxu0 %v1684
    %1705 = vmatprep.subr.mxu0 0.0
    %1706 = vmatpush1.msra.mxu0 %v1683
    %1707 = vmatprep.subr.mxu0 0.0
    %1708 = vmatpush1.msra.mxu0 %v1682
    %1709 = vmatprep.subr.mxu0 0.0
    %1710 = vmatpush1.msra.mxu0 %v1681
    %1711 = vmatprep.subr.mxu0 0.0
    %1712 = vmatpush1.msra.mxu0 %v1680
    %1713 = vmatprep.subr.mxu0 0.0
    %1714 = vmatpush1.msra.mxu0 %v1679
    %1715 = vmatprep.subr.mxu0 0.0
    %1716 = vmatpush1.msra.mxu0 %v1678
    %1717 = vmatprep.subr.mxu0 0.0
    %1718 = vmatpush1.msra.mxu0 %v1677
    %1719 = vmatprep.subr.mxu0 0.0
    %1720 = vmatpush1.msra.mxu0 %v1676
    %1721 = vmatprep.subr.mxu0 0.0
    %1722 = vmatpush1.msra.mxu0 %v1675
    %1723 = vmatprep.subr.mxu0 0.0
    %1724 = vmatpush2.msra.mxu0 0.0
    %1725 = vmatprep.subr.mxu0 0.0
    %1726 = vmatpush2.msra.mxu0 0.0
    %1727 = vmatprep.subr.mxu0 0.0
    %1728 = vmatpush2.msra.mxu0 0.0
    %1729 = vmatprep.subr.mxu0 0.0
    %1730 = vmatpush2.msra.mxu0 0.0
    %1731 = vmatprep.subr.mxu0 0.0
    %1732 = vmatpush2.msra.mxu0 0.0
    %1733 = vmatprep.subr.mxu0 0.0
    %1734 = vmatpush2.msra.mxu0 0.0
    %1735 = vmatprep.subr.mxu0 0.0
    %1736 = vmatpush2.msra.mxu0 0.0
    %1737 = vmatprep.subr.mxu0 0.0
    %1738 = vmatpush2.msra.mxu0 0.0
    %1739 = vmatprep.subr.mxu0 0.0
    %1740 = vmatpush2.msra.mxu0 0.0
    %1741 = vmatprep.subr.mxu0 0.0
    %1742 = vmatpush2.msra.mxu0 0.0
    %1743 = vmatprep.subr.mxu0 0.0
    %1744 = vmatpush2.msra.mxu0 0.0
    %1745 = vmatprep.subr.mxu0 0.0
    %1746 = vmatpush2.msra.mxu0 0.0
    %1747 = vmatprep.subr.mxu0 0.0
    %1748 = vmatpush2.msra.mxu0 0.0
    %1749 = vmatprep.subr.mxu0 0.0
    %1750 = vmatpush2.msra.mxu0 0.0
    %1751 = vmatprep.subr.mxu0 0.0
    %1752 = vmatpush2.msra.mxu0 0.0
    %1753 = vmatprep.subr.mxu0 0.0
    %1754 = vmatpush2.msra.mxu0 0.0
    %1755 = vmatprep.mubr.f32.mxu0 0.0
    %1756 = vmatmul.mubr.f32.gmra.mxu0 %v1397
    %v1757 = vpop.f32.mrf.mxu0
    %v1758 = vadd.f32 0.0, %v1757
    %v1759 = vpop.f32.mrf.mxu0
    %1760 = vdwg.mxu0
    %v1761 = vadd.f32 %v1674, %v1758
    %v1762 = vld [vmem:[#allocation2 + $0x50] sm:$0xff]
    %v1763 = vld [vmem:[#allocation7] sm:$0xff]
    %v1764 = vld [vmem:[#allocation7 + $0x8] sm:$0xff]
    %v1765 = vld [vmem:[#allocation7 + $0x10] sm:$0xff]
    %v1766 = vld [vmem:[#allocation7 + $0x18] sm:$0xff]
    %v1767 = vld [vmem:[#allocation7 + $0x20] sm:$0xff]
    %v1768 = vld [vmem:[#allocation7 + $0x28] sm:$0xff]
    %v1769 = vld [vmem:[#allocation7 + $0x30] sm:$0xff]
    %v1770 = vld [vmem:[#allocation7 + $0x38] sm:$0xff]
    %v1771 = vld [vmem:[#allocation7 + $0x40] sm:$0xff]
    %v1772 = vld [vmem:[#allocation7 + $0x48] sm:$0xff]
    %v1773 = vld [vmem:[#allocation7 + $0x50] sm:$0xff]
    %v1774 = vld [vmem:[#allocation7 + $0x58] sm:$0xff]
    %v1775 = vld [vmem:[#allocation7 + $0x60] sm:$0xff]
    %v1776 = vld [vmem:[#allocation7 + $0x68] sm:$0xff]
    %v1777 = vld [vmem:[#allocation7 + $0x70] sm:$0xff]
    %v1778 = vld [vmem:[#allocation7 + $0x78] sm:$0xff]
    %1779 = vmatprep.subr.mxu0 0.0
    %1780 = vmatpush1.msra.mxu0 %v1778
    %1781 = vmatprep.subr.mxu0 0.0
    %1782 = vmatpush1.msra.mxu0 %v1777
    %1783 = vmatprep.subr.mxu0 0.0
    %1784 = vmatpush1.msra.mxu0 %v1776
    %1785 = vmatprep.subr.mxu0 0.0
    %1786 = vmatpush1.msra.mxu0 %v1775
    %1787 = vmatprep.subr.mxu0 0.0
    %1788 = vmatpush1.msra.mxu0 %v1774
    %1789 = vmatprep.subr.mxu0 0.0
    %1790 = vmatpush1.msra.mxu0 %v1773
    %1791 = vmatprep.subr.mxu0 0.0
    %1792 = vmatpush1.msra.mxu0 %v1772
    %1793 = vmatprep.subr.mxu0 0.0
    %1794 = vmatpush1.msra.mxu0 %v1771
    %1795 = vmatprep.subr.mxu0 0.0
    %1796 = vmatpush1.msra.mxu0 %v1770
    %1797 = vmatprep.subr.mxu0 0.0
    %1798 = vmatpush1.msra.mxu0 %v1769
    %1799 = vmatprep.subr.mxu0 0.0
    %1800 = vmatpush1.msra.mxu0 %v1768
    %1801 = vmatprep.subr.mxu0 0.0
    %1802 = vmatpush1.msra.mxu0 %v1767
    %1803 = vmatprep.subr.mxu0 0.0
    %1804 = vmatpush1.msra.mxu0 %v1766
    %1805 = vmatprep.subr.mxu0 0.0
    %1806 = vmatpush1.msra.mxu0 %v1765
    %1807 = vmatprep.subr.mxu0 0.0
    %1808 = vmatpush1.msra.mxu0 %v1764
    %1809 = vmatprep.subr.mxu0 0.0
    %1810 = vmatpush1.msra.mxu0 %v1763
    %1811 = vmatprep.subr.mxu0 0.0
    %1812 = vmatpush2.msra.mxu0 0.0
    %1813 = vmatprep.subr.mxu0 0.0
    %1814 = vmatpush2.msra.mxu0 0.0
    %1815 = vmatprep.subr.mxu0 0.0
    %1816 = vmatpush2.msra.mxu0 0.0
    %1817 = vmatprep.subr.mxu0 0.0
    %1818 = vmatpush2.msra.mxu0 0.0
    %1819 = vmatprep.subr.mxu0 0.0
    %1820 = vmatpush2.msra.mxu0 0.0
    %1821 = vmatprep.subr.mxu0 0.0
    %1822 = vmatpush2.msra.mxu0 0.0
    %1823 = vmatprep.subr.mxu0 0.0
    %1824 = vmatpush2.msra.mxu0 0.0
    %1825 = vmatprep.subr.mxu0 0.0
    %1826 = vmatpush2.msra.mxu0 0.0
    %1827 = vmatprep.subr.mxu0 0.0
    %1828 = vmatpush2.msra.mxu0 0.0
    %1829 = vmatprep.subr.mxu0 0.0
    %1830 = vmatpush2.msra.mxu0 0.0
    %1831 = vmatprep.subr.mxu0 0.0
    %1832 = vmatpush2.msra.mxu0 0.0
    %1833 = vmatprep.subr.mxu0 0.0
    %1834 = vmatpush2.msra.mxu0 0.0
    %1835 = vmatprep.subr.mxu0 0.0
    %1836 = vmatpush2.msra.mxu0 0.0
    %1837 = vmatprep.subr.mxu0 0.0
    %1838 = vmatpush2.msra.mxu0 0.0
    %1839 = vmatprep.subr.mxu0 0.0
    %1840 = vmatpush2.msra.mxu0 0.0
    %1841 = vmatprep.subr.mxu0 0.0
    %1842 = vmatpush2.msra.mxu0 0.0
    %1843 = vmatprep.mubr.f32.mxu0 0.0
    %1844 = vmatmul.mubr.f32.gmra.mxu0 %v1397
    %v1845 = vpop.f32.mrf.mxu0
    %v1846 = vadd.f32 0.0, %v1845
    %v1847 = vpop.f32.mrf.mxu0
    %1848 = vdwg.mxu0
    %v1849 = vadd.f32 %v1762, %v1846
    %v1850 = vmul.f32 %v1673, 0.5
    %v1851 = vtanh.pop %v1850
    %v1852 = vmul.f32 %v1851, 0.5
    %v1853 = vadd.f32 %v1852, 0.5
    %v1854 = vmul.f32 %v1761, 0.5
    %v1855 = vtanh.pop %v1854
    %v1856 = vmul.f32 %v1855, 0.5
    %v1857 = vadd.f32 %v1856, 0.5
    %v1858 = vtanh.pop %v1849
    %v1859 = vmul.f32 %v1857, %v1303
    %v1860 = vmul.f32 %v1853, %v1858
    %v1861 = vadd.f32 %v1859, %v1860
    %v1862 = vld [vmem:[#allocation2 + $0x58] sm:$0xff]
    %v1863 = vld [vmem:[#allocation8] sm:$0xff]
    %v1864 = vld [vmem:[#allocation8 + $0x8] sm:$0xff]
    %v1865 = vld [vmem:[#allocation8 + $0x10] sm:$0xff]
    %v1866 = vld [vmem:[#allocation8 + $0x18] sm:$0xff]
    %v1867 = vld [vmem:[#allocation8 + $0x20] sm:$0xff]
    %v1868 = vld [vmem:[#allocation8 + $0x28] sm:$0xff]
    %v1869 = vld [vmem:[#allocation8 + $0x30] sm:$0xff]
    %v1870 = vld [vmem:[#allocation8 + $0x38] sm:$0xff]
    %v1871 = vld [vmem:[#allocation8 + $0x40] sm:$0xff]
    %v1872 = vld [vmem:[#allocation8 + $0x48] sm:$0xff]
    %v1873 = vld [vmem:[#allocation8 + $0x50] sm:$0xff]
    %v1874 = vld [vmem:[#allocation8 + $0x58] sm:$0xff]
    %v1875 = vld [vmem:[#allocation8 + $0x60] sm:$0xff]
    %v1876 = vld [vmem:[#allocation8 + $0x68] sm:$0xff]
    %v1877 = vld [vmem:[#allocation8 + $0x70] sm:$0xff]
    %v1878 = vld [vmem:[#allocation8 + $0x78] sm:$0xff]
    %1879 = vmatprep.subr.mxu0 0.0
    %1880 = vmatpush1.msra.mxu0 %v1878
    %1881 = vmatprep.subr.mxu0 0.0
    %1882 = vmatpush1.msra.mxu0 %v1877
    %1883 = vmatprep.subr.mxu0 0.0
    %1884 = vmatpush1.msra.mxu0 %v1876
    %1885 = vmatprep.subr.mxu0 0.0
    %1886 = vmatpush1.msra.mxu0 %v1875
    %1887 = vmatprep.subr.mxu0 0.0
    %1888 = vmatpush1.msra.mxu0 %v1874
    %1889 = vmatprep.subr.mxu0 0.0
    %1890 = vmatpush1.msra.mxu0 %v1873
    %1891 = vmatprep.subr.mxu0 0.0
    %1892 = vmatpush1.msra.mxu0 %v1872
    %1893 = vmatprep.subr.mxu0 0.0
    %1894 = vmatpush1.msra.mxu0 %v1871
    %1895 = vmatprep.subr.mxu0 0.0
    %1896 = vmatpush1.msra.mxu0 %v1870
    %1897 = vmatprep.subr.mxu0 0.0
    %1898 = vmatpush1.msra.mxu0 %v1869
    %1899 = vmatprep.subr.mxu0 0.0
    %1900 = vmatpush1.msra.mxu0 %v1868
    %1901 = vmatprep.subr.mxu0 0.0
    %1902 = vmatpush1.msra.mxu0 %v1867
    %1903 = vmatprep.subr.mxu0 0.0
    %1904 = vmatpush1.msra.mxu0 %v1866
    %1905 = vmatprep.subr.mxu0 0.0
    %1906 = vmatpush1.msra.mxu0 %v1865
    %1907 = vmatprep.subr.mxu0 0.0
    %1908 = vmatpush1.msra.mxu0 %v1864
    %1909 = vmatprep.subr.mxu0 0.0
    %1910 = vmatpush1.msra.mxu0 %v1863
    %1911 = vmatprep.subr.mxu0 0.0
    %1912 = vmatpush2.msra.mxu0 0.0
    %1913 = vmatprep.subr.mxu0 0.0
    %1914 = vmatpush2.msra.mxu0 0.0
    %1915 = vmatprep.subr.mxu0 0.0
    %1916 = vmatpush2.msra.mxu0 0.0
    %1917 = vmatprep.subr.mxu0 0.0
    %1918 = vmatpush2.msra.mxu0 0.0
    %1919 = vmatprep.subr.mxu0 0.0
    %1920 = vmatpush2.msra.mxu0 0.0
    %1921 = vmatprep.subr.mxu0 0.0
    %1922 = vmatpush2.msra.mxu0 0.0
    %1923 = vmatprep.subr.mxu0 0.0
    %1924 = vmatpush2.msra.mxu0 0.0
    %1925 = vmatprep.subr.mxu0 0.0
    %1926 = vmatpush2.msra.mxu0 0.0
    %1927 = vmatprep.subr.mxu0 0.0
    %1928 = vmatpush2.msra.mxu0 0.0
    %1929 = vmatprep.subr.mxu0 0.0
    %1930 = vmatpush2.msra.mxu0 0.0
    %1931 = vmatprep.subr.mxu0 0.0
    %1932 = vmatpush2.msra.mxu0 0.0
    %1933 = vmatprep.subr.mxu0 0.0
    %1934 = vmatpush2.msra.mxu0 0.0
    %1935 = vmatprep.subr.mxu0 0.0
    %1936 = vmatpush2.msra.mxu0 0.0
    %1937 = vmatprep.subr.mxu0 0.0
    %1938 = vmatpush2.msra.mxu0 0.0
    %1939 = vmatprep.subr.mxu0 0.0
    %1940 = vmatpush2.msra.mxu0 0.0
    %1941 = vmatprep.subr.mxu0 0.0
    %1942 = vmatpush2.msra.mxu0 0.0
    %1943 = vmatprep.mubr.f32.mxu0 0.0
    %1944 = vmatmul.mubr.f32.gmra.mxu0 %v1397
    %v1945 = vpop.f32.mrf.mxu0
    %v1946 = vadd.f32 0.0, %v1945
    %v1947 = vpop.f32.mrf.mxu0
    %1948 = vdwg.mxu0
    %v1949 = vadd.f32 %v1862, %v1946
    %v1950 = vmul.f32 %v1949, 0.5
    %v1951 = vtanh.pop %v1950
    %v1952 = vmul.f32 %v1951, 0.5
    %v1953 = vadd.f32 %v1952, 0.5
    %v1954 = vtanh.pop %v1861
    %v1955 = vmul.f32 %v1953, %v1954
    %v1956 = vld [vmem:[#allocation10] sm:$0xff]
    %v1957 = vld [vmem:[#allocation10 + $0x8] sm:$0xff]
    %v1958 = vld [vmem:[#allocation10 + $0x10] sm:$0xff]
    %v1959 = vld [vmem:[#allocation10 + $0x18] sm:$0xff]
    %v1960 = vld [vmem:[#allocation10 + $0x20] sm:$0xff]
    %v1961 = vld [vmem:[#allocation10 + $0x28] sm:$0xff]
    %v1962 = vld [vmem:[#allocation10 + $0x30] sm:$0xff]
    %v1963 = vld [vmem:[#allocation10 + $0x38] sm:$0xff]
    %v1964 = vld [vmem:[#allocation10 + $0x40] sm:$0xff]
    %v1965 = vld [vmem:[#allocation10 + $0x48] sm:$0xff]
    %v1966 = vld [vmem:[#allocation10 + $0x50] sm:$0xff]
    %v1967 = vld [vmem:[#allocation10 + $0x58] sm:$0xff]
    %v1968 = vld [vmem:[#allocation10 + $0x60] sm:$0xff]
    %v1969 = vld [vmem:[#allocation10 + $0x68] sm:$0xff]
    %v1970 = vld [vmem:[#allocation10 + $0x70] sm:$0xff]
    %v1971 = vld [vmem:[#allocation10 + $0x78] sm:$0xff]
    %v1972 = vld [vmem:[%s10] sm:$0x1]
    %v1974 = vlaneseq
    %v1975 = vshrl.u32 %v1974, 7
    %v1976 = vsub.s32 0, %v1975
    %v1977 = vrot.slane %v1972, %v1976
    %1979 = vmatprep.subr.mxu0 0.0
    %1980 = vmatpush1.msra.mxu0 %v1971
    %1981 = vmatprep.subr.mxu0 0.0
    %1982 = vmatpush1.msra.mxu0 %v1970
    %1983 = vmatprep.subr.mxu0 0.0
    %1984 = vmatpush1.msra.mxu0 %v1969
    %1985 = vmatprep.subr.mxu0 0.0
    %1986 = vmatpush1.msra.mxu0 %v1968
    %1987 = vmatprep.subr.mxu0 0.0
    %1988 = vmatpush1.msra.mxu0 %v1967
    %1989 = vmatprep.subr.mxu0 0.0
    %1990 = vmatpush1.msra.mxu0 %v1966
    %1991 = vmatprep.subr.mxu0 0.0
    %1992 = vmatpush1.msra.mxu0 %v1965
    %1993 = vmatprep.subr.mxu0 0.0
    %1994 = vmatpush1.msra.mxu0 %v1964
    %1995 = vmatprep.subr.mxu0 0.0
    %1996 = vmatpush1.msra.mxu0 %v1963
    %1997 = vmatprep.subr.mxu0 0.0
    %1998 = vmatpush1.msra.mxu0 %v1962
    %1999 = vmatprep.subr.mxu0 0.0
    %2000 = vmatpush1.msra.mxu0 %v1961
    %2001 = vmatprep.subr.mxu0 0.0
    %2002 = vmatpush1.msra.mxu0 %v1960
    %2003 = vmatprep.subr.mxu0 0.0
    %2004 = vmatpush1.msra.mxu0 %v1959
    %2005 = vmatprep.subr.mxu0 0.0
    %2006 = vmatpush1.msra.mxu0 %v1958
    %2007 = vmatprep.subr.mxu0 0.0
    %2008 = vmatpush1.msra.mxu0 %v1957
    %2009 = vmatprep.subr.mxu0 0.0
    %2010 = vmatpush1.msra.mxu0 %v1956
    %2011 = vmatprep.subr.mxu0 0.0
    %2012 = vmatpush2.msra.mxu0 0.0
    %2013 = vmatprep.subr.mxu0 0.0
    %2014 = vmatpush2.msra.mxu0 0.0
    %2015 = vmatprep.subr.mxu0 0.0
    %2016 = vmatpush2.msra.mxu0 0.0
    %2017 = vmatprep.subr.mxu0 0.0
    %2018 = vmatpush2.msra.mxu0 0.0
    %2019 = vmatprep.subr.mxu0 0.0
    %2020 = vmatpush2.msra.mxu0 0.0
    %2021 = vmatprep.subr.mxu0 0.0
    %2022 = vmatpush2.msra.mxu0 0.0
    %2023 = vmatprep.subr.mxu0 0.0
    %2024 = vmatpush2.msra.mxu0 0.0
    %2025 = vmatprep.subr.mxu0 0.0
    %2026 = vmatpush2.msra.mxu0 0.0
    %2027 = vmatprep.subr.mxu0 0.0
    %2028 = vmatpush2.msra.mxu0 0.0
    %2029 = vmatprep.subr.mxu0 0.0
    %2030 = vmatpush2.msra.mxu0 0.0
    %2031 = vmatprep.subr.mxu0 0.0
    %2032 = vmatpush2.msra.mxu0 0.0
    %2033 = vmatprep.subr.mxu0 0.0
    %2034 = vmatpush2.msra.mxu0 0.0
    %2035 = vmatprep.subr.mxu0 0.0
    %2036 = vmatpush2.msra.mxu0 0.0
    %2037 = vmatprep.subr.mxu0 0.0
    %2038 = vmatpush2.msra.mxu0 0.0
    %2039 = vmatprep.subr.mxu0 0.0
    %2040 = vmatpush2.msra.mxu0 0.0
    %2041 = vmatprep.subr.mxu0 0.0
    %2042 = vmatpush2.msra.mxu0 0.0
    %2043 = vmatprep.mubr.f32.mxu0 0.0
    %2044 = vmatmul.mubr.f32.gmra.mxu0 %v1955
    %v2045 = vpop.f32.mrf.mxu0
    %v2046 = vadd.f32 %v1977, %v2045
    %v2047 = vpop.f32.mrf.mxu0
    %2048 = vdwg.mxu0
    %v2049 = vtanh.pop %v2046
    %v2050 = vld [vmem:[#allocation11] sm:$0xff]
    %v2051 = vld [vmem:[#allocation11 + $0x8] sm:$0xff]
    %v2052 = vld [vmem:[#allocation11 + $0x10] sm:$0xff]
    %v2053 = vld [vmem:[#allocation11 + $0x18] sm:$0xff]
    %v2054 = vld [vmem:[#allocation11 + $0x20] sm:$0xff]
    %v2055 = vld [vmem:[#allocation11 + $0x28] sm:$0xff]
    %v2056 = vld [vmem:[#allocation11 + $0x30] sm:$0xff]
    %v2057 = vld [vmem:[#allocation11 + $0x38] sm:$0xff]
    %v2058 = vld [vmem:[#allocation11 + $0x40] sm:$0xff]
    %v2059 = vld [vmem:[#allocation11 + $0x48] sm:$0xff]
    %v2060 = vld [vmem:[#allocation11 + $0x50] sm:$0xff]
    %v2061 = vld [vmem:[#allocation11 + $0x58] sm:$0xff]
    %v2062 = vld [vmem:[#allocation11 + $0x60] sm:$0xff]
    %v2063 = vld [vmem:[#allocation11 + $0x68] sm:$0xff]
    %v2064 = vld [vmem:[#allocation11 + $0x70] sm:$0xff]
    %v2065 = vld [vmem:[#allocation11 + $0x78] sm:$0xff]
    %v2066 = vld [vmem:[%s12] sm:$0x1]
    %v2068 = vlaneseq
    %v2069 = vshrl.u32 %v2068, 7
    %v2070 = vsub.s32 0, %v2069
    %v2071 = vrot.slane %v2066, %v2070
    %2073 = vmatprep.subr.mxu0 0.0
    %2074 = vmatpush1.msra.mxu0 %v2065
    %2075 = vmatprep.subr.mxu0 0.0
    %2076 = vmatpush1.msra.mxu0 %v2064
    %2077 = vmatprep.subr.mxu0 0.0
    %2078 = vmatpush1.msra.mxu0 %v2063
    %2079 = vmatprep.subr.mxu0 0.0
    %2080 = vmatpush1.msra.mxu0 %v2062
    %2081 = vmatprep.subr.mxu0 0.0
    %2082 = vmatpush1.msra.mxu0 %v2061
    %2083 = vmatprep.subr.mxu0 0.0
    %2084 = vmatpush1.msra.mxu0 %v2060
    %2085 = vmatprep.subr.mxu0 0.0
    %2086 = vmatpush1.msra.mxu0 %v2059
    %2087 = vmatprep.subr.mxu0 0.0
    %2088 = vmatpush1.msra.mxu0 %v2058
    %2089 = vmatprep.subr.mxu0 0.0
    %2090 = vmatpush1.msra.mxu0 %v2057
    %2091 = vmatprep.subr.mxu0 0.0
    %2092 = vmatpush1.msra.mxu0 %v2056
    %2093 = vmatprep.subr.mxu0 0.0
    %2094 = vmatpush1.msra.mxu0 %v2055
    %2095 = vmatprep.subr.mxu0 0.0
    %2096 = vmatpush1.msra.mxu0 %v2054
    %2097 = vmatprep.subr.mxu0 0.0
    %2098 = vmatpush1.msra.mxu0 %v2053
    %2099 = vmatprep.subr.mxu0 0.0
    %2100 = vmatpush1.msra.mxu0 %v2052
    %2101 = vmatprep.subr.mxu0 0.0
    %2102 = vmatpush1.msra.mxu0 %v2051
    %2103 = vmatprep.subr.mxu0 0.0
    %2104 = vmatpush1.msra.mxu0 %v2050
    %2105 = vmatprep.subr.mxu0 0.0
    %2106 = vmatpush2.msra.mxu0 0.0
    %2107 = vmatprep.subr.mxu0 0.0
    %2108 = vmatpush2.msra.mxu0 0.0
    %2109 = vmatprep.subr.mxu0 0.0
    %2110 = vmatpush2.msra.mxu0 0.0
    %2111 = vmatprep.subr.mxu0 0.0
    %2112 = vmatpush2.msra.mxu0 0.0
    %2113 = vmatprep.subr.mxu0 0.0
    %2114 = vmatpush2.msra.mxu0 0.0
    %2115 = vmatprep.subr.mxu0 0.0
    %2116 = vmatpush2.msra.mxu0 0.0
    %2117 = vmatprep.subr.mxu0 0.0
    %2118 = vmatpush2.msra.mxu0 0.0
    %2119 = vmatprep.subr.mxu0 0.0
    %2120 = vmatpush2.msra.mxu0 0.0
    %2121 = vmatprep.subr.mxu0 0.0
    %2122 = vmatpush2.msra.mxu0 0.0
    %2123 = vmatprep.subr.mxu0 0.0
    %2124 = vmatpush2.msra.mxu0 0.0
    %2125 = vmatprep.subr.mxu0 0.0
    %2126 = vmatpush2.msra.mxu0 0.0
    %2127 = vmatprep.subr.mxu0 0.0
    %2128 = vmatpush2.msra.mxu0 0.0
    %2129 = vmatprep.subr.mxu0 0.0
    %2130 = vmatpush2.msra.mxu0 0.0
    %2131 = vmatprep.subr.mxu0 0.0
    %2132 = vmatpush2.msra.mxu0 0.0
    %2133 = vmatprep.subr.mxu0 0.0
    %2134 = vmatpush2.msra.mxu0 0.0
    %2135 = vmatprep.subr.mxu0 0.0
    %2136 = vmatpush2.msra.mxu0 0.0
    %2137 = vmatprep.mubr.f32.mxu0 0.0
    %2138 = vmatmul.mubr.f32.gmra.mxu0 %v2049
    %v2139 = vpop.f32.mrf.mxu0
    %v2140 = vadd.f32 %v2071, %v2139
    %v2141 = vpop.f32.mrf.mxu0
    %2142 = vdwg.mxu0
    %2143 = vst [vmem:[%s13 + $0x10] sm:$0xff] %v2140
    %v2144 = vld [vmem:[#allocation2 + $0x60] sm:$0xff]
    %v2145 = vld [vmem:[%s5] sm:$0xff]
    %v2146 = vld [vmem:[%s5 + $0x8] sm:$0xff]
    %v2147 = vld [vmem:[%s5 + $0x10] sm:$0xff]
    %v2148 = vld [vmem:[%s5 + $0x18] sm:$0xff]
    %v2149 = vld [vmem:[%s5 + $0x20] sm:$0xff]
    %v2150 = vld [vmem:[%s5 + $0x28] sm:$0xff]
    %v2151 = vld [vmem:[%s5 + $0x30] sm:$0xff]
    %v2152 = vld [vmem:[%s5 + $0x38] sm:$0xff]
    %v2153 = vld [vmem:[%s5 + $0x40] sm:$0xff]
    %v2154 = vld [vmem:[%s5 + $0x48] sm:$0xff]
    %v2155 = vld [vmem:[%s5 + $0x50] sm:$0xff]
    %v2156 = vld [vmem:[%s5 + $0x58] sm:$0xff]
    %v2157 = vld [vmem:[%s5 + $0x60] sm:$0xff]
    %v2158 = vld [vmem:[%s5 + $0x68] sm:$0xff]
    %v2159 = vld [vmem:[%s5 + $0x70] sm:$0xff]
    %v2160 = vld [vmem:[%s5 + $0x78] sm:$0xff]
    %2161 = vmatprep.subr.mxu0 0.0
    %2162 = vmatpush1.msra.mxu0 %v2160
    %2163 = vmatprep.subr.mxu0 0.0
    %2164 = vmatpush1.msra.mxu0 %v2159
    %2165 = vmatprep.subr.mxu0 0.0
    %2166 = vmatpush1.msra.mxu0 %v2158
    %2167 = vmatprep.subr.mxu0 0.0
    %2168 = vmatpush1.msra.mxu0 %v2157
    %2169 = vmatprep.subr.mxu0 0.0
    %2170 = vmatpush1.msra.mxu0 %v2156
    %2171 = vmatprep.subr.mxu0 0.0
    %2172 = vmatpush1.msra.mxu0 %v2155
    %2173 = vmatprep.subr.mxu0 0.0
    %2174 = vmatpush1.msra.mxu0 %v2154
    %2175 = vmatprep.subr.mxu0 0.0
    %2176 = vmatpush1.msra.mxu0 %v2153
    %2177 = vmatprep.subr.mxu0 0.0
    %2178 = vmatpush1.msra.mxu0 %v2152
    %2179 = vmatprep.subr.mxu0 0.0
    %2180 = vmatpush1.msra.mxu0 %v2151
    %2181 = vmatprep.subr.mxu0 0.0
    %2182 = vmatpush1.msra.mxu0 %v2150
    %2183 = vmatprep.subr.mxu0 0.0
    %2184 = vmatpush1.msra.mxu0 %v2149
    %2185 = vmatprep.subr.mxu0 0.0
    %2186 = vmatpush1.msra.mxu0 %v2148
    %2187 = vmatprep.subr.mxu0 0.0
    %2188 = vmatpush1.msra.mxu0 %v2147
    %2189 = vmatprep.subr.mxu0 0.0
    %2190 = vmatpush1.msra.mxu0 %v2146
    %2191 = vmatprep.subr.mxu0 0.0
    %2192 = vmatpush1.msra.mxu0 %v2145
    %2193 = vmatprep.subr.mxu0 0.0
    %2194 = vmatpush2.msra.mxu0 0.0
    %2195 = vmatprep.subr.mxu0 0.0
    %2196 = vmatpush2.msra.mxu0 0.0
    %2197 = vmatprep.subr.mxu0 0.0
    %2198 = vmatpush2.msra.mxu0 0.0
    %2199 = vmatprep.subr.mxu0 0.0
    %2200 = vmatpush2.msra.mxu0 0.0
    %2201 = vmatprep.subr.mxu0 0.0
    %2202 = vmatpush2.msra.mxu0 0.0
    %2203 = vmatprep.subr.mxu0 0.0
    %2204 = vmatpush2.msra.mxu0 0.0
    %2205 = vmatprep.subr.mxu0 0.0
    %2206 = vmatpush2.msra.mxu0 0.0
    %2207 = vmatprep.subr.mxu0 0.0
    %2208 = vmatpush2.msra.mxu0 0.0
    %2209 = vmatprep.subr.mxu0 0.0
    %2210 = vmatpush2.msra.mxu0 0.0
    %2211 = vmatprep.subr.mxu0 0.0
    %2212 = vmatpush2.msra.mxu0 0.0
    %2213 = vmatprep.subr.mxu0 0.0
    %2214 = vmatpush2.msra.mxu0 0.0
    %2215 = vmatprep.subr.mxu0 0.0
    %2216 = vmatpush2.msra.mxu0 0.0
    %2217 = vmatprep.subr.mxu0 0.0
    %2218 = vmatpush2.msra.mxu0 0.0
    %2219 = vmatprep.subr.mxu0 0.0
    %2220 = vmatpush2.msra.mxu0 0.0
    %2221 = vmatprep.subr.mxu0 0.0
    %2222 = vmatpush2.msra.mxu0 0.0
    %2223 = vmatprep.subr.mxu0 0.0
    %2224 = vmatpush2.msra.mxu0 0.0
    %2225 = vmatprep.mubr.f32.mxu0 0.0
    %2226 = vmatmul.mubr.f32.gmra.mxu0 %v1955
    %v2227 = vpop.f32.mrf.mxu0
    %v2228 = vadd.f32 0.0, %v2227
    %v2229 = vpop.f32.mrf.mxu0
    %2230 = vdwg.mxu0
    %v2231 = vadd.f32 %v2144, %v2228
    %v2232 = vld [vmem:[#allocation2 + $0x68] sm:$0xff]
    %v2233 = vld [vmem:[#allocation5] sm:$0xff]
    %v2234 = vld [vmem:[#allocation5 + $0x8] sm:$0xff]
    %v2235 = vld [vmem:[#allocation5 + $0x10] sm:$0xff]
    %v2236 = vld [vmem:[#allocation5 + $0x18] sm:$0xff]
    %v2237 = vld [vmem:[#allocation5 + $0x20] sm:$0xff]
    %v2238 = vld [vmem:[#allocation5 + $0x28] sm:$0xff]
    %v2239 = vld [vmem:[#allocation5 + $0x30] sm:$0xff]
    %v2240 = vld [vmem:[#allocation5 + $0x38] sm:$0xff]
    %v2241 = vld [vmem:[#allocation5 + $0x40] sm:$0xff]
    %v2242 = vld [vmem:[#allocation5 + $0x48] sm:$0xff]
    %v2243 = vld [vmem:[#allocation5 + $0x50] sm:$0xff]
    %v2244 = vld [vmem:[#allocation5 + $0x58] sm:$0xff]
    %v2245 = vld [vmem:[#allocation5 + $0x60] sm:$0xff]
    %v2246 = vld [vmem:[#allocation5 + $0x68] sm:$0xff]
    %v2247 = vld [vmem:[#allocation5 + $0x70] sm:$0xff]
    %v2248 = vld [vmem:[#allocation5 + $0x78] sm:$0xff]
    %2249 = vmatprep.subr.mxu0 0.0
    %2250 = vmatpush1.msra.mxu0 %v2248
    %2251 = vmatprep.subr.mxu0 0.0
    %2252 = vmatpush1.msra.mxu0 %v2247
    %2253 = vmatprep.subr.mxu0 0.0
    %2254 = vmatpush1.msra.mxu0 %v2246
    %2255 = vmatprep.subr.mxu0 0.0
    %2256 = vmatpush1.msra.mxu0 %v2245
    %2257 = vmatprep.subr.mxu0 0.0
    %2258 = vmatpush1.msra.mxu0 %v2244
    %2259 = vmatprep.subr.mxu0 0.0
    %2260 = vmatpush1.msra.mxu0 %v2243
    %2261 = vmatprep.subr.mxu0 0.0
    %2262 = vmatpush1.msra.mxu0 %v2242
    %2263 = vmatprep.subr.mxu0 0.0
    %2264 = vmatpush1.msra.mxu0 %v2241
    %2265 = vmatprep.subr.mxu0 0.0
    %2266 = vmatpush1.msra.mxu0 %v2240
    %2267 = vmatprep.subr.mxu0 0.0
    %2268 = vmatpush1.msra.mxu0 %v2239
    %2269 = vmatprep.subr.mxu0 0.0
    %2270 = vmatpush1.msra.mxu0 %v2238
    %2271 = vmatprep.subr.mxu0 0.0
    %2272 = vmatpush1.msra.mxu0 %v2237
    %2273 = vmatprep.subr.mxu0 0.0
    %2274 = vmatpush1.msra.mxu0 %v2236
    %2275 = vmatprep.subr.mxu0 0.0
    %2276 = vmatpush1.msra.mxu0 %v2235
    %2277 = vmatprep.subr.mxu0 0.0
    %2278 = vmatpush1.msra.mxu0 %v2234
    %2279 = vmatprep.subr.mxu0 0.0
    %2280 = vmatpush1.msra.mxu0 %v2233
    %2281 = vmatprep.subr.mxu0 0.0
    %2282 = vmatpush2.msra.mxu0 0.0
    %2283 = vmatprep.subr.mxu0 0.0
    %2284 = vmatpush2.msra.mxu0 0.0
    %2285 = vmatprep.subr.mxu0 0.0
    %2286 = vmatpush2.msra.mxu0 0.0
    %2287 = vmatprep.subr.mxu0 0.0
    %2288 = vmatpush2.msra.mxu0 0.0
    %2289 = vmatprep.subr.mxu0 0.0
    %2290 = vmatpush2.msra.mxu0 0.0
    %2291 = vmatprep.subr.mxu0 0.0
    %2292 = vmatpush2.msra.mxu0 0.0
    %2293 = vmatprep.subr.mxu0 0.0
    %2294 = vmatpush2.msra.mxu0 0.0
    %2295 = vmatprep.subr.mxu0 0.0
    %2296 = vmatpush2.msra.mxu0 0.0
    %2297 = vmatprep.subr.mxu0 0.0
    %2298 = vmatpush2.msra.mxu0 0.0
    %2299 = vmatprep.subr.mxu0 0.0
    %2300 = vmatpush2.msra.mxu0 0.0
    %2301 = vmatprep.subr.mxu0 0.0
    %2302 = vmatpush2.msra.mxu0 0.0
    %2303 = vmatprep.subr.mxu0 0.0
    %2304 = vmatpush2.msra.mxu0 0.0
    %2305 = vmatprep.subr.mxu0 0.0
    %2306 = vmatpush2.msra.mxu0 0.0
    %2307 = vmatprep.subr.mxu0 0.0
    %2308 = vmatpush2.msra.mxu0 0.0
    %2309 = vmatprep.subr.mxu0 0.0
    %2310 = vmatpush2.msra.mxu0 0.0
    %2311 = vmatprep.subr.mxu0 0.0
    %2312 = vmatpush2.msra.mxu0 0.0
    %2313 = vmatprep.mubr.f32.mxu0 0.0
    %2314 = vmatmul.mubr.f32.gmra.mxu0 %v1955
    %v2315 = vpop.f32.mrf.mxu0
    %v2316 = vadd.f32 0.0, %v2315
    %v2317 = vpop.f32.mrf.mxu0
    %2318 = vdwg.mxu0
    %v2319 = vadd.f32 %v2232, %v2316
    %v2320 = vld [vmem:[#allocation2 + $0x70] sm:$0xff]
    %v2321 = vld [vmem:[#allocation7] sm:$0xff]
    %v2322 = vld [vmem:[#allocation7 + $0x8] sm:$0xff]
    %v2323 = vld [vmem:[#allocation7 + $0x10] sm:$0xff]
    %v2324 = vld [vmem:[#allocation7 + $0x18] sm:$0xff]
    %v2325 = vld [vmem:[#allocation7 + $0x20] sm:$0xff]
    %v2326 = vld [vmem:[#allocation7 + $0x28] sm:$0xff]
    %v2327 = vld [vmem:[#allocation7 + $0x30] sm:$0xff]
    %v2328 = vld [vmem:[#allocation7 + $0x38] sm:$0xff]
    %v2329 = vld [vmem:[#allocation7 + $0x40] sm:$0xff]
    %v2330 = vld [vmem:[#allocation7 + $0x48] sm:$0xff]
    %v2331 = vld [vmem:[#allocation7 + $0x50] sm:$0xff]
    %v2332 = vld [vmem:[#allocation7 + $0x58] sm:$0xff]
    %v2333 = vld [vmem:[#allocation7 + $0x60] sm:$0xff]
    %v2334 = vld [vmem:[#allocation7 + $0x68] sm:$0xff]
    %v2335 = vld [vmem:[#allocation7 + $0x70] sm:$0xff]
    %v2336 = vld [vmem:[#allocation7 + $0x78] sm:$0xff]
    %2337 = vmatprep.subr.mxu0 0.0
    %2338 = vmatpush1.msra.mxu0 %v2336
    %2339 = vmatprep.subr.mxu0 0.0
    %2340 = vmatpush1.msra.mxu0 %v2335
    %2341 = vmatprep.subr.mxu0 0.0
    %2342 = vmatpush1.msra.mxu0 %v2334
    %2343 = vmatprep.subr.mxu0 0.0
    %2344 = vmatpush1.msra.mxu0 %v2333
    %2345 = vmatprep.subr.mxu0 0.0
    %2346 = vmatpush1.msra.mxu0 %v2332
    %2347 = vmatprep.subr.mxu0 0.0
    %2348 = vmatpush1.msra.mxu0 %v2331
    %2349 = vmatprep.subr.mxu0 0.0
    %2350 = vmatpush1.msra.mxu0 %v2330
    %2351 = vmatprep.subr.mxu0 0.0
    %2352 = vmatpush1.msra.mxu0 %v2329
    %2353 = vmatprep.subr.mxu0 0.0
    %2354 = vmatpush1.msra.mxu0 %v2328
    %2355 = vmatprep.subr.mxu0 0.0
    %2356 = vmatpush1.msra.mxu0 %v2327
    %2357 = vmatprep.subr.mxu0 0.0
    %2358 = vmatpush1.msra.mxu0 %v2326
    %2359 = vmatprep.subr.mxu0 0.0
    %2360 = vmatpush1.msra.mxu0 %v2325
    %2361 = vmatprep.subr.mxu0 0.0
    %2362 = vmatpush1.msra.mxu0 %v2324
    %2363 = vmatprep.subr.mxu0 0.0
    %2364 = vmatpush1.msra.mxu0 %v2323
    %2365 = vmatprep.subr.mxu0 0.0
    %2366 = vmatpush1.msra.mxu0 %v2322
    %2367 = vmatprep.subr.mxu0 0.0
    %2368 = vmatpush1.msra.mxu0 %v2321
    %2369 = vmatprep.subr.mxu0 0.0
    %2370 = vmatpush2.msra.mxu0 0.0
    %2371 = vmatprep.subr.mxu0 0.0
    %2372 = vmatpush2.msra.mxu0 0.0
    %2373 = vmatprep.subr.mxu0 0.0
    %2374 = vmatpush2.msra.mxu0 0.0
    %2375 = vmatprep.subr.mxu0 0.0
    %2376 = vmatpush2.msra.mxu0 0.0
    %2377 = vmatprep.subr.mxu0 0.0
    %2378 = vmatpush2.msra.mxu0 0.0
    %2379 = vmatprep.subr.mxu0 0.0
    %2380 = vmatpush2.msra.mxu0 0.0
    %2381 = vmatprep.subr.mxu0 0.0
    %2382 = vmatpush2.msra.mxu0 0.0
    %2383 = vmatprep.subr.mxu0 0.0
    %2384 = vmatpush2.msra.mxu0 0.0
    %2385 = vmatprep.subr.mxu0 0.0
    %2386 = vmatpush2.msra.mxu0 0.0
    %2387 = vmatprep.subr.mxu0 0.0
    %2388 = vmatpush2.msra.mxu0 0.0
    %2389 = vmatprep.subr.mxu0 0.0
    %2390 = vmatpush2.msra.mxu0 0.0
    %2391 = vmatprep.subr.mxu0 0.0
    %2392 = vmatpush2.msra.mxu0 0.0
    %2393 = vmatprep.subr.mxu0 0.0
    %2394 = vmatpush2.msra.mxu0 0.0
    %2395 = vmatprep.subr.mxu0 0.0
    %2396 = vmatpush2.msra.mxu0 0.0
    %2397 = vmatprep.subr.mxu0 0.0
    %2398 = vmatpush2.msra.mxu0 0.0
    %2399 = vmatprep.subr.mxu0 0.0
    %2400 = vmatpush2.msra.mxu0 0.0
    %2401 = vmatprep.mubr.f32.mxu0 0.0
    %2402 = vmatmul.mubr.f32.gmra.mxu0 %v1955
    %v2403 = vpop.f32.mrf.mxu0
    %v2404 = vadd.f32 0.0, %v2403
    %v2405 = vpop.f32.mrf.mxu0
    %2406 = vdwg.mxu0
    %v2407 = vadd.f32 %v2320, %v2404
    %v2408 = vmul.f32 %v2231, 0.5
    %v2409 = vtanh.pop %v2408
    %v2410 = vmul.f32 %v2409, 0.5
    %v2411 = vadd.f32 %v2410, 0.5
    %v2412 = vmul.f32 %v2319, 0.5
    %v2413 = vtanh.pop %v2412
    %v2414 = vmul.f32 %v2413, 0.5
    %v2415 = vadd.f32 %v2414, 0.5
    %v2416 = vtanh.pop %v2407
    %v2417 = vmul.f32 %v2415, %v1861
    %v2418 = vmul.f32 %v2411, %v2416
    %v2419 = vadd.f32 %v2417, %v2418
    %v2420 = vld [vmem:[#allocation2 + $0x78] sm:$0xff]
    %v2421 = vld [vmem:[#allocation8] sm:$0xff]
    %v2422 = vld [vmem:[#allocation8 + $0x8] sm:$0xff]
    %v2423 = vld [vmem:[#allocation8 + $0x10] sm:$0xff]
    %v2424 = vld [vmem:[#allocation8 + $0x18] sm:$0xff]
    %v2425 = vld [vmem:[#allocation8 + $0x20] sm:$0xff]
    %v2426 = vld [vmem:[#allocation8 + $0x28] sm:$0xff]
    %v2427 = vld [vmem:[#allocation8 + $0x30] sm:$0xff]
    %v2428 = vld [vmem:[#allocation8 + $0x38] sm:$0xff]
    %v2429 = vld [vmem:[#allocation8 + $0x40] sm:$0xff]
    %v2430 = vld [vmem:[#allocation8 + $0x48] sm:$0xff]
    %v2431 = vld [vmem:[#allocation8 + $0x50] sm:$0xff]
    %v2432 = vld [vmem:[#allocation8 + $0x58] sm:$0xff]
    %v2433 = vld [vmem:[#allocation8 + $0x60] sm:$0xff]
    %v2434 = vld [vmem:[#allocation8 + $0x68] sm:$0xff]
    %v2435 = vld [vmem:[#allocation8 + $0x70] sm:$0xff]
    %v2436 = vld [vmem:[#allocation8 + $0x78] sm:$0xff]
    %2437 = vmatprep.subr.mxu0 0.0
    %2438 = vmatpush1.msra.mxu0 %v2436
    %2439 = vmatprep.subr.mxu0 0.0
    %2440 = vmatpush1.msra.mxu0 %v2435
    %2441 = vmatprep.subr.mxu0 0.0
    %2442 = vmatpush1.msra.mxu0 %v2434
    %2443 = vmatprep.subr.mxu0 0.0
    %2444 = vmatpush1.msra.mxu0 %v2433
    %2445 = vmatprep.subr.mxu0 0.0
    %2446 = vmatpush1.msra.mxu0 %v2432
    %2447 = vmatprep.subr.mxu0 0.0
    %2448 = vmatpush1.msra.mxu0 %v2431
    %2449 = vmatprep.subr.mxu0 0.0
    %2450 = vmatpush1.msra.mxu0 %v2430
    %2451 = vmatprep.subr.mxu0 0.0
    %2452 = vmatpush1.msra.mxu0 %v2429
    %2453 = vmatprep.subr.mxu0 0.0
    %2454 = vmatpush1.msra.mxu0 %v2428
    %2455 = vmatprep.subr.mxu0 0.0
    %2456 = vmatpush1.msra.mxu0 %v2427
    %2457 = vmatprep.subr.mxu0 0.0
    %2458 = vmatpush1.msra.mxu0 %v2426
    %2459 = vmatprep.subr.mxu0 0.0
    %2460 = vmatpush1.msra.mxu0 %v2425
    %2461 = vmatprep.subr.mxu0 0.0
    %2462 = vmatpush1.msra.mxu0 %v2424
    %2463 = vmatprep.subr.mxu0 0.0
    %2464 = vmatpush1.msra.mxu0 %v2423
    %2465 = vmatprep.subr.mxu0 0.0
    %2466 = vmatpush1.msra.mxu0 %v2422
    %2467 = vmatprep.subr.mxu0 0.0
    %2468 = vmatpush1.msra.mxu0 %v2421
    %2469 = vmatprep.subr.mxu0 0.0
    %2470 = vmatpush2.msra.mxu0 0.0
    %2471 = vmatprep.subr.mxu0 0.0
    %2472 = vmatpush2.msra.mxu0 0.0
    %2473 = vmatprep.subr.mxu0 0.0
    %2474 = vmatpush2.msra.mxu0 0.0
    %2475 = vmatprep.subr.mxu0 0.0
    %2476 = vmatpush2.msra.mxu0 0.0
    %2477 = vmatprep.subr.mxu0 0.0
    %2478 = vmatpush2.msra.mxu0 0.0
    %2479 = vmatprep.subr.mxu0 0.0
    %2480 = vmatpush2.msra.mxu0 0.0
    %2481 = vmatprep.subr.mxu0 0.0
    %2482 = vmatpush2.msra.mxu0 0.0
    %2483 = vmatprep.subr.mxu0 0.0
    %2484 = vmatpush2.msra.mxu0 0.0
    %2485 = vmatprep.subr.mxu0 0.0
    %2486 = vmatpush2.msra.mxu0 0.0
    %2487 = vmatprep.subr.mxu0 0.0
    %2488 = vmatpush2.msra.mxu0 0.0
    %2489 = vmatprep.subr.mxu0 0.0
    %2490 = vmatpush2.msra.mxu0 0.0
    %2491 = vmatprep.subr.mxu0 0.0
    %2492 = vmatpush2.msra.mxu0 0.0
    %2493 = vmatprep.subr.mxu0 0.0
    %2494 = vmatpush2.msra.mxu0 0.0
    %2495 = vmatprep.subr.mxu0 0.0
    %2496 = vmatpush2.msra.mxu0 0.0
    %2497 = vmatprep.subr.mxu0 0.0
    %2498 = vmatpush2.msra.mxu0 0.0
    %2499 = vmatprep.subr.mxu0 0.0
    %2500 = vmatpush2.msra.mxu0 0.0
    %2501 = vmatprep.mubr.f32.mxu0 0.0
    %2502 = vmatmul.mubr.f32.gmra.mxu0 %v1955
    %v2503 = vpop.f32.mrf.mxu0
    %v2504 = vadd.f32 0.0, %v2503
    %v2505 = vpop.f32.mrf.mxu0
    %2506 = vdwg.mxu0
    %v2507 = vadd.f32 %v2420, %v2504
    %v2508 = vmul.f32 %v2507, 0.5
    %v2509 = vtanh.pop %v2508
    %v2510 = vmul.f32 %v2509, 0.5
    %v2511 = vadd.f32 %v2510, 0.5
    %v2512 = vtanh.pop %v2419
    %v2513 = vmul.f32 %v2511, %v2512
    %v2514 = vld [vmem:[#allocation10] sm:$0xff]
    %v2515 = vld [vmem:[#allocation10 + $0x8] sm:$0xff]
    %v2516 = vld [vmem:[#allocation10 + $0x10] sm:$0xff]
    %v2517 = vld [vmem:[#allocation10 + $0x18] sm:$0xff]
    %v2518 = vld [vmem:[#allocation10 + $0x20] sm:$0xff]
    %v2519 = vld [vmem:[#allocation10 + $0x28] sm:$0xff]
    %v2520 = vld [vmem:[#allocation10 + $0x30] sm:$0xff]
    %v2521 = vld [vmem:[#allocation10 + $0x38] sm:$0xff]
    %v2522 = vld [vmem:[#allocation10 + $0x40] sm:$0xff]
    %v2523 = vld [vmem:[#allocation10 + $0x48] sm:$0xff]
    %v2524 = vld [vmem:[#allocation10 + $0x50] sm:$0xff]
    %v2525 = vld [vmem:[#allocation10 + $0x58] sm:$0xff]
    %v2526 = vld [vmem:[#allocation10 + $0x60] sm:$0xff]
    %v2527 = vld [vmem:[#allocation10 + $0x68] sm:$0xff]
    %v2528 = vld [vmem:[#allocation10 + $0x70] sm:$0xff]
    %v2529 = vld [vmem:[#allocation10 + $0x78] sm:$0xff]
    %v2530 = vld [vmem:[%s10] sm:$0x1]
    %v2532 = vlaneseq
    %v2533 = vshrl.u32 %v2532, 7
    %v2534 = vsub.s32 0, %v2533
    %v2535 = vrot.slane %v2530, %v2534
    %2537 = vmatprep.subr.mxu0 0.0
    %2538 = vmatpush1.msra.mxu0 %v2529
    %2539 = vmatprep.subr.mxu0 0.0
    %2540 = vmatpush1.msra.mxu0 %v2528
    %2541 = vmatprep.subr.mxu0 0.0
    %2542 = vmatpush1.msra.mxu0 %v2527
    %2543 = vmatprep.subr.mxu0 0.0
    %2544 = vmatpush1.msra.mxu0 %v2526
    %2545 = vmatprep.subr.mxu0 0.0
    %2546 = vmatpush1.msra.mxu0 %v2525
    %2547 = vmatprep.subr.mxu0 0.0
    %2548 = vmatpush1.msra.mxu0 %v2524
    %2549 = vmatprep.subr.mxu0 0.0
    %2550 = vmatpush1.msra.mxu0 %v2523
    %2551 = vmatprep.subr.mxu0 0.0
    %2552 = vmatpush1.msra.mxu0 %v2522
    %2553 = vmatprep.subr.mxu0 0.0
    %2554 = vmatpush1.msra.mxu0 %v2521
    %2555 = vmatprep.subr.mxu0 0.0
    %2556 = vmatpush1.msra.mxu0 %v2520
    %2557 = vmatprep.subr.mxu0 0.0
    %2558 = vmatpush1.msra.mxu0 %v2519
    %2559 = vmatprep.subr.mxu0 0.0
    %2560 = vmatpush1.msra.mxu0 %v2518
    %2561 = vmatprep.subr.mxu0 0.0
    %2562 = vmatpush1.msra.mxu0 %v2517
    %2563 = vmatprep.subr.mxu0 0.0
    %2564 = vmatpush1.msra.mxu0 %v2516
    %2565 = vmatprep.subr.mxu0 0.0
    %2566 = vmatpush1.msra.mxu0 %v2515
    %2567 = vmatprep.subr.mxu0 0.0
    %2568 = vmatpush1.msra.mxu0 %v2514
    %2569 = vmatprep.subr.mxu0 0.0
    %2570 = vmatpush2.msra.mxu0 0.0
    %2571 = vmatprep.subr.mxu0 0.0
    %2572 = vmatpush2.msra.mxu0 0.0
    %2573 = vmatprep.subr.mxu0 0.0
    %2574 = vmatpush2.msra.mxu0 0.0
    %2575 = vmatprep.subr.mxu0 0.0
    %2576 = vmatpush2.msra.mxu0 0.0
    %2577 = vmatprep.subr.mxu0 0.0
    %2578 = vmatpush2.msra.mxu0 0.0
    %2579 = vmatprep.subr.mxu0 0.0
    %2580 = vmatpush2.msra.mxu0 0.0
    %2581 = vmatprep.subr.mxu0 0.0
    %2582 = vmatpush2.msra.mxu0 0.0
    %2583 = vmatprep.subr.mxu0 0.0
    %2584 = vmatpush2.msra.mxu0 0.0
    %2585 = vmatprep.subr.mxu0 0.0
    %2586 = vmatpush2.msra.mxu0 0.0
    %2587 = vmatprep.subr.mxu0 0.0
    %2588 = vmatpush2.msra.mxu0 0.0
    %2589 = vmatprep.subr.mxu0 0.0
    %2590 = vmatpush2.msra.mxu0 0.0
    %2591 = vmatprep.subr.mxu0 0.0
    %2592 = vmatpush2.msra.mxu0 0.0
    %2593 = vmatprep.subr.mxu0 0.0
    %2594 = vmatpush2.msra.mxu0 0.0
    %2595 = vmatprep.subr.mxu0 0.0
    %2596 = vmatpush2.msra.mxu0 0.0
    %2597 = vmatprep.subr.mxu0 0.0
    %2598 = vmatpush2.msra.mxu0 0.0
    %2599 = vmatprep.subr.mxu0 0.0
    %2600 = vmatpush2.msra.mxu0 0.0
    %2601 = vmatprep.mubr.f32.mxu0 0.0
    %2602 = vmatmul.mubr.f32.gmra.mxu0 %v2513
    %v2603 = vpop.f32.mrf.mxu0
    %v2604 = vadd.f32 %v2535, %v2603
    %v2605 = vpop.f32.mrf.mxu0
    %2606 = vdwg.mxu0
    %v2607 = vtanh.pop %v2604
    %v2608 = vld [vmem:[#allocation11] sm:$0xff]
    %v2609 = vld [vmem:[#allocation11 + $0x8] sm:$0xff]
    %v2610 = vld [vmem:[#allocation11 + $0x10] sm:$0xff]
    %v2611 = vld [vmem:[#allocation11 + $0x18] sm:$0xff]
    %v2612 = vld [vmem:[#allocation11 + $0x20] sm:$0xff]
    %v2613 = vld [vmem:[#allocation11 + $0x28] sm:$0xff]
    %v2614 = vld [vmem:[#allocation11 + $0x30] sm:$0xff]
    %v2615 = vld [vmem:[#allocation11 + $0x38] sm:$0xff]
    %v2616 = vld [vmem:[#allocation11 + $0x40] sm:$0xff]
    %v2617 = vld [vmem:[#allocation11 + $0x48] sm:$0xff]
    %v2618 = vld [vmem:[#allocation11 + $0x50] sm:$0xff]
    %v2619 = vld [vmem:[#allocation11 + $0x58] sm:$0xff]
    %v2620 = vld [vmem:[#allocation11 + $0x60] sm:$0xff]
    %v2621 = vld [vmem:[#allocation11 + $0x68] sm:$0xff]
    %v2622 = vld [vmem:[#allocation11 + $0x70] sm:$0xff]
    %v2623 = vld [vmem:[#allocation11 + $0x78] sm:$0xff]
    %v2624 = vld [vmem:[%s12] sm:$0x1]
    %v2626 = vlaneseq
    %v2627 = vshrl.u32 %v2626, 7
    %v2628 = vsub.s32 0, %v2627
    %v2629 = vrot.slane %v2624, %v2628
    %2631 = vmatprep.subr.mxu0 0.0
    %2632 = vmatpush1.msra.mxu0 %v2623
    %2633 = vmatprep.subr.mxu0 0.0
    %2634 = vmatpush1.msra.mxu0 %v2622
    %2635 = vmatprep.subr.mxu0 0.0
    %2636 = vmatpush1.msra.mxu0 %v2621
    %2637 = vmatprep.subr.mxu0 0.0
    %2638 = vmatpush1.msra.mxu0 %v2620
    %2639 = vmatprep.subr.mxu0 0.0
    %2640 = vmatpush1.msra.mxu0 %v2619
    %2641 = vmatprep.subr.mxu0 0.0
    %2642 = vmatpush1.msra.mxu0 %v2618
    %2643 = vmatprep.subr.mxu0 0.0
    %2644 = vmatpush1.msra.mxu0 %v2617
    %2645 = vmatprep.subr.mxu0 0.0
    %2646 = vmatpush1.msra.mxu0 %v2616
    %2647 = vmatprep.subr.mxu0 0.0
    %2648 = vmatpush1.msra.mxu0 %v2615
    %2649 = vmatprep.subr.mxu0 0.0
    %2650 = vmatpush1.msra.mxu0 %v2614
    %2651 = vmatprep.subr.mxu0 0.0
    %2652 = vmatpush1.msra.mxu0 %v2613
    %2653 = vmatprep.subr.mxu0 0.0
    %2654 = vmatpush1.msra.mxu0 %v2612
    %2655 = vmatprep.subr.mxu0 0.0
    %2656 = vmatpush1.msra.mxu0 %v2611
    %2657 = vmatprep.subr.mxu0 0.0
    %2658 = vmatpush1.msra.mxu0 %v2610
    %2659 = vmatprep.subr.mxu0 0.0
    %2660 = vmatpush1.msra.mxu0 %v2609
    %2661 = vmatprep.subr.mxu0 0.0
    %2662 = vmatpush1.msra.mxu0 %v2608
    %2663 = vmatprep.subr.mxu0 0.0
    %2664 = vmatpush2.msra.mxu0 0.0
    %2665 = vmatprep.subr.mxu0 0.0
    %2666 = vmatpush2.msra.mxu0 0.0
    %2667 = vmatprep.subr.mxu0 0.0
    %2668 = vmatpush2.msra.mxu0 0.0
    %2669 = vmatprep.subr.mxu0 0.0
    %2670 = vmatpush2.msra.mxu0 0.0
    %2671 = vmatprep.subr.mxu0 0.0
    %2672 = vmatpush2.msra.mxu0 0.0
    %2673 = vmatprep.subr.mxu0 0.0
    %2674 = vmatpush2.msra.mxu0 0.0
    %2675 = vmatprep.subr.mxu0 0.0
    %2676 = vmatpush2.msra.mxu0 0.0
    %2677 = vmatprep.subr.mxu0 0.0
    %2678 = vmatpush2.msra.mxu0 0.0
    %2679 = vmatprep.subr.mxu0 0.0
    %2680 = vmatpush2.msra.mxu0 0.0
    %2681 = vmatprep.subr.mxu0 0.0
    %2682 = vmatpush2.msra.mxu0 0.0
    %2683 = vmatprep.subr.mxu0 0.0
    %2684 = vmatpush2.msra.mxu0 0.0
    %2685 = vmatprep.subr.mxu0 0.0
    %2686 = vmatpush2.msra.mxu0 0.0
    %2687 = vmatprep.subr.mxu0 0.0
    %2688 = vmatpush2.msra.mxu0 0.0
    %2689 = vmatprep.subr.mxu0 0.0
    %2690 = vmatpush2.msra.mxu0 0.0
    %2691 = vmatprep.subr.mxu0 0.0
    %2692 = vmatpush2.msra.mxu0 0.0
    %2693 = vmatprep.subr.mxu0 0.0
    %2694 = vmatpush2.msra.mxu0 0.0
    %2695 = vmatprep.mubr.f32.mxu0 0.0
    %2696 = vmatmul.mubr.f32.gmra.mxu0 %v2607
    %v2697 = vpop.f32.mrf.mxu0
    %v2698 = vadd.f32 %v2629, %v2697
    %v2699 = vpop.f32.mrf.mxu0
    %2700 = vdwg.mxu0
    %2701 = vst [vmem:[%s13 + $0x18] sm:$0xff] %v2698
    %v2702 = vld [vmem:[#allocation2 + $0x80] sm:$0xff]
    %v2703 = vld [vmem:[%s5] sm:$0xff]
    %v2704 = vld [vmem:[%s5 + $0x8] sm:$0xff]
    %v2705 = vld [vmem:[%s5 + $0x10] sm:$0xff]
    %v2706 = vld [vmem:[%s5 + $0x18] sm:$0xff]
    %v2707 = vld [vmem:[%s5 + $0x20] sm:$0xff]
    %v2708 = vld [vmem:[%s5 + $0x28] sm:$0xff]
    %v2709 = vld [vmem:[%s5 + $0x30] sm:$0xff]
    %v2710 = vld [vmem:[%s5 + $0x38] sm:$0xff]
    %v2711 = vld [vmem:[%s5 + $0x40] sm:$0xff]
    %v2712 = vld [vmem:[%s5 + $0x48] sm:$0xff]
    %v2713 = vld [vmem:[%s5 + $0x50] sm:$0xff]
    %v2714 = vld [vmem:[%s5 + $0x58] sm:$0xff]
    %v2715 = vld [vmem:[%s5 + $0x60] sm:$0xff]
    %v2716 = vld [vmem:[%s5 + $0x68] sm:$0xff]
    %v2717 = vld [vmem:[%s5 + $0x70] sm:$0xff]
    %v2718 = vld [vmem:[%s5 + $0x78] sm:$0xff]
    %2719 = vmatprep.subr.mxu0 0.0
    %2720 = vmatpush1.msra.mxu0 %v2718
    %2721 = vmatprep.subr.mxu0 0.0
    %2722 = vmatpush1.msra.mxu0 %v2717
    %2723 = vmatprep.subr.mxu0 0.0
    %2724 = vmatpush1.msra.mxu0 %v2716
    %2725 = vmatprep.subr.mxu0 0.0
    %2726 = vmatpush1.msra.mxu0 %v2715
    %2727 = vmatprep.subr.mxu0 0.0
    %2728 = vmatpush1.msra.mxu0 %v2714
    %2729 = vmatprep.subr.mxu0 0.0
    %2730 = vmatpush1.msra.mxu0 %v2713
    %2731 = vmatprep.subr.mxu0 0.0
    %2732 = vmatpush1.msra.mxu0 %v2712
    %2733 = vmatprep.subr.mxu0 0.0
    %2734 = vmatpush1.msra.mxu0 %v2711
    %2735 = vmatprep.subr.mxu0 0.0
    %2736 = vmatpush1.msra.mxu0 %v2710
    %2737 = vmatprep.subr.mxu0 0.0
    %2738 = vmatpush1.msra.mxu0 %v2709
    %2739 = vmatprep.subr.mxu0 0.0
    %2740 = vmatpush1.msra.mxu0 %v2708
    %2741 = vmatprep.subr.mxu0 0.0
    %2742 = vmatpush1.msra.mxu0 %v2707
    %2743 = vmatprep.subr.mxu0 0.0
    %2744 = vmatpush1.msra.mxu0 %v2706
    %2745 = vmatprep.subr.mxu0 0.0
    %2746 = vmatpush1.msra.mxu0 %v2705
    %2747 = vmatprep.subr.mxu0 0.0
    %2748 = vmatpush1.msra.mxu0 %v2704
    %2749 = vmatprep.subr.mxu0 0.0
    %2750 = vmatpush1.msra.mxu0 %v2703
    %2751 = vmatprep.subr.mxu0 0.0
    %2752 = vmatpush2.msra.mxu0 0.0
    %2753 = vmatprep.subr.mxu0 0.0
    %2754 = vmatpush2.msra.mxu0 0.0
    %2755 = vmatprep.subr.mxu0 0.0
    %2756 = vmatpush2.msra.mxu0 0.0
    %2757 = vmatprep.subr.mxu0 0.0
    %2758 = vmatpush2.msra.mxu0 0.0
    %2759 = vmatprep.subr.mxu0 0.0
    %2760 = vmatpush2.msra.mxu0 0.0
    %2761 = vmatprep.subr.mxu0 0.0
    %2762 = vmatpush2.msra.mxu0 0.0
    %2763 = vmatprep.subr.mxu0 0.0
    %2764 = vmatpush2.msra.mxu0 0.0
    %2765 = vmatprep.subr.mxu0 0.0
    %2766 = vmatpush2.msra.mxu0 0.0
    %2767 = vmatprep.subr.mxu0 0.0
    %2768 = vmatpush2.msra.mxu0 0.0
    %2769 = vmatprep.subr.mxu0 0.0
    %2770 = vmatpush2.msra.mxu0 0.0
    %2771 = vmatprep.subr.mxu0 0.0
    %2772 = vmatpush2.msra.mxu0 0.0
    %2773 = vmatprep.subr.mxu0 0.0
    %2774 = vmatpush2.msra.mxu0 0.0
    %2775 = vmatprep.subr.mxu0 0.0
    %2776 = vmatpush2.msra.mxu0 0.0
    %2777 = vmatprep.subr.mxu0 0.0
    %2778 = vmatpush2.msra.mxu0 0.0
    %2779 = vmatprep.subr.mxu0 0.0
    %2780 = vmatpush2.msra.mxu0 0.0
    %2781 = vmatprep.subr.mxu0 0.0
    %2782 = vmatpush2.msra.mxu0 0.0
    %2783 = vmatprep.mubr.f32.mxu0 0.0
    %2784 = vmatmul.mubr.f32.gmra.mxu0 %v2513
    %v2785 = vpop.f32.mrf.mxu0
    %v2786 = vadd.f32 0.0, %v2785
    %v2787 = vpop.f32.mrf.mxu0
    %2788 = vdwg.mxu0
    %v2789 = vadd.f32 %v2702, %v2786
    %v2790 = vld [vmem:[#allocation2 + $0x88] sm:$0xff]
    %v2791 = vld [vmem:[#allocation5] sm:$0xff]
    %v2792 = vld [vmem:[#allocation5 + $0x8] sm:$0xff]
    %v2793 = vld [vmem:[#allocation5 + $0x10] sm:$0xff]
    %v2794 = vld [vmem:[#allocation5 + $0x18] sm:$0xff]
    %v2795 = vld [vmem:[#allocation5 + $0x20] sm:$0xff]
    %v2796 = vld [vmem:[#allocation5 + $0x28] sm:$0xff]
    %v2797 = vld [vmem:[#allocation5 + $0x30] sm:$0xff]
    %v2798 = vld [vmem:[#allocation5 + $0x38] sm:$0xff]
    %v2799 = vld [vmem:[#allocation5 + $0x40] sm:$0xff]
    %v2800 = vld [vmem:[#allocation5 + $0x48] sm:$0xff]
    %v2801 = vld [vmem:[#allocation5 + $0x50] sm:$0xff]
    %v2802 = vld [vmem:[#allocation5 + $0x58] sm:$0xff]
    %v2803 = vld [vmem:[#allocation5 + $0x60] sm:$0xff]
    %v2804 = vld [vmem:[#allocation5 + $0x68] sm:$0xff]
    %v2805 = vld [vmem:[#allocation5 + $0x70] sm:$0xff]
    %v2806 = vld [vmem:[#allocation5 + $0x78] sm:$0xff]
    %2807 = vmatprep.subr.mxu0 0.0
    %2808 = vmatpush1.msra.mxu0 %v2806
    %2809 = vmatprep.subr.mxu0 0.0
    %2810 = vmatpush1.msra.mxu0 %v2805
    %2811 = vmatprep.subr.mxu0 0.0
    %2812 = vmatpush1.msra.mxu0 %v2804
    %2813 = vmatprep.subr.mxu0 0.0
    %2814 = vmatpush1.msra.mxu0 %v2803
    %2815 = vmatprep.subr.mxu0 0.0
    %2816 = vmatpush1.msra.mxu0 %v2802
    %2817 = vmatprep.subr.mxu0 0.0
    %2818 = vmatpush1.msra.mxu0 %v2801
    %2819 = vmatprep.subr.mxu0 0.0
    %2820 = vmatpush1.msra.mxu0 %v2800
    %2821 = vmatprep.subr.mxu0 0.0
    %2822 = vmatpush1.msra.mxu0 %v2799
    %2823 = vmatprep.subr.mxu0 0.0
    %2824 = vmatpush1.msra.mxu0 %v2798
    %2825 = vmatprep.subr.mxu0 0.0
    %2826 = vmatpush1.msra.mxu0 %v2797
    %2827 = vmatprep.subr.mxu0 0.0
    %2828 = vmatpush1.msra.mxu0 %v2796
    %2829 = vmatprep.subr.mxu0 0.0
    %2830 = vmatpush1.msra.mxu0 %v2795
    %2831 = vmatprep.subr.mxu0 0.0
    %2832 = vmatpush1.msra.mxu0 %v2794
    %2833 = vmatprep.subr.mxu0 0.0
    %2834 = vmatpush1.msra.mxu0 %v2793
    %2835 = vmatprep.subr.mxu0 0.0
    %2836 = vmatpush1.msra.mxu0 %v2792
    %2837 = vmatprep.subr.mxu0 0.0
    %2838 = vmatpush1.msra.mxu0 %v2791
    %2839 = vmatprep.subr.mxu0 0.0
    %2840 = vmatpush2.msra.mxu0 0.0
    %2841 = vmatprep.subr.mxu0 0.0
    %2842 = vmatpush2.msra.mxu0 0.0
    %2843 = vmatprep.subr.mxu0 0.0
    %2844 = vmatpush2.msra.mxu0 0.0
    %2845 = vmatprep.subr.mxu0 0.0
    %2846 = vmatpush2.msra.mxu0 0.0
    %2847 = vmatprep.subr.mxu0 0.0
    %2848 = vmatpush2.msra.mxu0 0.0
    %2849 = vmatprep.subr.mxu0 0.0
    %2850 = vmatpush2.msra.mxu0 0.0
    %2851 = vmatprep.subr.mxu0 0.0
    %2852 = vmatpush2.msra.mxu0 0.0
    %2853 = vmatprep.subr.mxu0 0.0
    %2854 = vmatpush2.msra.mxu0 0.0
    %2855 = vmatprep.subr.mxu0 0.0
    %2856 = vmatpush2.msra.mxu0 0.0
    %2857 = vmatprep.subr.mxu0 0.0
    %2858 = vmatpush2.msra.mxu0 0.0
    %2859 = vmatprep.subr.mxu0 0.0
    %2860 = vmatpush2.msra.mxu0 0.0
    %2861 = vmatprep.subr.mxu0 0.0
    %2862 = vmatpush2.msra.mxu0 0.0
    %2863 = vmatprep.subr.mxu0 0.0
    %2864 = vmatpush2.msra.mxu0 0.0
    %2865 = vmatprep.subr.mxu0 0.0
    %2866 = vmatpush2.msra.mxu0 0.0
    %2867 = vmatprep.subr.mxu0 0.0
    %2868 = vmatpush2.msra.mxu0 0.0
    %2869 = vmatprep.subr.mxu0 0.0
    %2870 = vmatpush2.msra.mxu0 0.0
    %2871 = vmatprep.mubr.f32.mxu0 0.0
    %2872 = vmatmul.mubr.f32.gmra.mxu0 %v2513
    %v2873 = vpop.f32.mrf.mxu0
    %v2874 = vadd.f32 0.0, %v2873
    %v2875 = vpop.f32.mrf.mxu0
    %2876 = vdwg.mxu0
    %v2877 = vadd.f32 %v2790, %v2874
    %v2878 = vld [vmem:[#allocation2 + $0x90] sm:$0xff]
    %v2879 = vld [vmem:[#allocation7] sm:$0xff]
    %v2880 = vld [vmem:[#allocation7 + $0x8] sm:$0xff]
    %v2881 = vld [vmem:[#allocation7 + $0x10] sm:$0xff]
    %v2882 = vld [vmem:[#allocation7 + $0x18] sm:$0xff]
    %v2883 = vld [vmem:[#allocation7 + $0x20] sm:$0xff]
    %v2884 = vld [vmem:[#allocation7 + $0x28] sm:$0xff]
    %v2885 = vld [vmem:[#allocation7 + $0x30] sm:$0xff]
    %v2886 = vld [vmem:[#allocation7 + $0x38] sm:$0xff]
    %v2887 = vld [vmem:[#allocation7 + $0x40] sm:$0xff]
    %v2888 = vld [vmem:[#allocation7 + $0x48] sm:$0xff]
    %v2889 = vld [vmem:[#allocation7 + $0x50] sm:$0xff]
    %v2890 = vld [vmem:[#allocation7 + $0x58] sm:$0xff]
    %v2891 = vld [vmem:[#allocation7 + $0x60] sm:$0xff]
    %v2892 = vld [vmem:[#allocation7 + $0x68] sm:$0xff]
    %v2893 = vld [vmem:[#allocation7 + $0x70] sm:$0xff]
    %v2894 = vld [vmem:[#allocation7 + $0x78] sm:$0xff]
    %2895 = vmatprep.subr.mxu0 0.0
    %2896 = vmatpush1.msra.mxu0 %v2894
    %2897 = vmatprep.subr.mxu0 0.0
    %2898 = vmatpush1.msra.mxu0 %v2893
    %2899 = vmatprep.subr.mxu0 0.0
    %2900 = vmatpush1.msra.mxu0 %v2892
    %2901 = vmatprep.subr.mxu0 0.0
    %2902 = vmatpush1.msra.mxu0 %v2891
    %2903 = vmatprep.subr.mxu0 0.0
    %2904 = vmatpush1.msra.mxu0 %v2890
    %2905 = vmatprep.subr.mxu0 0.0
    %2906 = vmatpush1.msra.mxu0 %v2889
    %2907 = vmatprep.subr.mxu0 0.0
    %2908 = vmatpush1.msra.mxu0 %v2888
    %2909 = vmatprep.subr.mxu0 0.0
    %2910 = vmatpush1.msra.mxu0 %v2887
    %2911 = vmatprep.subr.mxu0 0.0
    %2912 = vmatpush1.msra.mxu0 %v2886
    %2913 = vmatprep.subr.mxu0 0.0
    %2914 = vmatpush1.msra.mxu0 %v2885
    %2915 = vmatprep.subr.mxu0 0.0
    %2916 = vmatpush1.msra.mxu0 %v2884
    %2917 = vmatprep.subr.mxu0 0.0
    %2918 = vmatpush1.msra.mxu0 %v2883
    %2919 = vmatprep.subr.mxu0 0.0
    %2920 = vmatpush1.msra.mxu0 %v2882
    %2921 = vmatprep.subr.mxu0 0.0
    %2922 = vmatpush1.msra.mxu0 %v2881
    %2923 = vmatprep.subr.mxu0 0.0
    %2924 = vmatpush1.msra.mxu0 %v2880
    %2925 = vmatprep.subr.mxu0 0.0
    %2926 = vmatpush1.msra.mxu0 %v2879
    %2927 = vmatprep.subr.mxu0 0.0
    %2928 = vmatpush2.msra.mxu0 0.0
    %2929 = vmatprep.subr.mxu0 0.0
    %2930 = vmatpush2.msra.mxu0 0.0
    %2931 = vmatprep.subr.mxu0 0.0
    %2932 = vmatpush2.msra.mxu0 0.0
    %2933 = vmatprep.subr.mxu0 0.0
    %2934 = vmatpush2.msra.mxu0 0.0
    %2935 = vmatprep.subr.mxu0 0.0
    %2936 = vmatpush2.msra.mxu0 0.0
    %2937 = vmatprep.subr.mxu0 0.0
    %2938 = vmatpush2.msra.mxu0 0.0
    %2939 = vmatprep.subr.mxu0 0.0
    %2940 = vmatpush2.msra.mxu0 0.0
    %2941 = vmatprep.subr.mxu0 0.0
    %2942 = vmatpush2.msra.mxu0 0.0
    %2943 = vmatprep.subr.mxu0 0.0
    %2944 = vmatpush2.msra.mxu0 0.0
    %2945 = vmatprep.subr.mxu0 0.0
    %2946 = vmatpush2.msra.mxu0 0.0
    %2947 = vmatprep.subr.mxu0 0.0
    %2948 = vmatpush2.msra.mxu0 0.0
    %2949 = vmatprep.subr.mxu0 0.0
    %2950 = vmatpush2.msra.mxu0 0.0
    %2951 = vmatprep.subr.mxu0 0.0
    %2952 = vmatpush2.msra.mxu0 0.0
    %2953 = vmatprep.subr.mxu0 0.0
    %2954 = vmatpush2.msra.mxu0 0.0
    %2955 = vmatprep.subr.mxu0 0.0
    %2956 = vmatpush2.msra.mxu0 0.0
    %2957 = vmatprep.subr.mxu0 0.0
    %2958 = vmatpush2.msra.mxu0 0.0
    %2959 = vmatprep.mubr.f32.mxu0 0.0
    %2960 = vmatmul.mubr.f32.gmra.mxu0 %v2513
    %v2961 = vpop.f32.mrf.mxu0
    %v2962 = vadd.f32 0.0, %v2961
    %v2963 = vpop.f32.mrf.mxu0
    %2964 = vdwg.mxu0
    %v2965 = vadd.f32 %v2878, %v2962
    %v2966 = vmul.f32 %v2789, 0.5
    %v2967 = vtanh.pop %v2966
    %v2968 = vmul.f32 %v2967, 0.5
    %v2969 = vadd.f32 %v2968, 0.5
    %v2970 = vmul.f32 %v2877, 0.5
    %v2971 = vtanh.pop %v2970
    %v2972 = vmul.f32 %v2971, 0.5
    %v2973 = vadd.f32 %v2972, 0.5
    %v2974 = vtanh.pop %v2965
    %v2975 = vmul.f32 %v2973, %v2419
    %v2976 = vmul.f32 %v2969, %v2974
    %v2977 = vadd.f32 %v2975, %v2976
    %v2978 = vld [vmem:[#allocation2 + $0x98] sm:$0xff]
    %v2979 = vld [vmem:[#allocation8] sm:$0xff]
    %v2980 = vld [vmem:[#allocation8 + $0x8] sm:$0xff]
    %v2981 = vld [vmem:[#allocation8 + $0x10] sm:$0xff]
    %v2982 = vld [vmem:[#allocation8 + $0x18] sm:$0xff]
    %v2983 = vld [vmem:[#allocation8 + $0x20] sm:$0xff]
    %v2984 = vld [vmem:[#allocation8 + $0x28] sm:$0xff]
    %v2985 = vld [vmem:[#allocation8 + $0x30] sm:$0xff]
    %v2986 = vld [vmem:[#allocation8 + $0x38] sm:$0xff]
    %v2987 = vld [vmem:[#allocation8 + $0x40] sm:$0xff]
    %v2988 = vld [vmem:[#allocation8 + $0x48] sm:$0xff]
    %v2989 = vld [vmem:[#allocation8 + $0x50] sm:$0xff]
    %v2990 = vld [vmem:[#allocation8 + $0x58] sm:$0xff]
    %v2991 = vld [vmem:[#allocation8 + $0x60] sm:$0xff]
    %v2992 = vld [vmem:[#allocation8 + $0x68] sm:$0xff]
    %v2993 = vld [vmem:[#allocation8 + $0x70] sm:$0xff]
    %v2994 = vld [vmem:[#allocation8 + $0x78] sm:$0xff]
    %2995 = vmatprep.subr.mxu0 0.0
    %2996 = vmatpush1.msra.mxu0 %v2994
    %2997 = vmatprep.subr.mxu0 0.0
    %2998 = vmatpush1.msra.mxu0 %v2993
    %2999 = vmatprep.subr.mxu0 0.0
    %3000 = vmatpush1.msra.mxu0 %v2992
    %3001 = vmatprep.subr.mxu0 0.0
    %3002 = vmatpush1.msra.mxu0 %v2991
    %3003 = vmatprep.subr.mxu0 0.0
    %3004 = vmatpush1.msra.mxu0 %v2990
    %3005 = vmatprep.subr.mxu0 0.0
    %3006 = vmatpush1.msra.mxu0 %v2989
    %3007 = vmatprep.subr.mxu0 0.0
    %3008 = vmatpush1.msra.mxu0 %v2988
    %3009 = vmatprep.subr.mxu0 0.0
    %3010 = vmatpush1.msra.mxu0 %v2987
    %3011 = vmatprep.subr.mxu0 0.0
    %3012 = vmatpush1.msra.mxu0 %v2986
    %3013 = vmatprep.subr.mxu0 0.0
    %3014 = vmatpush1.msra.mxu0 %v2985
    %3015 = vmatprep.subr.mxu0 0.0
    %3016 = vmatpush1.msra.mxu0 %v2984
    %3017 = vmatprep.subr.mxu0 0.0
    %3018 = vmatpush1.msra.mxu0 %v2983
    %3019 = vmatprep.subr.mxu0 0.0
    %3020 = vmatpush1.msra.mxu0 %v2982
    %3021 = vmatprep.subr.mxu0 0.0
    %3022 = vmatpush1.msra.mxu0 %v2981
    %3023 = vmatprep.subr.mxu0 0.0
    %3024 = vmatpush1.msra.mxu0 %v2980
    %3025 = vmatprep.subr.mxu0 0.0
    %3026 = vmatpush1.msra.mxu0 %v2979
    %3027 = vmatprep.subr.mxu0 0.0
    %3028 = vmatpush2.msra.mxu0 0.0
    %3029 = vmatprep.subr.mxu0 0.0
    %3030 = vmatpush2.msra.mxu0 0.0
    %3031 = vmatprep.subr.mxu0 0.0
    %3032 = vmatpush2.msra.mxu0 0.0
    %3033 = vmatprep.subr.mxu0 0.0
    %3034 = vmatpush2.msra.mxu0 0.0
    %3035 = vmatprep.subr.mxu0 0.0
    %3036 = vmatpush2.msra.mxu0 0.0
    %3037 = vmatprep.subr.mxu0 0.0
    %3038 = vmatpush2.msra.mxu0 0.0
    %3039 = vmatprep.subr.mxu0 0.0
    %3040 = vmatpush2.msra.mxu0 0.0
    %3041 = vmatprep.subr.mxu0 0.0
    %3042 = vmatpush2.msra.mxu0 0.0
    %3043 = vmatprep.subr.mxu0 0.0
    %3044 = vmatpush2.msra.mxu0 0.0
    %3045 = vmatprep.subr.mxu0 0.0
    %3046 = vmatpush2.msra.mxu0 0.0
    %3047 = vmatprep.subr.mxu0 0.0
    %3048 = vmatpush2.msra.mxu0 0.0
    %3049 = vmatprep.subr.mxu0 0.0
    %3050 = vmatpush2.msra.mxu0 0.0
    %3051 = vmatprep.subr.mxu0 0.0
    %3052 = vmatpush2.msra.mxu0 0.0
    %3053 = vmatprep.subr.mxu0 0.0
    %3054 = vmatpush2.msra.mxu0 0.0
    %3055 = vmatprep.subr.mxu0 0.0
    %3056 = vmatpush2.msra.mxu0 0.0
    %3057 = vmatprep.subr.mxu0 0.0
    %3058 = vmatpush2.msra.mxu0 0.0
    %3059 = vmatprep.mubr.f32.mxu0 0.0
    %3060 = vmatmul.mubr.f32.gmra.mxu0 %v2513
    %v3061 = vpop.f32.mrf.mxu0
    %v3062 = vadd.f32 0.0, %v3061
    %v3063 = vpop.f32.mrf.mxu0
    %3064 = vdwg.mxu0
    %v3065 = vadd.f32 %v2978, %v3062
    %v3066 = vmul.f32 %v3065, 0.5
    %v3067 = vtanh.pop %v3066
    %v3068 = vmul.f32 %v3067, 0.5
    %v3069 = vadd.f32 %v3068, 0.5
    %v3070 = vtanh.pop %v2977
    %v3071 = vmul.f32 %v3069, %v3070
    %v3072 = vld [vmem:[#allocation10] sm:$0xff]
    %v3073 = vld [vmem:[#allocation10 + $0x8] sm:$0xff]
    %v3074 = vld [vmem:[#allocation10 + $0x10] sm:$0xff]
    %v3075 = vld [vmem:[#allocation10 + $0x18] sm:$0xff]
    %v3076 = vld [vmem:[#allocation10 + $0x20] sm:$0xff]
    %v3077 = vld [vmem:[#allocation10 + $0x28] sm:$0xff]
    %v3078 = vld [vmem:[#allocation10 + $0x30] sm:$0xff]
    %v3079 = vld [vmem:[#allocation10 + $0x38] sm:$0xff]
    %v3080 = vld [vmem:[#allocation10 + $0x40] sm:$0xff]
    %v3081 = vld [vmem:[#allocation10 + $0x48] sm:$0xff]
    %v3082 = vld [vmem:[#allocation10 + $0x50] sm:$0xff]
    %v3083 = vld [vmem:[#allocation10 + $0x58] sm:$0xff]
    %v3084 = vld [vmem:[#allocation10 + $0x60] sm:$0xff]
    %v3085 = vld [vmem:[#allocation10 + $0x68] sm:$0xff]
    %v3086 = vld [vmem:[#allocation10 + $0x70] sm:$0xff]
    %v3087 = vld [vmem:[#allocation10 + $0x78] sm:$0xff]
    %v3088 = vld [vmem:[%s10] sm:$0x1]
    %v3090 = vlaneseq
    %v3091 = vshrl.u32 %v3090, 7
    %v3092 = vsub.s32 0, %v3091
    %v3093 = vrot.slane %v3088, %v3092
    %3095 = vmatprep.subr.mxu0 0.0
    %3096 = vmatpush1.msra.mxu0 %v3087
    %3097 = vmatprep.subr.mxu0 0.0
    %3098 = vmatpush1.msra.mxu0 %v3086
    %3099 = vmatprep.subr.mxu0 0.0
    %3100 = vmatpush1.msra.mxu0 %v3085
    %3101 = vmatprep.subr.mxu0 0.0
    %3102 = vmatpush1.msra.mxu0 %v3084
    %3103 = vmatprep.subr.mxu0 0.0
    %3104 = vmatpush1.msra.mxu0 %v3083
    %3105 = vmatprep.subr.mxu0 0.0
    %3106 = vmatpush1.msra.mxu0 %v3082
    %3107 = vmatprep.subr.mxu0 0.0
    %3108 = vmatpush1.msra.mxu0 %v3081
    %3109 = vmatprep.subr.mxu0 0.0
    %3110 = vmatpush1.msra.mxu0 %v3080
    %3111 = vmatprep.subr.mxu0 0.0
    %3112 = vmatpush1.msra.mxu0 %v3079
    %3113 = vmatprep.subr.mxu0 0.0
    %3114 = vmatpush1.msra.mxu0 %v3078
    %3115 = vmatprep.subr.mxu0 0.0
    %3116 = vmatpush1.msra.mxu0 %v3077
    %3117 = vmatprep.subr.mxu0 0.0
    %3118 = vmatpush1.msra.mxu0 %v3076
    %3119 = vmatprep.subr.mxu0 0.0
    %3120 = vmatpush1.msra.mxu0 %v3075
    %3121 = vmatprep.subr.mxu0 0.0
    %3122 = vmatpush1.msra.mxu0 %v3074
    %3123 = vmatprep.subr.mxu0 0.0
    %3124 = vmatpush1.msra.mxu0 %v3073
    %3125 = vmatprep.subr.mxu0 0.0
    %3126 = vmatpush1.msra.mxu0 %v3072
    %3127 = vmatprep.subr.mxu0 0.0
    %3128 = vmatpush2.msra.mxu0 0.0
    %3129 = vmatprep.subr.mxu0 0.0
    %3130 = vmatpush2.msra.mxu0 0.0
    %3131 = vmatprep.subr.mxu0 0.0
    %3132 = vmatpush2.msra.mxu0 0.0
    %3133 = vmatprep.subr.mxu0 0.0
    %3134 = vmatpush2.msra.mxu0 0.0
    %3135 = vmatprep.subr.mxu0 0.0
    %3136 = vmatpush2.msra.mxu0 0.0
    %3137 = vmatprep.subr.mxu0 0.0
    %3138 = vmatpush2.msra.mxu0 0.0
    %3139 = vmatprep.subr.mxu0 0.0
    %3140 = vmatpush2.msra.mxu0 0.0
    %3141 = vmatprep.subr.mxu0 0.0
    %3142 = vmatpush2.msra.mxu0 0.0
    %3143 = vmatprep.subr.mxu0 0.0
    %3144 = vmatpush2.msra.mxu0 0.0
    %3145 = vmatprep.subr.mxu0 0.0
    %3146 = vmatpush2.msra.mxu0 0.0
    %3147 = vmatprep.subr.mxu0 0.0
    %3148 = vmatpush2.msra.mxu0 0.0
    %3149 = vmatprep.subr.mxu0 0.0
    %3150 = vmatpush2.msra.mxu0 0.0
    %3151 = vmatprep.subr.mxu0 0.0
    %3152 = vmatpush2.msra.mxu0 0.0
    %3153 = vmatprep.subr.mxu0 0.0
    %3154 = vmatpush2.msra.mxu0 0.0
    %3155 = vmatprep.subr.mxu0 0.0
    %3156 = vmatpush2.msra.mxu0 0.0
    %3157 = vmatprep.subr.mxu0 0.0
    %3158 = vmatpush2.msra.mxu0 0.0
    %3159 = vmatprep.mubr.f32.mxu0 0.0
    %3160 = vmatmul.mubr.f32.gmra.mxu0 %v3071
    %v3161 = vpop.f32.mrf.mxu0
    %v3162 = vadd.f32 %v3093, %v3161
    %v3163 = vpop.f32.mrf.mxu0
    %3164 = vdwg.mxu0
    %v3165 = vtanh.pop %v3162
    %v3166 = vld [vmem:[#allocation11] sm:$0xff]
    %v3167 = vld [vmem:[#allocation11 + $0x8] sm:$0xff]
    %v3168 = vld [vmem:[#allocation11 + $0x10] sm:$0xff]
    %v3169 = vld [vmem:[#allocation11 + $0x18] sm:$0xff]
    %v3170 = vld [vmem:[#allocation11 + $0x20] sm:$0xff]
    %v3171 = vld [vmem:[#allocation11 + $0x28] sm:$0xff]
    %v3172 = vld [vmem:[#allocation11 + $0x30] sm:$0xff]
    %v3173 = vld [vmem:[#allocation11 + $0x38] sm:$0xff]
    %v3174 = vld [vmem:[#allocation11 + $0x40] sm:$0xff]
    %v3175 = vld [vmem:[#allocation11 + $0x48] sm:$0xff]
    %v3176 = vld [vmem:[#allocation11 + $0x50] sm:$0xff]
    %v3177 = vld [vmem:[#allocation11 + $0x58] sm:$0xff]
    %v3178 = vld [vmem:[#allocation11 + $0x60] sm:$0xff]
    %v3179 = vld [vmem:[#allocation11 + $0x68] sm:$0xff]
    %v3180 = vld [vmem:[#allocation11 + $0x70] sm:$0xff]
    %v3181 = vld [vmem:[#allocation11 + $0x78] sm:$0xff]
    %v3182 = vld [vmem:[%s12] sm:$0x1]
    %v3184 = vlaneseq
    %v3185 = vshrl.u32 %v3184, 7
    %v3186 = vsub.s32 0, %v3185
    %v3187 = vrot.slane %v3182, %v3186
    %3189 = vmatprep.subr.mxu0 0.0
    %3190 = vmatpush1.msra.mxu0 %v3181
    %3191 = vmatprep.subr.mxu0 0.0
    %3192 = vmatpush1.msra.mxu0 %v3180
    %3193 = vmatprep.subr.mxu0 0.0
    %3194 = vmatpush1.msra.mxu0 %v3179
    %3195 = vmatprep.subr.mxu0 0.0
    %3196 = vmatpush1.msra.mxu0 %v3178
    %3197 = vmatprep.subr.mxu0 0.0
    %3198 = vmatpush1.msra.mxu0 %v3177
    %3199 = vmatprep.subr.mxu0 0.0
    %3200 = vmatpush1.msra.mxu0 %v3176
    %3201 = vmatprep.subr.mxu0 0.0
    %3202 = vmatpush1.msra.mxu0 %v3175
    %3203 = vmatprep.subr.mxu0 0.0
    %3204 = vmatpush1.msra.mxu0 %v3174
    %3205 = vmatprep.subr.mxu0 0.0
    %3206 = vmatpush1.msra.mxu0 %v3173
    %3207 = vmatprep.subr.mxu0 0.0
    %3208 = vmatpush1.msra.mxu0 %v3172
    %3209 = vmatprep.subr.mxu0 0.0
    %3210 = vmatpush1.msra.mxu0 %v3171
    %3211 = vmatprep.subr.mxu0 0.0
    %3212 = vmatpush1.msra.mxu0 %v3170
    %3213 = vmatprep.subr.mxu0 0.0
    %3214 = vmatpush1.msra.mxu0 %v3169
    %3215 = vmatprep.subr.mxu0 0.0
    %3216 = vmatpush1.msra.mxu0 %v3168
    %3217 = vmatprep.subr.mxu0 0.0
    %3218 = vmatpush1.msra.mxu0 %v3167
    %3219 = vmatprep.subr.mxu0 0.0
    %3220 = vmatpush1.msra.mxu0 %v3166
    %3221 = vmatprep.subr.mxu0 0.0
    %3222 = vmatpush2.msra.mxu0 0.0
    %3223 = vmatprep.subr.mxu0 0.0
    %3224 = vmatpush2.msra.mxu0 0.0
    %3225 = vmatprep.subr.mxu0 0.0
    %3226 = vmatpush2.msra.mxu0 0.0
    %3227 = vmatprep.subr.mxu0 0.0
    %3228 = vmatpush2.msra.mxu0 0.0
    %3229 = vmatprep.subr.mxu0 0.0
    %3230 = vmatpush2.msra.mxu0 0.0
    %3231 = vmatprep.subr.mxu0 0.0
    %3232 = vmatpush2.msra.mxu0 0.0
    %3233 = vmatprep.subr.mxu0 0.0
    %3234 = vmatpush2.msra.mxu0 0.0
    %3235 = vmatprep.subr.mxu0 0.0
    %3236 = vmatpush2.msra.mxu0 0.0
    %3237 = vmatprep.subr.mxu0 0.0
    %3238 = vmatpush2.msra.mxu0 0.0
    %3239 = vmatprep.subr.mxu0 0.0
    %3240 = vmatpush2.msra.mxu0 0.0
    %3241 = vmatprep.subr.mxu0 0.0
    %3242 = vmatpush2.msra.mxu0 0.0
    %3243 = vmatprep.subr.mxu0 0.0
    %3244 = vmatpush2.msra.mxu0 0.0
    %3245 = vmatprep.subr.mxu0 0.0
    %3246 = vmatpush2.msra.mxu0 0.0
    %3247 = vmatprep.subr.mxu0 0.0
    %3248 = vmatpush2.msra.mxu0 0.0
    %3249 = vmatprep.subr.mxu0 0.0
    %3250 = vmatpush2.msra.mxu0 0.0
    %3251 = vmatprep.subr.mxu0 0.0
    %3252 = vmatpush2.msra.mxu0 0.0
    %3253 = vmatprep.mubr.f32.mxu0 0.0
    %3254 = vmatmul.mubr.f32.gmra.mxu0 %v3165
    %v3255 = vpop.f32.mrf.mxu0
    %v3256 = vadd.f32 %v3187, %v3255
    %v3257 = vpop.f32.mrf.mxu0
    %3258 = vdwg.mxu0
    %3259 = vst [vmem:[%s13 + $0x20] sm:$0xff] %v3256
    %v3260 = vld [vmem:[#allocation2 + $0xa0] sm:$0xff]
    %v3261 = vld [vmem:[%s5] sm:$0xff]
    %v3262 = vld [vmem:[%s5 + $0x8] sm:$0xff]
    %v3263 = vld [vmem:[%s5 + $0x10] sm:$0xff]
    %v3264 = vld [vmem:[%s5 + $0x18] sm:$0xff]
    %v3265 = vld [vmem:[%s5 + $0x20] sm:$0xff]
    %v3266 = vld [vmem:[%s5 + $0x28] sm:$0xff]
    %v3267 = vld [vmem:[%s5 + $0x30] sm:$0xff]
    %v3268 = vld [vmem:[%s5 + $0x38] sm:$0xff]
    %v3269 = vld [vmem:[%s5 + $0x40] sm:$0xff]
    %v3270 = vld [vmem:[%s5 + $0x48] sm:$0xff]
    %v3271 = vld [vmem:[%s5 + $0x50] sm:$0xff]
    %v3272 = vld [vmem:[%s5 + $0x58] sm:$0xff]
    %v3273 = vld [vmem:[%s5 + $0x60] sm:$0xff]
    %v3274 = vld [vmem:[%s5 + $0x68] sm:$0xff]
    %v3275 = vld [vmem:[%s5 + $0x70] sm:$0xff]
    %v3276 = vld [vmem:[%s5 + $0x78] sm:$0xff]
    %3277 = vmatprep.subr.mxu0 0.0
    %3278 = vmatpush1.msra.mxu0 %v3276
    %3279 = vmatprep.subr.mxu0 0.0
    %3280 = vmatpush1.msra.mxu0 %v3275
    %3281 = vmatprep.subr.mxu0 0.0
    %3282 = vmatpush1.msra.mxu0 %v3274
    %3283 = vmatprep.subr.mxu0 0.0
    %3284 = vmatpush1.msra.mxu0 %v3273
    %3285 = vmatprep.subr.mxu0 0.0
    %3286 = vmatpush1.msra.mxu0 %v3272
    %3287 = vmatprep.subr.mxu0 0.0
    %3288 = vmatpush1.msra.mxu0 %v3271
    %3289 = vmatprep.subr.mxu0 0.0
    %3290 = vmatpush1.msra.mxu0 %v3270
    %3291 = vmatprep.subr.mxu0 0.0
    %3292 = vmatpush1.msra.mxu0 %v3269
    %3293 = vmatprep.subr.mxu0 0.0
    %3294 = vmatpush1.msra.mxu0 %v3268
    %3295 = vmatprep.subr.mxu0 0.0
    %3296 = vmatpush1.msra.mxu0 %v3267
    %3297 = vmatprep.subr.mxu0 0.0
    %3298 = vmatpush1.msra.mxu0 %v3266
    %3299 = vmatprep.subr.mxu0 0.0
    %3300 = vmatpush1.msra.mxu0 %v3265
    %3301 = vmatprep.subr.mxu0 0.0
    %3302 = vmatpush1.msra.mxu0 %v3264
    %3303 = vmatprep.subr.mxu0 0.0
    %3304 = vmatpush1.msra.mxu0 %v3263
    %3305 = vmatprep.subr.mxu0 0.0
    %3306 = vmatpush1.msra.mxu0 %v3262
    %3307 = vmatprep.subr.mxu0 0.0
    %3308 = vmatpush1.msra.mxu0 %v3261
    %3309 = vmatprep.subr.mxu0 0.0
    %3310 = vmatpush2.msra.mxu0 0.0
    %3311 = vmatprep.subr.mxu0 0.0
    %3312 = vmatpush2.msra.mxu0 0.0
    %3313 = vmatprep.subr.mxu0 0.0
    %3314 = vmatpush2.msra.mxu0 0.0
    %3315 = vmatprep.subr.mxu0 0.0
    %3316 = vmatpush2.msra.mxu0 0.0
    %3317 = vmatprep.subr.mxu0 0.0
    %3318 = vmatpush2.msra.mxu0 0.0
    %3319 = vmatprep.subr.mxu0 0.0
    %3320 = vmatpush2.msra.mxu0 0.0
    %3321 = vmatprep.subr.mxu0 0.0
    %3322 = vmatpush2.msra.mxu0 0.0
    %3323 = vmatprep.subr.mxu0 0.0
    %3324 = vmatpush2.msra.mxu0 0.0
    %3325 = vmatprep.subr.mxu0 0.0
    %3326 = vmatpush2.msra.mxu0 0.0
    %3327 = vmatprep.subr.mxu0 0.0
    %3328 = vmatpush2.msra.mxu0 0.0
    %3329 = vmatprep.subr.mxu0 0.0
    %3330 = vmatpush2.msra.mxu0 0.0
    %3331 = vmatprep.subr.mxu0 0.0
    %3332 = vmatpush2.msra.mxu0 0.0
    %3333 = vmatprep.subr.mxu0 0.0
    %3334 = vmatpush2.msra.mxu0 0.0
    %3335 = vmatprep.subr.mxu0 0.0
    %3336 = vmatpush2.msra.mxu0 0.0
    %3337 = vmatprep.subr.mxu0 0.0
    %3338 = vmatpush2.msra.mxu0 0.0
    %3339 = vmatprep.subr.mxu0 0.0
    %3340 = vmatpush2.msra.mxu0 0.0
    %3341 = vmatprep.mubr.f32.mxu0 0.0
    %3342 = vmatmul.mubr.f32.gmra.mxu0 %v3071
    %v3343 = vpop.f32.mrf.mxu0
    %v3344 = vadd.f32 0.0, %v3343
    %v3345 = vpop.f32.mrf.mxu0
    %3346 = vdwg.mxu0
    %v3347 = vadd.f32 %v3260, %v3344
    %v3348 = vld [vmem:[#allocation2 + $0xa8] sm:$0xff]
    %v3349 = vld [vmem:[#allocation5] sm:$0xff]
    %v3350 = vld [vmem:[#allocation5 + $0x8] sm:$0xff]
    %v3351 = vld [vmem:[#allocation5 + $0x10] sm:$0xff]
    %v3352 = vld [vmem:[#allocation5 + $0x18] sm:$0xff]
    %v3353 = vld [vmem:[#allocation5 + $0x20] sm:$0xff]
    %v3354 = vld [vmem:[#allocation5 + $0x28] sm:$0xff]
    %v3355 = vld [vmem:[#allocation5 + $0x30] sm:$0xff]
    %v3356 = vld [vmem:[#allocation5 + $0x38] sm:$0xff]
    %v3357 = vld [vmem:[#allocation5 + $0x40] sm:$0xff]
    %v3358 = vld [vmem:[#allocation5 + $0x48] sm:$0xff]
    %v3359 = vld [vmem:[#allocation5 + $0x50] sm:$0xff]
    %v3360 = vld [vmem:[#allocation5 + $0x58] sm:$0xff]
    %v3361 = vld [vmem:[#allocation5 + $0x60] sm:$0xff]
    %v3362 = vld [vmem:[#allocation5 + $0x68] sm:$0xff]
    %v3363 = vld [vmem:[#allocation5 + $0x70] sm:$0xff]
    %v3364 = vld [vmem:[#allocation5 + $0x78] sm:$0xff]
    %3365 = vmatprep.subr.mxu0 0.0
    %3366 = vmatpush1.msra.mxu0 %v3364
    %3367 = vmatprep.subr.mxu0 0.0
    %3368 = vmatpush1.msra.mxu0 %v3363
    %3369 = vmatprep.subr.mxu0 0.0
    %3370 = vmatpush1.msra.mxu0 %v3362
    %3371 = vmatprep.subr.mxu0 0.0
    %3372 = vmatpush1.msra.mxu0 %v3361
    %3373 = vmatprep.subr.mxu0 0.0
    %3374 = vmatpush1.msra.mxu0 %v3360
    %3375 = vmatprep.subr.mxu0 0.0
    %3376 = vmatpush1.msra.mxu0 %v3359
    %3377 = vmatprep.subr.mxu0 0.0
    %3378 = vmatpush1.msra.mxu0 %v3358
    %3379 = vmatprep.subr.mxu0 0.0
    %3380 = vmatpush1.msra.mxu0 %v3357
    %3381 = vmatprep.subr.mxu0 0.0
    %3382 = vmatpush1.msra.mxu0 %v3356
    %3383 = vmatprep.subr.mxu0 0.0
    %3384 = vmatpush1.msra.mxu0 %v3355
    %3385 = vmatprep.subr.mxu0 0.0
    %3386 = vmatpush1.msra.mxu0 %v3354
    %3387 = vmatprep.subr.mxu0 0.0
    %3388 = vmatpush1.msra.mxu0 %v3353
    %3389 = vmatprep.subr.mxu0 0.0
    %3390 = vmatpush1.msra.mxu0 %v3352
    %3391 = vmatprep.subr.mxu0 0.0
    %3392 = vmatpush1.msra.mxu0 %v3351
    %3393 = vmatprep.subr.mxu0 0.0
    %3394 = vmatpush1.msra.mxu0 %v3350
    %3395 = vmatprep.subr.mxu0 0.0
    %3396 = vmatpush1.msra.mxu0 %v3349
    %3397 = vmatprep.subr.mxu0 0.0
    %3398 = vmatpush2.msra.mxu0 0.0
    %3399 = vmatprep.subr.mxu0 0.0
    %3400 = vmatpush2.msra.mxu0 0.0
    %3401 = vmatprep.subr.mxu0 0.0
    %3402 = vmatpush2.msra.mxu0 0.0
    %3403 = vmatprep.subr.mxu0 0.0
    %3404 = vmatpush2.msra.mxu0 0.0
    %3405 = vmatprep.subr.mxu0 0.0
    %3406 = vmatpush2.msra.mxu0 0.0
    %3407 = vmatprep.subr.mxu0 0.0
    %3408 = vmatpush2.msra.mxu0 0.0
    %3409 = vmatprep.subr.mxu0 0.0
    %3410 = vmatpush2.msra.mxu0 0.0
    %3411 = vmatprep.subr.mxu0 0.0
    %3412 = vmatpush2.msra.mxu0 0.0
    %3413 = vmatprep.subr.mxu0 0.0
    %3414 = vmatpush2.msra.mxu0 0.0
    %3415 = vmatprep.subr.mxu0 0.0
    %3416 = vmatpush2.msra.mxu0 0.0
    %3417 = vmatprep.subr.mxu0 0.0
    %3418 = vmatpush2.msra.mxu0 0.0
    %3419 = vmatprep.subr.mxu0 0.0
    %3420 = vmatpush2.msra.mxu0 0.0
    %3421 = vmatprep.subr.mxu0 0.0
    %3422 = vmatpush2.msra.mxu0 0.0
    %3423 = vmatprep.subr.mxu0 0.0
    %3424 = vmatpush2.msra.mxu0 0.0
    %3425 = vmatprep.subr.mxu0 0.0
    %3426 = vmatpush2.msra.mxu0 0.0
    %3427 = vmatprep.subr.mxu0 0.0
    %3428 = vmatpush2.msra.mxu0 0.0
    %3429 = vmatprep.mubr.f32.mxu0 0.0
    %3430 = vmatmul.mubr.f32.gmra.mxu0 %v3071
    %v3431 = vpop.f32.mrf.mxu0
    %v3432 = vadd.f32 0.0, %v3431
    %v3433 = vpop.f32.mrf.mxu0
    %3434 = vdwg.mxu0
    %v3435 = vadd.f32 %v3348, %v3432
    %v3436 = vld [vmem:[#allocation2 + $0xb0] sm:$0xff]
    %v3437 = vld [vmem:[#allocation7] sm:$0xff]
    %v3438 = vld [vmem:[#allocation7 + $0x8] sm:$0xff]
    %v3439 = vld [vmem:[#allocation7 + $0x10] sm:$0xff]
    %v3440 = vld [vmem:[#allocation7 + $0x18] sm:$0xff]
    %v3441 = vld [vmem:[#allocation7 + $0x20] sm:$0xff]
    %v3442 = vld [vmem:[#allocation7 + $0x28] sm:$0xff]
    %v3443 = vld [vmem:[#allocation7 + $0x30] sm:$0xff]
    %v3444 = vld [vmem:[#allocation7 + $0x38] sm:$0xff]
    %v3445 = vld [vmem:[#allocation7 + $0x40] sm:$0xff]
    %v3446 = vld [vmem:[#allocation7 + $0x48] sm:$0xff]
    %v3447 = vld [vmem:[#allocation7 + $0x50] sm:$0xff]
    %v3448 = vld [vmem:[#allocation7 + $0x58] sm:$0xff]
    %v3449 = vld [vmem:[#allocation7 + $0x60] sm:$0xff]
    %v3450 = vld [vmem:[#allocation7 + $0x68] sm:$0xff]
    %v3451 = vld [vmem:[#allocation7 + $0x70] sm:$0xff]
    %v3452 = vld [vmem:[#allocation7 + $0x78] sm:$0xff]
    %3453 = vmatprep.subr.mxu0 0.0
    %3454 = vmatpush1.msra.mxu0 %v3452
    %3455 = vmatprep.subr.mxu0 0.0
    %3456 = vmatpush1.msra.mxu0 %v3451
    %3457 = vmatprep.subr.mxu0 0.0
    %3458 = vmatpush1.msra.mxu0 %v3450
    %3459 = vmatprep.subr.mxu0 0.0
    %3460 = vmatpush1.msra.mxu0 %v3449
    %3461 = vmatprep.subr.mxu0 0.0
    %3462 = vmatpush1.msra.mxu0 %v3448
    %3463 = vmatprep.subr.mxu0 0.0
    %3464 = vmatpush1.msra.mxu0 %v3447
    %3465 = vmatprep.subr.mxu0 0.0
    %3466 = vmatpush1.msra.mxu0 %v3446
    %3467 = vmatprep.subr.mxu0 0.0
    %3468 = vmatpush1.msra.mxu0 %v3445
    %3469 = vmatprep.subr.mxu0 0.0
    %3470 = vmatpush1.msra.mxu0 %v3444
    %3471 = vmatprep.subr.mxu0 0.0
    %3472 = vmatpush1.msra.mxu0 %v3443
    %3473 = vmatprep.subr.mxu0 0.0
    %3474 = vmatpush1.msra.mxu0 %v3442
    %3475 = vmatprep.subr.mxu0 0.0
    %3476 = vmatpush1.msra.mxu0 %v3441
    %3477 = vmatprep.subr.mxu0 0.0
    %3478 = vmatpush1.msra.mxu0 %v3440
    %3479 = vmatprep.subr.mxu0 0.0
    %3480 = vmatpush1.msra.mxu0 %v3439
    %3481 = vmatprep.subr.mxu0 0.0
    %3482 = vmatpush1.msra.mxu0 %v3438
    %3483 = vmatprep.subr.mxu0 0.0
    %3484 = vmatpush1.msra.mxu0 %v3437
    %3485 = vmatprep.subr.mxu0 0.0
    %3486 = vmatpush2.msra.mxu0 0.0
    %3487 = vmatprep.subr.mxu0 0.0
    %3488 = vmatpush2.msra.mxu0 0.0
    %3489 = vmatprep.subr.mxu0 0.0
    %3490 = vmatpush2.msra.mxu0 0.0
    %3491 = vmatprep.subr.mxu0 0.0
    %3492 = vmatpush2.msra.mxu0 0.0
    %3493 = vmatprep.subr.mxu0 0.0
    %3494 = vmatpush2.msra.mxu0 0.0
    %3495 = vmatprep.subr.mxu0 0.0
    %3496 = vmatpush2.msra.mxu0 0.0
    %3497 = vmatprep.subr.mxu0 0.0
    %3498 = vmatpush2.msra.mxu0 0.0
    %3499 = vmatprep.subr.mxu0 0.0
    %3500 = vmatpush2.msra.mxu0 0.0
    %3501 = vmatprep.subr.mxu0 0.0
    %3502 = vmatpush2.msra.mxu0 0.0
    %3503 = vmatprep.subr.mxu0 0.0
    %3504 = vmatpush2.msra.mxu0 0.0
    %3505 = vmatprep.subr.mxu0 0.0
    %3506 = vmatpush2.msra.mxu0 0.0
    %3507 = vmatprep.subr.mxu0 0.0
    %3508 = vmatpush2.msra.mxu0 0.0
    %3509 = vmatprep.subr.mxu0 0.0
    %3510 = vmatpush2.msra.mxu0 0.0
    %3511 = vmatprep.subr.mxu0 0.0
    %3512 = vmatpush2.msra.mxu0 0.0
    %3513 = vmatprep.subr.mxu0 0.0
    %3514 = vmatpush2.msra.mxu0 0.0
    %3515 = vmatprep.subr.mxu0 0.0
    %3516 = vmatpush2.msra.mxu0 0.0
    %3517 = vmatprep.mubr.f32.mxu0 0.0
    %3518 = vmatmul.mubr.f32.gmra.mxu0 %v3071
    %v3519 = vpop.f32.mrf.mxu0
    %v3520 = vadd.f32 0.0, %v3519
    %v3521 = vpop.f32.mrf.mxu0
    %3522 = vdwg.mxu0
    %v3523 = vadd.f32 %v3436, %v3520
    %v3524 = vmul.f32 %v3347, 0.5
    %v3525 = vtanh.pop %v3524
    %v3526 = vmul.f32 %v3525, 0.5
    %v3527 = vadd.f32 %v3526, 0.5
    %v3528 = vmul.f32 %v3435, 0.5
    %v3529 = vtanh.pop %v3528
    %v3530 = vmul.f32 %v3529, 0.5
    %v3531 = vadd.f32 %v3530, 0.5
    %v3532 = vtanh.pop %v3523
    %v3533 = vmul.f32 %v3531, %v2977
    %v3534 = vmul.f32 %v3527, %v3532
    %v3535 = vadd.f32 %v3533, %v3534
    %v3536 = vld [vmem:[#allocation2 + $0xb8] sm:$0xff]
    %v3537 = vld [vmem:[#allocation8] sm:$0xff]
    %v3538 = vld [vmem:[#allocation8 + $0x8] sm:$0xff]
    %v3539 = vld [vmem:[#allocation8 + $0x10] sm:$0xff]
    %v3540 = vld [vmem:[#allocation8 + $0x18] sm:$0xff]
    %v3541 = vld [vmem:[#allocation8 + $0x20] sm:$0xff]
    %v3542 = vld [vmem:[#allocation8 + $0x28] sm:$0xff]
    %v3543 = vld [vmem:[#allocation8 + $0x30] sm:$0xff]
    %v3544 = vld [vmem:[#allocation8 + $0x38] sm:$0xff]
    %v3545 = vld [vmem:[#allocation8 + $0x40] sm:$0xff]
    %v3546 = vld [vmem:[#allocation8 + $0x48] sm:$0xff]
    %v3547 = vld [vmem:[#allocation8 + $0x50] sm:$0xff]
    %v3548 = vld [vmem:[#allocation8 + $0x58] sm:$0xff]
    %v3549 = vld [vmem:[#allocation8 + $0x60] sm:$0xff]
    %v3550 = vld [vmem:[#allocation8 + $0x68] sm:$0xff]
    %v3551 = vld [vmem:[#allocation8 + $0x70] sm:$0xff]
    %v3552 = vld [vmem:[#allocation8 + $0x78] sm:$0xff]
    %3553 = vmatprep.subr.mxu0 0.0
    %3554 = vmatpush1.msra.mxu0 %v3552
    %3555 = vmatprep.subr.mxu0 0.0
    %3556 = vmatpush1.msra.mxu0 %v3551
    %3557 = vmatprep.subr.mxu0 0.0
    %3558 = vmatpush1.msra.mxu0 %v3550
    %3559 = vmatprep.subr.mxu0 0.0
    %3560 = vmatpush1.msra.mxu0 %v3549
    %3561 = vmatprep.subr.mxu0 0.0
    %3562 = vmatpush1.msra.mxu0 %v3548
    %3563 = vmatprep.subr.mxu0 0.0
    %3564 = vmatpush1.msra.mxu0 %v3547
    %3565 = vmatprep.subr.mxu0 0.0
    %3566 = vmatpush1.msra.mxu0 %v3546
    %3567 = vmatprep.subr.mxu0 0.0
    %3568 = vmatpush1.msra.mxu0 %v3545
    %3569 = vmatprep.subr.mxu0 0.0
    %3570 = vmatpush1.msra.mxu0 %v3544
    %3571 = vmatprep.subr.mxu0 0.0
    %3572 = vmatpush1.msra.mxu0 %v3543
    %3573 = vmatprep.subr.mxu0 0.0
    %3574 = vmatpush1.msra.mxu0 %v3542
    %3575 = vmatprep.subr.mxu0 0.0
    %3576 = vmatpush1.msra.mxu0 %v3541
    %3577 = vmatprep.subr.mxu0 0.0
    %3578 = vmatpush1.msra.mxu0 %v3540
    %3579 = vmatprep.subr.mxu0 0.0
    %3580 = vmatpush1.msra.mxu0 %v3539
    %3581 = vmatprep.subr.mxu0 0.0
    %3582 = vmatpush1.msra.mxu0 %v3538
    %3583 = vmatprep.subr.mxu0 0.0
    %3584 = vmatpush1.msra.mxu0 %v3537
    %3585 = vmatprep.subr.mxu0 0.0
    %3586 = vmatpush2.msra.mxu0 0.0
    %3587 = vmatprep.subr.mxu0 0.0
    %3588 = vmatpush2.msra.mxu0 0.0
    %3589 = vmatprep.subr.mxu0 0.0
    %3590 = vmatpush2.msra.mxu0 0.0
    %3591 = vmatprep.subr.mxu0 0.0
    %3592 = vmatpush2.msra.mxu0 0.0
    %3593 = vmatprep.subr.mxu0 0.0
    %3594 = vmatpush2.msra.mxu0 0.0
    %3595 = vmatprep.subr.mxu0 0.0
    %3596 = vmatpush2.msra.mxu0 0.0
    %3597 = vmatprep.subr.mxu0 0.0
    %3598 = vmatpush2.msra.mxu0 0.0
    %3599 = vmatprep.subr.mxu0 0.0
    %3600 = vmatpush2.msra.mxu0 0.0
    %3601 = vmatprep.subr.mxu0 0.0
    %3602 = vmatpush2.msra.mxu0 0.0
    %3603 = vmatprep.subr.mxu0 0.0
    %3604 = vmatpush2.msra.mxu0 0.0
    %3605 = vmatprep.subr.mxu0 0.0
    %3606 = vmatpush2.msra.mxu0 0.0
    %3607 = vmatprep.subr.mxu0 0.0
    %3608 = vmatpush2.msra.mxu0 0.0
    %3609 = vmatprep.subr.mxu0 0.0
    %3610 = vmatpush2.msra.mxu0 0.0
    %3611 = vmatprep.subr.mxu0 0.0
    %3612 = vmatpush2.msra.mxu0 0.0
    %3613 = vmatprep.subr.mxu0 0.0
    %3614 = vmatpush2.msra.mxu0 0.0
    %3615 = vmatprep.subr.mxu0 0.0
    %3616 = vmatpush2.msra.mxu0 0.0
    %3617 = vmatprep.mubr.f32.mxu0 0.0
    %3618 = vmatmul.mubr.f32.gmra.mxu0 %v3071
    %v3619 = vpop.f32.mrf.mxu0
    %v3620 = vadd.f32 0.0, %v3619
    %v3621 = vpop.f32.mrf.mxu0
    %3622 = vdwg.mxu0
    %v3623 = vadd.f32 %v3536, %v3620
    %v3624 = vmul.f32 %v3623, 0.5
    %v3625 = vtanh.pop %v3624
    %v3626 = vmul.f32 %v3625, 0.5
    %v3627 = vadd.f32 %v3626, 0.5
    %v3628 = vtanh.pop %v3535
    %v3629 = vmul.f32 %v3627, %v3628
    %v3630 = vld [vmem:[#allocation10] sm:$0xff]
    %v3631 = vld [vmem:[#allocation10 + $0x8] sm:$0xff]
    %v3632 = vld [vmem:[#allocation10 + $0x10] sm:$0xff]
    %v3633 = vld [vmem:[#allocation10 + $0x18] sm:$0xff]
    %v3634 = vld [vmem:[#allocation10 + $0x20] sm:$0xff]
    %v3635 = vld [vmem:[#allocation10 + $0x28] sm:$0xff]
    %v3636 = vld [vmem:[#allocation10 + $0x30] sm:$0xff]
    %v3637 = vld [vmem:[#allocation10 + $0x38] sm:$0xff]
    %v3638 = vld [vmem:[#allocation10 + $0x40] sm:$0xff]
    %v3639 = vld [vmem:[#allocation10 + $0x48] sm:$0xff]
    %v3640 = vld [vmem:[#allocation10 + $0x50] sm:$0xff]
    %v3641 = vld [vmem:[#allocation10 + $0x58] sm:$0xff]
    %v3642 = vld [vmem:[#allocation10 + $0x60] sm:$0xff]
    %v3643 = vld [vmem:[#allocation10 + $0x68] sm:$0xff]
    %v3644 = vld [vmem:[#allocation10 + $0x70] sm:$0xff]
    %v3645 = vld [vmem:[#allocation10 + $0x78] sm:$0xff]
    %v3646 = vld [vmem:[%s10] sm:$0x1]
    %v3648 = vlaneseq
    %v3649 = vshrl.u32 %v3648, 7
    %v3650 = vsub.s32 0, %v3649
    %v3651 = vrot.slane %v3646, %v3650
    %3653 = vmatprep.subr.mxu0 0.0
    %3654 = vmatpush1.msra.mxu0 %v3645
    %3655 = vmatprep.subr.mxu0 0.0
    %3656 = vmatpush1.msra.mxu0 %v3644
    %3657 = vmatprep.subr.mxu0 0.0
    %3658 = vmatpush1.msra.mxu0 %v3643
    %3659 = vmatprep.subr.mxu0 0.0
    %3660 = vmatpush1.msra.mxu0 %v3642
    %3661 = vmatprep.subr.mxu0 0.0
    %3662 = vmatpush1.msra.mxu0 %v3641
    %3663 = vmatprep.subr.mxu0 0.0
    %3664 = vmatpush1.msra.mxu0 %v3640
    %3665 = vmatprep.subr.mxu0 0.0
    %3666 = vmatpush1.msra.mxu0 %v3639
    %3667 = vmatprep.subr.mxu0 0.0
    %3668 = vmatpush1.msra.mxu0 %v3638
    %3669 = vmatprep.subr.mxu0 0.0
    %3670 = vmatpush1.msra.mxu0 %v3637
    %3671 = vmatprep.subr.mxu0 0.0
    %3672 = vmatpush1.msra.mxu0 %v3636
    %3673 = vmatprep.subr.mxu0 0.0
    %3674 = vmatpush1.msra.mxu0 %v3635
    %3675 = vmatprep.subr.mxu0 0.0
    %3676 = vmatpush1.msra.mxu0 %v3634
    %3677 = vmatprep.subr.mxu0 0.0
    %3678 = vmatpush1.msra.mxu0 %v3633
    %3679 = vmatprep.subr.mxu0 0.0
    %3680 = vmatpush1.msra.mxu0 %v3632
    %3681 = vmatprep.subr.mxu0 0.0
    %3682 = vmatpush1.msra.mxu0 %v3631
    %3683 = vmatprep.subr.mxu0 0.0
    %3684 = vmatpush1.msra.mxu0 %v3630
    %3685 = vmatprep.subr.mxu0 0.0
    %3686 = vmatpush2.msra.mxu0 0.0
    %3687 = vmatprep.subr.mxu0 0.0
    %3688 = vmatpush2.msra.mxu0 0.0
    %3689 = vmatprep.subr.mxu0 0.0
    %3690 = vmatpush2.msra.mxu0 0.0
    %3691 = vmatprep.subr.mxu0 0.0
    %3692 = vmatpush2.msra.mxu0 0.0
    %3693 = vmatprep.subr.mxu0 0.0
    %3694 = vmatpush2.msra.mxu0 0.0
    %3695 = vmatprep.subr.mxu0 0.0
    %3696 = vmatpush2.msra.mxu0 0.0
    %3697 = vmatprep.subr.mxu0 0.0
    %3698 = vmatpush2.msra.mxu0 0.0
    %3699 = vmatprep.subr.mxu0 0.0
    %3700 = vmatpush2.msra.mxu0 0.0
    %3701 = vmatprep.subr.mxu0 0.0
    %3702 = vmatpush2.msra.mxu0 0.0
    %3703 = vmatprep.subr.mxu0 0.0
    %3704 = vmatpush2.msra.mxu0 0.0
    %3705 = vmatprep.subr.mxu0 0.0
    %3706 = vmatpush2.msra.mxu0 0.0
    %3707 = vmatprep.subr.mxu0 0.0
    %3708 = vmatpush2.msra.mxu0 0.0
    %3709 = vmatprep.subr.mxu0 0.0
    %3710 = vmatpush2.msra.mxu0 0.0
    %3711 = vmatprep.subr.mxu0 0.0
    %3712 = vmatpush2.msra.mxu0 0.0
    %3713 = vmatprep.subr.mxu0 0.0
    %3714 = vmatpush2.msra.mxu0 0.0
    %3715 = vmatprep.subr.mxu0 0.0
    %3716 = vmatpush2.msra.mxu0 0.0
    %3717 = vmatprep.mubr.f32.mxu0 0.0
    %3718 = vmatmul.mubr.f32.gmra.mxu0 %v3629
    %v3719 = vpop.f32.mrf.mxu0
    %v3720 = vadd.f32 %v3651, %v3719
    %v3721 = vpop.f32.mrf.mxu0
    %3722 = vdwg.mxu0
    %v3723 = vtanh.pop %v3720
    %v3724 = vld [vmem:[#allocation11] sm:$0xff]
    %v3725 = vld [vmem:[#allocation11 + $0x8] sm:$0xff]
    %v3726 = vld [vmem:[#allocation11 + $0x10] sm:$0xff]
    %v3727 = vld [vmem:[#allocation11 + $0x18] sm:$0xff]
    %v3728 = vld [vmem:[#allocation11 + $0x20] sm:$0xff]
    %v3729 = vld [vmem:[#allocation11 + $0x28] sm:$0xff]
    %v3730 = vld [vmem:[#allocation11 + $0x30] sm:$0xff]
    %v3731 = vld [vmem:[#allocation11 + $0x38] sm:$0xff]
    %v3732 = vld [vmem:[#allocation11 + $0x40] sm:$0xff]
    %v3733 = vld [vmem:[#allocation11 + $0x48] sm:$0xff]
    %v3734 = vld [vmem:[#allocation11 + $0x50] sm:$0xff]
    %v3735 = vld [vmem:[#allocation11 + $0x58] sm:$0xff]
    %v3736 = vld [vmem:[#allocation11 + $0x60] sm:$0xff]
    %v3737 = vld [vmem:[#allocation11 + $0x68] sm:$0xff]
    %v3738 = vld [vmem:[#allocation11 + $0x70] sm:$0xff]
    %v3739 = vld [vmem:[#allocation11 + $0x78] sm:$0xff]
    %v3740 = vld [vmem:[%s12] sm:$0x1]
    %v3742 = vlaneseq
    %v3743 = vshrl.u32 %v3742, 7
    %v3744 = vsub.s32 0, %v3743
    %v3745 = vrot.slane %v3740, %v3744
    %3747 = vmatprep.subr.mxu0 0.0
    %3748 = vmatpush1.msra.mxu0 %v3739
    %3749 = vmatprep.subr.mxu0 0.0
    %3750 = vmatpush1.msra.mxu0 %v3738
    %3751 = vmatprep.subr.mxu0 0.0
    %3752 = vmatpush1.msra.mxu0 %v3737
    %3753 = vmatprep.subr.mxu0 0.0
    %3754 = vmatpush1.msra.mxu0 %v3736
    %3755 = vmatprep.subr.mxu0 0.0
    %3756 = vmatpush1.msra.mxu0 %v3735
    %3757 = vmatprep.subr.mxu0 0.0
    %3758 = vmatpush1.msra.mxu0 %v3734
    %3759 = vmatprep.subr.mxu0 0.0
    %3760 = vmatpush1.msra.mxu0 %v3733
    %3761 = vmatprep.subr.mxu0 0.0
    %3762 = vmatpush1.msra.mxu0 %v3732
    %3763 = vmatprep.subr.mxu0 0.0
    %3764 = vmatpush1.msra.mxu0 %v3731
    %3765 = vmatprep.subr.mxu0 0.0
    %3766 = vmatpush1.msra.mxu0 %v3730
    %3767 = vmatprep.subr.mxu0 0.0
    %3768 = vmatpush1.msra.mxu0 %v3729
    %3769 = vmatprep.subr.mxu0 0.0
    %3770 = vmatpush1.msra.mxu0 %v3728
    %3771 = vmatprep.subr.mxu0 0.0
    %3772 = vmatpush1.msra.mxu0 %v3727
    %3773 = vmatprep.subr.mxu0 0.0
    %3774 = vmatpush1.msra.mxu0 %v3726
    %3775 = vmatprep.subr.mxu0 0.0
    %3776 = vmatpush1.msra.mxu0 %v3725
    %3777 = vmatprep.subr.mxu0 0.0
    %3778 = vmatpush1.msra.mxu0 %v3724
    %3779 = vmatprep.subr.mxu0 0.0
    %3780 = vmatpush2.msra.mxu0 0.0
    %3781 = vmatprep.subr.mxu0 0.0
    %3782 = vmatpush2.msra.mxu0 0.0
    %3783 = vmatprep.subr.mxu0 0.0
    %3784 = vmatpush2.msra.mxu0 0.0
    %3785 = vmatprep.subr.mxu0 0.0
    %3786 = vmatpush2.msra.mxu0 0.0
    %3787 = vmatprep.subr.mxu0 0.0
    %3788 = vmatpush2.msra.mxu0 0.0
    %3789 = vmatprep.subr.mxu0 0.0
    %3790 = vmatpush2.msra.mxu0 0.0
    %3791 = vmatprep.subr.mxu0 0.0
    %3792 = vmatpush2.msra.mxu0 0.0
    %3793 = vmatprep.subr.mxu0 0.0
    %3794 = vmatpush2.msra.mxu0 0.0
    %3795 = vmatprep.subr.mxu0 0.0
    %3796 = vmatpush2.msra.mxu0 0.0
    %3797 = vmatprep.subr.mxu0 0.0
    %3798 = vmatpush2.msra.mxu0 0.0
    %3799 = vmatprep.subr.mxu0 0.0
    %3800 = vmatpush2.msra.mxu0 0.0
    %3801 = vmatprep.subr.mxu0 0.0
    %3802 = vmatpush2.msra.mxu0 0.0
    %3803 = vmatprep.subr.mxu0 0.0
    %3804 = vmatpush2.msra.mxu0 0.0
    %3805 = vmatprep.subr.mxu0 0.0
    %3806 = vmatpush2.msra.mxu0 0.0
    %3807 = vmatprep.subr.mxu0 0.0
    %3808 = vmatpush2.msra.mxu0 0.0
    %3809 = vmatprep.subr.mxu0 0.0
    %3810 = vmatpush2.msra.mxu0 0.0
    %3811 = vmatprep.mubr.f32.mxu0 0.0
    %3812 = vmatmul.mubr.f32.gmra.mxu0 %v3723
    %v3813 = vpop.f32.mrf.mxu0
    %v3814 = vadd.f32 %v3745, %v3813
    %v3815 = vpop.f32.mrf.mxu0
    %3816 = vdwg.mxu0
    %3817 = vst [vmem:[%s13 + $0x28] sm:$0xff] %v3814
    %v3818 = vld [vmem:[#allocation2 + $0xc0] sm:$0xff]
    %v3819 = vld [vmem:[%s5] sm:$0xff]
    %v3820 = vld [vmem:[%s5 + $0x8] sm:$0xff]
    %v3821 = vld [vmem:[%s5 + $0x10] sm:$0xff]
    %v3822 = vld [vmem:[%s5 + $0x18] sm:$0xff]
    %v3823 = vld [vmem:[%s5 + $0x20] sm:$0xff]
    %v3824 = vld [vmem:[%s5 + $0x28] sm:$0xff]
    %v3825 = vld [vmem:[%s5 + $0x30] sm:$0xff]
    %v3826 = vld [vmem:[%s5 + $0x38] sm:$0xff]
    %v3827 = vld [vmem:[%s5 + $0x40] sm:$0xff]
    %v3828 = vld [vmem:[%s5 + $0x48] sm:$0xff]
    %v3829 = vld [vmem:[%s5 + $0x50] sm:$0xff]
    %v3830 = vld [vmem:[%s5 + $0x58] sm:$0xff]
    %v3831 = vld [vmem:[%s5 + $0x60] sm:$0xff]
    %v3832 = vld [vmem:[%s5 + $0x68] sm:$0xff]
    %v3833 = vld [vmem:[%s5 + $0x70] sm:$0xff]
    %v3834 = vld [vmem:[%s5 + $0x78] sm:$0xff]
    %3835 = vmatprep.subr.mxu0 0.0
    %3836 = vmatpush1.msra.mxu0 %v3834
    %3837 = vmatprep.subr.mxu0 0.0
    %3838 = vmatpush1.msra.mxu0 %v3833
    %3839 = vmatprep.subr.mxu0 0.0
    %3840 = vmatpush1.msra.mxu0 %v3832
    %3841 = vmatprep.subr.mxu0 0.0
    %3842 = vmatpush1.msra.mxu0 %v3831
    %3843 = vmatprep.subr.mxu0 0.0
    %3844 = vmatpush1.msra.mxu0 %v3830
    %3845 = vmatprep.subr.mxu0 0.0
    %3846 = vmatpush1.msra.mxu0 %v3829
    %3847 = vmatprep.subr.mxu0 0.0
    %3848 = vmatpush1.msra.mxu0 %v3828
    %3849 = vmatprep.subr.mxu0 0.0
    %3850 = vmatpush1.msra.mxu0 %v3827
    %3851 = vmatprep.subr.mxu0 0.0
    %3852 = vmatpush1.msra.mxu0 %v3826
    %3853 = vmatprep.subr.mxu0 0.0
    %3854 = vmatpush1.msra.mxu0 %v3825
    %3855 = vmatprep.subr.mxu0 0.0
    %3856 = vmatpush1.msra.mxu0 %v3824
    %3857 = vmatprep.subr.mxu0 0.0
    %3858 = vmatpush1.msra.mxu0 %v3823
    %3859 = vmatprep.subr.mxu0 0.0
    %3860 = vmatpush1.msra.mxu0 %v3822
    %3861 = vmatprep.subr.mxu0 0.0
    %3862 = vmatpush1.msra.mxu0 %v3821
    %3863 = vmatprep.subr.mxu0 0.0
    %3864 = vmatpush1.msra.mxu0 %v3820
    %3865 = vmatprep.subr.mxu0 0.0
    %3866 = vmatpush1.msra.mxu0 %v3819
    %3867 = vmatprep.subr.mxu0 0.0
    %3868 = vmatpush2.msra.mxu0 0.0
    %3869 = vmatprep.subr.mxu0 0.0
    %3870 = vmatpush2.msra.mxu0 0.0
    %3871 = vmatprep.subr.mxu0 0.0
    %3872 = vmatpush2.msra.mxu0 0.0
    %3873 = vmatprep.subr.mxu0 0.0
    %3874 = vmatpush2.msra.mxu0 0.0
    %3875 = vmatprep.subr.mxu0 0.0
    %3876 = vmatpush2.msra.mxu0 0.0
    %3877 = vmatprep.subr.mxu0 0.0
    %3878 = vmatpush2.msra.mxu0 0.0
    %3879 = vmatprep.subr.mxu0 0.0
    %3880 = vmatpush2.msra.mxu0 0.0
    %3881 = vmatprep.subr.mxu0 0.0
    %3882 = vmatpush2.msra.mxu0 0.0
    %3883 = vmatprep.subr.mxu0 0.0
    %3884 = vmatpush2.msra.mxu0 0.0
    %3885 = vmatprep.subr.mxu0 0.0
    %3886 = vmatpush2.msra.mxu0 0.0
    %3887 = vmatprep.subr.mxu0 0.0
    %3888 = vmatpush2.msra.mxu0 0.0
    %3889 = vmatprep.subr.mxu0 0.0
    %3890 = vmatpush2.msra.mxu0 0.0
    %3891 = vmatprep.subr.mxu0 0.0
    %3892 = vmatpush2.msra.mxu0 0.0
    %3893 = vmatprep.subr.mxu0 0.0
    %3894 = vmatpush2.msra.mxu0 0.0
    %3895 = vmatprep.subr.mxu0 0.0
    %3896 = vmatpush2.msra.mxu0 0.0
    %3897 = vmatprep.subr.mxu0 0.0
    %3898 = vmatpush2.msra.mxu0 0.0
    %3899 = vmatprep.mubr.f32.mxu0 0.0
    %3900 = vmatmul.mubr.f32.gmra.mxu0 %v3629
    %v3901 = vpop.f32.mrf.mxu0
    %v3902 = vadd.f32 0.0, %v3901
    %v3903 = vpop.f32.mrf.mxu0
    %3904 = vdwg.mxu0
    %v3905 = vadd.f32 %v3818, %v3902
    %v3906 = vld [vmem:[#allocation2 + $0xc8] sm:$0xff]
    %v3907 = vld [vmem:[#allocation5] sm:$0xff]
    %v3908 = vld [vmem:[#allocation5 + $0x8] sm:$0xff]
    %v3909 = vld [vmem:[#allocation5 + $0x10] sm:$0xff]
    %v3910 = vld [vmem:[#allocation5 + $0x18] sm:$0xff]
    %v3911 = vld [vmem:[#allocation5 + $0x20] sm:$0xff]
    %v3912 = vld [vmem:[#allocation5 + $0x28] sm:$0xff]
    %v3913 = vld [vmem:[#allocation5 + $0x30] sm:$0xff]
    %v3914 = vld [vmem:[#allocation5 + $0x38] sm:$0xff]
    %v3915 = vld [vmem:[#allocation5 + $0x40] sm:$0xff]
    %v3916 = vld [vmem:[#allocation5 + $0x48] sm:$0xff]
    %v3917 = vld [vmem:[#allocation5 + $0x50] sm:$0xff]
    %v3918 = vld [vmem:[#allocation5 + $0x58] sm:$0xff]
    %v3919 = vld [vmem:[#allocation5 + $0x60] sm:$0xff]
    %v3920 = vld [vmem:[#allocation5 + $0x68] sm:$0xff]
    %v3921 = vld [vmem:[#allocation5 + $0x70] sm:$0xff]
    %v3922 = vld [vmem:[#allocation5 + $0x78] sm:$0xff]
    %3923 = vmatprep.subr.mxu0 0.0
    %3924 = vmatpush1.msra.mxu0 %v3922
    %3925 = vmatprep.subr.mxu0 0.0
    %3926 = vmatpush1.msra.mxu0 %v3921
    %3927 = vmatprep.subr.mxu0 0.0
    %3928 = vmatpush1.msra.mxu0 %v3920
    %3929 = vmatprep.subr.mxu0 0.0
    %3930 = vmatpush1.msra.mxu0 %v3919
    %3931 = vmatprep.subr.mxu0 0.0
    %3932 = vmatpush1.msra.mxu0 %v3918
    %3933 = vmatprep.subr.mxu0 0.0
    %3934 = vmatpush1.msra.mxu0 %v3917
    %3935 = vmatprep.subr.mxu0 0.0
    %3936 = vmatpush1.msra.mxu0 %v3916
    %3937 = vmatprep.subr.mxu0 0.0
    %3938 = vmatpush1.msra.mxu0 %v3915
    %3939 = vmatprep.subr.mxu0 0.0
    %3940 = vmatpush1.msra.mxu0 %v3914
    %3941 = vmatprep.subr.mxu0 0.0
    %3942 = vmatpush1.msra.mxu0 %v3913
    %3943 = vmatprep.subr.mxu0 0.0
    %3944 = vmatpush1.msra.mxu0 %v3912
    %3945 = vmatprep.subr.mxu0 0.0
    %3946 = vmatpush1.msra.mxu0 %v3911
    %3947 = vmatprep.subr.mxu0 0.0
    %3948 = vmatpush1.msra.mxu0 %v3910
    %3949 = vmatprep.subr.mxu0 0.0
    %3950 = vmatpush1.msra.mxu0 %v3909
    %3951 = vmatprep.subr.mxu0 0.0
    %3952 = vmatpush1.msra.mxu0 %v3908
    %3953 = vmatprep.subr.mxu0 0.0
    %3954 = vmatpush1.msra.mxu0 %v3907
    %3955 = vmatprep.subr.mxu0 0.0
    %3956 = vmatpush2.msra.mxu0 0.0
    %3957 = vmatprep.subr.mxu0 0.0
    %3958 = vmatpush2.msra.mxu0 0.0
    %3959 = vmatprep.subr.mxu0 0.0
    %3960 = vmatpush2.msra.mxu0 0.0
    %3961 = vmatprep.subr.mxu0 0.0
    %3962 = vmatpush2.msra.mxu0 0.0
    %3963 = vmatprep.subr.mxu0 0.0
    %3964 = vmatpush2.msra.mxu0 0.0
    %3965 = vmatprep.subr.mxu0 0.0
    %3966 = vmatpush2.msra.mxu0 0.0
    %3967 = vmatprep.subr.mxu0 0.0
    %3968 = vmatpush2.msra.mxu0 0.0
    %3969 = vmatprep.subr.mxu0 0.0
    %3970 = vmatpush2.msra.mxu0 0.0
    %3971 = vmatprep.subr.mxu0 0.0
    %3972 = vmatpush2.msra.mxu0 0.0
    %3973 = vmatprep.subr.mxu0 0.0
    %3974 = vmatpush2.msra.mxu0 0.0
    %3975 = vmatprep.subr.mxu0 0.0
    %3976 = vmatpush2.msra.mxu0 0.0
    %3977 = vmatprep.subr.mxu0 0.0
    %3978 = vmatpush2.msra.mxu0 0.0
    %3979 = vmatprep.subr.mxu0 0.0
    %3980 = vmatpush2.msra.mxu0 0.0
    %3981 = vmatprep.subr.mxu0 0.0
    %3982 = vmatpush2.msra.mxu0 0.0
    %3983 = vmatprep.subr.mxu0 0.0
    %3984 = vmatpush2.msra.mxu0 0.0
    %3985 = vmatprep.subr.mxu0 0.0
    %3986 = vmatpush2.msra.mxu0 0.0
    %3987 = vmatprep.mubr.f32.mxu0 0.0
    %3988 = vmatmul.mubr.f32.gmra.mxu0 %v3629
    %v3989 = vpop.f32.mrf.mxu0
    %v3990 = vadd.f32 0.0, %v3989
    %v3991 = vpop.f32.mrf.mxu0
    %3992 = vdwg.mxu0
    %v3993 = vadd.f32 %v3906, %v3990
    %v3994 = vld [vmem:[#allocation2 + $0xd0] sm:$0xff]
    %v3995 = vld [vmem:[#allocation7] sm:$0xff]
    %v3996 = vld [vmem:[#allocation7 + $0x8] sm:$0xff]
    %v3997 = vld [vmem:[#allocation7 + $0x10] sm:$0xff]
    %v3998 = vld [vmem:[#allocation7 + $0x18] sm:$0xff]
    %v3999 = vld [vmem:[#allocation7 + $0x20] sm:$0xff]
    %v4000 = vld [vmem:[#allocation7 + $0x28] sm:$0xff]
    %v4001 = vld [vmem:[#allocation7 + $0x30] sm:$0xff]
    %v4002 = vld [vmem:[#allocation7 + $0x38] sm:$0xff]
    %v4003 = vld [vmem:[#allocation7 + $0x40] sm:$0xff]
    %v4004 = vld [vmem:[#allocation7 + $0x48] sm:$0xff]
    %v4005 = vld [vmem:[#allocation7 + $0x50] sm:$0xff]
    %v4006 = vld [vmem:[#allocation7 + $0x58] sm:$0xff]
    %v4007 = vld [vmem:[#allocation7 + $0x60] sm:$0xff]
    %v4008 = vld [vmem:[#allocation7 + $0x68] sm:$0xff]
    %v4009 = vld [vmem:[#allocation7 + $0x70] sm:$0xff]
    %v4010 = vld [vmem:[#allocation7 + $0x78] sm:$0xff]
    %4011 = vmatprep.subr.mxu0 0.0
    %4012 = vmatpush1.msra.mxu0 %v4010
    %4013 = vmatprep.subr.mxu0 0.0
    %4014 = vmatpush1.msra.mxu0 %v4009
    %4015 = vmatprep.subr.mxu0 0.0
    %4016 = vmatpush1.msra.mxu0 %v4008
    %4017 = vmatprep.subr.mxu0 0.0
    %4018 = vmatpush1.msra.mxu0 %v4007
    %4019 = vmatprep.subr.mxu0 0.0
    %4020 = vmatpush1.msra.mxu0 %v4006
    %4021 = vmatprep.subr.mxu0 0.0
    %4022 = vmatpush1.msra.mxu0 %v4005
    %4023 = vmatprep.subr.mxu0 0.0
    %4024 = vmatpush1.msra.mxu0 %v4004
    %4025 = vmatprep.subr.mxu0 0.0
    %4026 = vmatpush1.msra.mxu0 %v4003
    %4027 = vmatprep.subr.mxu0 0.0
    %4028 = vmatpush1.msra.mxu0 %v4002
    %4029 = vmatprep.subr.mxu0 0.0
    %4030 = vmatpush1.msra.mxu0 %v4001
    %4031 = vmatprep.subr.mxu0 0.0
    %4032 = vmatpush1.msra.mxu0 %v4000
    %4033 = vmatprep.subr.mxu0 0.0
    %4034 = vmatpush1.msra.mxu0 %v3999
    %4035 = vmatprep.subr.mxu0 0.0
    %4036 = vmatpush1.msra.mxu0 %v3998
    %4037 = vmatprep.subr.mxu0 0.0
    %4038 = vmatpush1.msra.mxu0 %v3997
    %4039 = vmatprep.subr.mxu0 0.0
    %4040 = vmatpush1.msra.mxu0 %v3996
    %4041 = vmatprep.subr.mxu0 0.0
    %4042 = vmatpush1.msra.mxu0 %v3995
    %4043 = vmatprep.subr.mxu0 0.0
    %4044 = vmatpush2.msra.mxu0 0.0
    %4045 = vmatprep.subr.mxu0 0.0
    %4046 = vmatpush2.msra.mxu0 0.0
    %4047 = vmatprep.subr.mxu0 0.0
    %4048 = vmatpush2.msra.mxu0 0.0
    %4049 = vmatprep.subr.mxu0 0.0
    %4050 = vmatpush2.msra.mxu0 0.0
    %4051 = vmatprep.subr.mxu0 0.0
    %4052 = vmatpush2.msra.mxu0 0.0
    %4053 = vmatprep.subr.mxu0 0.0
    %4054 = vmatpush2.msra.mxu0 0.0
    %4055 = vmatprep.subr.mxu0 0.0
    %4056 = vmatpush2.msra.mxu0 0.0
    %4057 = vmatprep.subr.mxu0 0.0
    %4058 = vmatpush2.msra.mxu0 0.0
    %4059 = vmatprep.subr.mxu0 0.0
    %4060 = vmatpush2.msra.mxu0 0.0
    %4061 = vmatprep.subr.mxu0 0.0
    %4062 = vmatpush2.msra.mxu0 0.0
    %4063 = vmatprep.subr.mxu0 0.0
    %4064 = vmatpush2.msra.mxu0 0.0
    %4065 = vmatprep.subr.mxu0 0.0
    %4066 = vmatpush2.msra.mxu0 0.0
    %4067 = vmatprep.subr.mxu0 0.0
    %4068 = vmatpush2.msra.mxu0 0.0
    %4069 = vmatprep.subr.mxu0 0.0
    %4070 = vmatpush2.msra.mxu0 0.0
    %4071 = vmatprep.subr.mxu0 0.0
    %4072 = vmatpush2.msra.mxu0 0.0
    %4073 = vmatprep.subr.mxu0 0.0
    %4074 = vmatpush2.msra.mxu0 0.0
    %4075 = vmatprep.mubr.f32.mxu0 0.0
    %4076 = vmatmul.mubr.f32.gmra.mxu0 %v3629
    %v4077 = vpop.f32.mrf.mxu0
    %v4078 = vadd.f32 0.0, %v4077
    %v4079 = vpop.f32.mrf.mxu0
    %4080 = vdwg.mxu0
    %v4081 = vadd.f32 %v3994, %v4078
    %v4082 = vmul.f32 %v3905, 0.5
    %v4083 = vtanh.pop %v4082
    %v4084 = vmul.f32 %v4083, 0.5
    %v4085 = vadd.f32 %v4084, 0.5
    %v4086 = vmul.f32 %v3993, 0.5
    %v4087 = vtanh.pop %v4086
    %v4088 = vmul.f32 %v4087, 0.5
    %v4089 = vadd.f32 %v4088, 0.5
    %v4090 = vtanh.pop %v4081
    %v4091 = vmul.f32 %v4089, %v3535
    %v4092 = vmul.f32 %v4085, %v4090
    %v4093 = vadd.f32 %v4091, %v4092
    %v4094 = vld [vmem:[#allocation2 + $0xd8] sm:$0xff]
    %v4095 = vld [vmem:[#allocation8] sm:$0xff]
    %v4096 = vld [vmem:[#allocation8 + $0x8] sm:$0xff]
    %v4097 = vld [vmem:[#allocation8 + $0x10] sm:$0xff]
    %v4098 = vld [vmem:[#allocation8 + $0x18] sm:$0xff]
    %v4099 = vld [vmem:[#allocation8 + $0x20] sm:$0xff]
    %v4100 = vld [vmem:[#allocation8 + $0x28] sm:$0xff]
    %v4101 = vld [vmem:[#allocation8 + $0x30] sm:$0xff]
    %v4102 = vld [vmem:[#allocation8 + $0x38] sm:$0xff]
    %v4103 = vld [vmem:[#allocation8 + $0x40] sm:$0xff]
    %v4104 = vld [vmem:[#allocation8 + $0x48] sm:$0xff]
    %v4105 = vld [vmem:[#allocation8 + $0x50] sm:$0xff]
    %v4106 = vld [vmem:[#allocation8 + $0x58] sm:$0xff]
    %v4107 = vld [vmem:[#allocation8 + $0x60] sm:$0xff]
    %v4108 = vld [vmem:[#allocation8 + $0x68] sm:$0xff]
    %v4109 = vld [vmem:[#allocation8 + $0x70] sm:$0xff]
    %v4110 = vld [vmem:[#allocation8 + $0x78] sm:$0xff]
    %4111 = vmatprep.subr.mxu0 0.0
    %4112 = vmatpush1.msra.mxu0 %v4110
    %4113 = vmatprep.subr.mxu0 0.0
    %4114 = vmatpush1.msra.mxu0 %v4109
    %4115 = vmatprep.subr.mxu0 0.0
    %4116 = vmatpush1.msra.mxu0 %v4108
    %4117 = vmatprep.subr.mxu0 0.0
    %4118 = vmatpush1.msra.mxu0 %v4107
    %4119 = vmatprep.subr.mxu0 0.0
    %4120 = vmatpush1.msra.mxu0 %v4106
    %4121 = vmatprep.subr.mxu0 0.0
    %4122 = vmatpush1.msra.mxu0 %v4105
    %4123 = vmatprep.subr.mxu0 0.0
    %4124 = vmatpush1.msra.mxu0 %v4104
    %4125 = vmatprep.subr.mxu0 0.0
    %4126 = vmatpush1.msra.mxu0 %v4103
    %4127 = vmatprep.subr.mxu0 0.0
    %4128 = vmatpush1.msra.mxu0 %v4102
    %4129 = vmatprep.subr.mxu0 0.0
    %4130 = vmatpush1.msra.mxu0 %v4101
    %4131 = vmatprep.subr.mxu0 0.0
    %4132 = vmatpush1.msra.mxu0 %v4100
    %4133 = vmatprep.subr.mxu0 0.0
    %4134 = vmatpush1.msra.mxu0 %v4099
    %4135 = vmatprep.subr.mxu0 0.0
    %4136 = vmatpush1.msra.mxu0 %v4098
    %4137 = vmatprep.subr.mxu0 0.0
    %4138 = vmatpush1.msra.mxu0 %v4097
    %4139 = vmatprep.subr.mxu0 0.0
    %4140 = vmatpush1.msra.mxu0 %v4096
    %4141 = vmatprep.subr.mxu0 0.0
    %4142 = vmatpush1.msra.mxu0 %v4095
    %4143 = vmatprep.subr.mxu0 0.0
    %4144 = vmatpush2.msra.mxu0 0.0
    %4145 = vmatprep.subr.mxu0 0.0
    %4146 = vmatpush2.msra.mxu0 0.0
    %4147 = vmatprep.subr.mxu0 0.0
    %4148 = vmatpush2.msra.mxu0 0.0
    %4149 = vmatprep.subr.mxu0 0.0
    %4150 = vmatpush2.msra.mxu0 0.0
    %4151 = vmatprep.subr.mxu0 0.0
    %4152 = vmatpush2.msra.mxu0 0.0
    %4153 = vmatprep.subr.mxu0 0.0
    %4154 = vmatpush2.msra.mxu0 0.0
    %4155 = vmatprep.subr.mxu0 0.0
    %4156 = vmatpush2.msra.mxu0 0.0
    %4157 = vmatprep.subr.mxu0 0.0
    %4158 = vmatpush2.msra.mxu0 0.0
    %4159 = vmatprep.subr.mxu0 0.0
    %4160 = vmatpush2.msra.mxu0 0.0
    %4161 = vmatprep.subr.mxu0 0.0
    %4162 = vmatpush2.msra.mxu0 0.0
    %4163 = vmatprep.subr.mxu0 0.0
    %4164 = vmatpush2.msra.mxu0 0.0
    %4165 = vmatprep.subr.mxu0 0.0
    %4166 = vmatpush2.msra.mxu0 0.0
    %4167 = vmatprep.subr.mxu0 0.0
    %4168 = vmatpush2.msra.mxu0 0.0
    %4169 = vmatprep.subr.mxu0 0.0
    %4170 = vmatpush2.msra.mxu0 0.0
    %4171 = vmatprep.subr.mxu0 0.0
    %4172 = vmatpush2.msra.mxu0 0.0
    %4173 = vmatprep.subr.mxu0 0.0
    %4174 = vmatpush2.msra.mxu0 0.0
    %4175 = vmatprep.mubr.f32.mxu0 0.0
    %4176 = vmatmul.mubr.f32.gmra.mxu0 %v3629
    %v4177 = vpop.f32.mrf.mxu0
    %v4178 = vadd.f32 0.0, %v4177
    %v4179 = vpop.f32.mrf.mxu0
    %4180 = vdwg.mxu0
    %v4181 = vadd.f32 %v4094, %v4178
    %v4182 = vmul.f32 %v4181, 0.5
    %v4183 = vtanh.pop %v4182
    %v4184 = vmul.f32 %v4183, 0.5
    %v4185 = vadd.f32 %v4184, 0.5
    %v4186 = vtanh.pop %v4093
    %v4187 = vmul.f32 %v4185, %v4186
    %v4188 = vld [vmem:[#allocation10] sm:$0xff]
    %v4189 = vld [vmem:[#allocation10 + $0x8] sm:$0xff]
    %v4190 = vld [vmem:[#allocation10 + $0x10] sm:$0xff]
    %v4191 = vld [vmem:[#allocation10 + $0x18] sm:$0xff]
    %v4192 = vld [vmem:[#allocation10 + $0x20] sm:$0xff]
    %v4193 = vld [vmem:[#allocation10 + $0x28] sm:$0xff]
    %v4194 = vld [vmem:[#allocation10 + $0x30] sm:$0xff]
    %v4195 = vld [vmem:[#allocation10 + $0x38] sm:$0xff]
    %v4196 = vld [vmem:[#allocation10 + $0x40] sm:$0xff]
    %v4197 = vld [vmem:[#allocation10 + $0x48] sm:$0xff]
    %v4198 = vld [vmem:[#allocation10 + $0x50] sm:$0xff]
    %v4199 = vld [vmem:[#allocation10 + $0x58] sm:$0xff]
    %v4200 = vld [vmem:[#allocation10 + $0x60] sm:$0xff]
    %v4201 = vld [vmem:[#allocation10 + $0x68] sm:$0xff]
    %v4202 = vld [vmem:[#allocation10 + $0x70] sm:$0xff]
    %v4203 = vld [vmem:[#allocation10 + $0x78] sm:$0xff]
    %v4204 = vld [vmem:[%s10] sm:$0x1]
    %v4206 = vlaneseq
    %v4207 = vshrl.u32 %v4206, 7
    %v4208 = vsub.s32 0, %v4207
    %v4209 = vrot.slane %v4204, %v4208
    %4211 = vmatprep.subr.mxu0 0.0
    %4212 = vmatpush1.msra.mxu0 %v4203
    %4213 = vmatprep.subr.mxu0 0.0
    %4214 = vmatpush1.msra.mxu0 %v4202
    %4215 = vmatprep.subr.mxu0 0.0
    %4216 = vmatpush1.msra.mxu0 %v4201
    %4217 = vmatprep.subr.mxu0 0.0
    %4218 = vmatpush1.msra.mxu0 %v4200
    %4219 = vmatprep.subr.mxu0 0.0
    %4220 = vmatpush1.msra.mxu0 %v4199
    %4221 = vmatprep.subr.mxu0 0.0
    %4222 = vmatpush1.msra.mxu0 %v4198
    %4223 = vmatprep.subr.mxu0 0.0
    %4224 = vmatpush1.msra.mxu0 %v4197
    %4225 = vmatprep.subr.mxu0 0.0
    %4226 = vmatpush1.msra.mxu0 %v4196
    %4227 = vmatprep.subr.mxu0 0.0
    %4228 = vmatpush1.msra.mxu0 %v4195
    %4229 = vmatprep.subr.mxu0 0.0
    %4230 = vmatpush1.msra.mxu0 %v4194
    %4231 = vmatprep.subr.mxu0 0.0
    %4232 = vmatpush1.msra.mxu0 %v4193
    %4233 = vmatprep.subr.mxu0 0.0
    %4234 = vmatpush1.msra.mxu0 %v4192
    %4235 = vmatprep.subr.mxu0 0.0
    %4236 = vmatpush1.msra.mxu0 %v4191
    %4237 = vmatprep.subr.mxu0 0.0
    %4238 = vmatpush1.msra.mxu0 %v4190
    %4239 = vmatprep.subr.mxu0 0.0
    %4240 = vmatpush1.msra.mxu0 %v4189
    %4241 = vmatprep.subr.mxu0 0.0
    %4242 = vmatpush1.msra.mxu0 %v4188
    %4243 = vmatprep.subr.mxu0 0.0
    %4244 = vmatpush2.msra.mxu0 0.0
    %4245 = vmatprep.subr.mxu0 0.0
    %4246 = vmatpush2.msra.mxu0 0.0
    %4247 = vmatprep.subr.mxu0 0.0
    %4248 = vmatpush2.msra.mxu0 0.0
    %4249 = vmatprep.subr.mxu0 0.0
    %4250 = vmatpush2.msra.mxu0 0.0
    %4251 = vmatprep.subr.mxu0 0.0
    %4252 = vmatpush2.msra.mxu0 0.0
    %4253 = vmatprep.subr.mxu0 0.0
    %4254 = vmatpush2.msra.mxu0 0.0
    %4255 = vmatprep.subr.mxu0 0.0
    %4256 = vmatpush2.msra.mxu0 0.0
    %4257 = vmatprep.subr.mxu0 0.0
    %4258 = vmatpush2.msra.mxu0 0.0
    %4259 = vmatprep.subr.mxu0 0.0
    %4260 = vmatpush2.msra.mxu0 0.0
    %4261 = vmatprep.subr.mxu0 0.0
    %4262 = vmatpush2.msra.mxu0 0.0
    %4263 = vmatprep.subr.mxu0 0.0
    %4264 = vmatpush2.msra.mxu0 0.0
    %4265 = vmatprep.subr.mxu0 0.0
    %4266 = vmatpush2.msra.mxu0 0.0
    %4267 = vmatprep.subr.mxu0 0.0
    %4268 = vmatpush2.msra.mxu0 0.0
    %4269 = vmatprep.subr.mxu0 0.0
    %4270 = vmatpush2.msra.mxu0 0.0
    %4271 = vmatprep.subr.mxu0 0.0
    %4272 = vmatpush2.msra.mxu0 0.0
    %4273 = vmatprep.subr.mxu0 0.0
    %4274 = vmatpush2.msra.mxu0 0.0
    %4275 = vmatprep.mubr.f32.mxu0 0.0
    %4276 = vmatmul.mubr.f32.gmra.mxu0 %v4187
    %v4277 = vpop.f32.mrf.mxu0
    %v4278 = vadd.f32 %v4209, %v4277
    %v4279 = vpop.f32.mrf.mxu0
    %4280 = vdwg.mxu0
    %v4281 = vtanh.pop %v4278
    %v4282 = vld [vmem:[#allocation11] sm:$0xff]
    %v4283 = vld [vmem:[#allocation11 + $0x8] sm:$0xff]
    %v4284 = vld [vmem:[#allocation11 + $0x10] sm:$0xff]
    %v4285 = vld [vmem:[#allocation11 + $0x18] sm:$0xff]
    %v4286 = vld [vmem:[#allocation11 + $0x20] sm:$0xff]
    %v4287 = vld [vmem:[#allocation11 + $0x28] sm:$0xff]
    %v4288 = vld [vmem:[#allocation11 + $0x30] sm:$0xff]
    %v4289 = vld [vmem:[#allocation11 + $0x38] sm:$0xff]
    %v4290 = vld [vmem:[#allocation11 + $0x40] sm:$0xff]
    %v4291 = vld [vmem:[#allocation11 + $0x48] sm:$0xff]
    %v4292 = vld [vmem:[#allocation11 + $0x50] sm:$0xff]
    %v4293 = vld [vmem:[#allocation11 + $0x58] sm:$0xff]
    %v4294 = vld [vmem:[#allocation11 + $0x60] sm:$0xff]
    %v4295 = vld [vmem:[#allocation11 + $0x68] sm:$0xff]
    %v4296 = vld [vmem:[#allocation11 + $0x70] sm:$0xff]
    %v4297 = vld [vmem:[#allocation11 + $0x78] sm:$0xff]
    %v4298 = vld [vmem:[%s12] sm:$0x1]
    %v4300 = vlaneseq
    %v4301 = vshrl.u32 %v4300, 7
    %v4302 = vsub.s32 0, %v4301
    %v4303 = vrot.slane %v4298, %v4302
    %4305 = vmatprep.subr.mxu0 0.0
    %4306 = vmatpush1.msra.mxu0 %v4297
    %4307 = vmatprep.subr.mxu0 0.0
    %4308 = vmatpush1.msra.mxu0 %v4296
    %4309 = vmatprep.subr.mxu0 0.0
    %4310 = vmatpush1.msra.mxu0 %v4295
    %4311 = vmatprep.subr.mxu0 0.0
    %4312 = vmatpush1.msra.mxu0 %v4294
    %4313 = vmatprep.subr.mxu0 0.0
    %4314 = vmatpush1.msra.mxu0 %v4293
    %4315 = vmatprep.subr.mxu0 0.0
    %4316 = vmatpush1.msra.mxu0 %v4292
    %4317 = vmatprep.subr.mxu0 0.0
    %4318 = vmatpush1.msra.mxu0 %v4291
    %4319 = vmatprep.subr.mxu0 0.0
    %4320 = vmatpush1.msra.mxu0 %v4290
    %4321 = vmatprep.subr.mxu0 0.0
    %4322 = vmatpush1.msra.mxu0 %v4289
    %4323 = vmatprep.subr.mxu0 0.0
    %4324 = vmatpush1.msra.mxu0 %v4288
    %4325 = vmatprep.subr.mxu0 0.0
    %4326 = vmatpush1.msra.mxu0 %v4287
    %4327 = vmatprep.subr.mxu0 0.0
    %4328 = vmatpush1.msra.mxu0 %v4286
    %4329 = vmatprep.subr.mxu0 0.0
    %4330 = vmatpush1.msra.mxu0 %v4285
    %4331 = vmatprep.subr.mxu0 0.0
    %4332 = vmatpush1.msra.mxu0 %v4284
    %4333 = vmatprep.subr.mxu0 0.0
    %4334 = vmatpush1.msra.mxu0 %v4283
    %4335 = vmatprep.subr.mxu0 0.0
    %4336 = vmatpush1.msra.mxu0 %v4282
    %4337 = vmatprep.subr.mxu0 0.0
    %4338 = vmatpush2.msra.mxu0 0.0
    %4339 = vmatprep.subr.mxu0 0.0
    %4340 = vmatpush2.msra.mxu0 0.0
    %4341 = vmatprep.subr.mxu0 0.0
    %4342 = vmatpush2.msra.mxu0 0.0
    %4343 = vmatprep.subr.mxu0 0.0
    %4344 = vmatpush2.msra.mxu0 0.0
    %4345 = vmatprep.subr.mxu0 0.0
    %4346 = vmatpush2.msra.mxu0 0.0
    %4347 = vmatprep.subr.mxu0 0.0
    %4348 = vmatpush2.msra.mxu0 0.0
    %4349 = vmatprep.subr.mxu0 0.0
    %4350 = vmatpush2.msra.mxu0 0.0
    %4351 = vmatprep.subr.mxu0 0.0
    %4352 = vmatpush2.msra.mxu0 0.0
    %4353 = vmatprep.subr.mxu0 0.0
    %4354 = vmatpush2.msra.mxu0 0.0
    %4355 = vmatprep.subr.mxu0 0.0
    %4356 = vmatpush2.msra.mxu0 0.0
    %4357 = vmatprep.subr.mxu0 0.0
    %4358 = vmatpush2.msra.mxu0 0.0
    %4359 = vmatprep.subr.mxu0 0.0
    %4360 = vmatpush2.msra.mxu0 0.0
    %4361 = vmatprep.subr.mxu0 0.0
    %4362 = vmatpush2.msra.mxu0 0.0
    %4363 = vmatprep.subr.mxu0 0.0
    %4364 = vmatpush2.msra.mxu0 0.0
    %4365 = vmatprep.subr.mxu0 0.0
    %4366 = vmatpush2.msra.mxu0 0.0
    %4367 = vmatprep.subr.mxu0 0.0
    %4368 = vmatpush2.msra.mxu0 0.0
    %4369 = vmatprep.mubr.f32.mxu0 0.0
    %4370 = vmatmul.mubr.f32.gmra.mxu0 %v4281
    %v4371 = vpop.f32.mrf.mxu0
    %v4372 = vadd.f32 %v4303, %v4371
    %v4373 = vpop.f32.mrf.mxu0
    %4374 = vdwg.mxu0
    %4375 = vst [vmem:[%s13 + $0x30] sm:$0xff] %v4372
    %v4376 = vld [vmem:[#allocation2 + $0xe0] sm:$0xff]
    %v4377 = vld [vmem:[%s5] sm:$0xff]
    %v4378 = vld [vmem:[%s5 + $0x8] sm:$0xff]
    %v4379 = vld [vmem:[%s5 + $0x10] sm:$0xff]
    %v4380 = vld [vmem:[%s5 + $0x18] sm:$0xff]
    %v4381 = vld [vmem:[%s5 + $0x20] sm:$0xff]
    %v4382 = vld [vmem:[%s5 + $0x28] sm:$0xff]
    %v4383 = vld [vmem:[%s5 + $0x30] sm:$0xff]
    %v4384 = vld [vmem:[%s5 + $0x38] sm:$0xff]
    %v4385 = vld [vmem:[%s5 + $0x40] sm:$0xff]
    %v4386 = vld [vmem:[%s5 + $0x48] sm:$0xff]
    %v4387 = vld [vmem:[%s5 + $0x50] sm:$0xff]
    %v4388 = vld [vmem:[%s5 + $0x58] sm:$0xff]
    %v4389 = vld [vmem:[%s5 + $0x60] sm:$0xff]
    %v4390 = vld [vmem:[%s5 + $0x68] sm:$0xff]
    %v4391 = vld [vmem:[%s5 + $0x70] sm:$0xff]
    %v4392 = vld [vmem:[%s5 + $0x78] sm:$0xff]
    %4393 = vmatprep.subr.mxu0 0.0
    %4394 = vmatpush1.msra.mxu0 %v4392
    %4395 = vmatprep.subr.mxu0 0.0
    %4396 = vmatpush1.msra.mxu0 %v4391
    %4397 = vmatprep.subr.mxu0 0.0
    %4398 = vmatpush1.msra.mxu0 %v4390
    %4399 = vmatprep.subr.mxu0 0.0
    %4400 = vmatpush1.msra.mxu0 %v4389
    %4401 = vmatprep.subr.mxu0 0.0
    %4402 = vmatpush1.msra.mxu0 %v4388
    %4403 = vmatprep.subr.mxu0 0.0
    %4404 = vmatpush1.msra.mxu0 %v4387
    %4405 = vmatprep.subr.mxu0 0.0
    %4406 = vmatpush1.msra.mxu0 %v4386
    %4407 = vmatprep.subr.mxu0 0.0
    %4408 = vmatpush1.msra.mxu0 %v4385
    %4409 = vmatprep.subr.mxu0 0.0
    %4410 = vmatpush1.msra.mxu0 %v4384
    %4411 = vmatprep.subr.mxu0 0.0
    %4412 = vmatpush1.msra.mxu0 %v4383
    %4413 = vmatprep.subr.mxu0 0.0
    %4414 = vmatpush1.msra.mxu0 %v4382
    %4415 = vmatprep.subr.mxu0 0.0
    %4416 = vmatpush1.msra.mxu0 %v4381
    %4417 = vmatprep.subr.mxu0 0.0
    %4418 = vmatpush1.msra.mxu0 %v4380
    %4419 = vmatprep.subr.mxu0 0.0
    %4420 = vmatpush1.msra.mxu0 %v4379
    %4421 = vmatprep.subr.mxu0 0.0
    %4422 = vmatpush1.msra.mxu0 %v4378
    %4423 = vmatprep.subr.mxu0 0.0
    %4424 = vmatpush1.msra.mxu0 %v4377
    %4425 = vmatprep.subr.mxu0 0.0
    %4426 = vmatpush2.msra.mxu0 0.0
    %4427 = vmatprep.subr.mxu0 0.0
    %4428 = vmatpush2.msra.mxu0 0.0
    %4429 = vmatprep.subr.mxu0 0.0
    %4430 = vmatpush2.msra.mxu0 0.0
    %4431 = vmatprep.subr.mxu0 0.0
    %4432 = vmatpush2.msra.mxu0 0.0
    %4433 = vmatprep.subr.mxu0 0.0
    %4434 = vmatpush2.msra.mxu0 0.0
    %4435 = vmatprep.subr.mxu0 0.0
    %4436 = vmatpush2.msra.mxu0 0.0
    %4437 = vmatprep.subr.mxu0 0.0
    %4438 = vmatpush2.msra.mxu0 0.0
    %4439 = vmatprep.subr.mxu0 0.0
    %4440 = vmatpush2.msra.mxu0 0.0
    %4441 = vmatprep.subr.mxu0 0.0
    %4442 = vmatpush2.msra.mxu0 0.0
    %4443 = vmatprep.subr.mxu0 0.0
    %4444 = vmatpush2.msra.mxu0 0.0
    %4445 = vmatprep.subr.mxu0 0.0
    %4446 = vmatpush2.msra.mxu0 0.0
    %4447 = vmatprep.subr.mxu0 0.0
    %4448 = vmatpush2.msra.mxu0 0.0
    %4449 = vmatprep.subr.mxu0 0.0
    %4450 = vmatpush2.msra.mxu0 0.0
    %4451 = vmatprep.subr.mxu0 0.0
    %4452 = vmatpush2.msra.mxu0 0.0
    %4453 = vmatprep.subr.mxu0 0.0
    %4454 = vmatpush2.msra.mxu0 0.0
    %4455 = vmatprep.subr.mxu0 0.0
    %4456 = vmatpush2.msra.mxu0 0.0
    %4457 = vmatprep.mubr.f32.mxu0 0.0
    %4458 = vmatmul.mubr.f32.gmra.mxu0 %v4187
    %v4459 = vpop.f32.mrf.mxu0
    %v4460 = vadd.f32 0.0, %v4459
    %v4461 = vpop.f32.mrf.mxu0
    %4462 = vdwg.mxu0
    %v4463 = vadd.f32 %v4376, %v4460
    %v4464 = vld [vmem:[#allocation2 + $0xe8] sm:$0xff]
    %v4465 = vld [vmem:[#allocation5] sm:$0xff]
    %v4466 = vld [vmem:[#allocation5 + $0x8] sm:$0xff]
    %v4467 = vld [vmem:[#allocation5 + $0x10] sm:$0xff]
    %v4468 = vld [vmem:[#allocation5 + $0x18] sm:$0xff]
    %v4469 = vld [vmem:[#allocation5 + $0x20] sm:$0xff]
    %v4470 = vld [vmem:[#allocation5 + $0x28] sm:$0xff]
    %v4471 = vld [vmem:[#allocation5 + $0x30] sm:$0xff]
    %v4472 = vld [vmem:[#allocation5 + $0x38] sm:$0xff]
    %v4473 = vld [vmem:[#allocation5 + $0x40] sm:$0xff]
    %v4474 = vld [vmem:[#allocation5 + $0x48] sm:$0xff]
    %v4475 = vld [vmem:[#allocation5 + $0x50] sm:$0xff]
    %v4476 = vld [vmem:[#allocation5 + $0x58] sm:$0xff]
    %v4477 = vld [vmem:[#allocation5 + $0x60] sm:$0xff]
    %v4478 = vld [vmem:[#allocation5 + $0x68] sm:$0xff]
    %v4479 = vld [vmem:[#allocation5 + $0x70] sm:$0xff]
    %v4480 = vld [vmem:[#allocation5 + $0x78] sm:$0xff]
    %4481 = vmatprep.subr.mxu0 0.0
    %4482 = vmatpush1.msra.mxu0 %v4480
    %4483 = vmatprep.subr.mxu0 0.0
    %4484 = vmatpush1.msra.mxu0 %v4479
    %4485 = vmatprep.subr.mxu0 0.0
    %4486 = vmatpush1.msra.mxu0 %v4478
    %4487 = vmatprep.subr.mxu0 0.0
    %4488 = vmatpush1.msra.mxu0 %v4477
    %4489 = vmatprep.subr.mxu0 0.0
    %4490 = vmatpush1.msra.mxu0 %v4476
    %4491 = vmatprep.subr.mxu0 0.0
    %4492 = vmatpush1.msra.mxu0 %v4475
    %4493 = vmatprep.subr.mxu0 0.0
    %4494 = vmatpush1.msra.mxu0 %v4474
    %4495 = vmatprep.subr.mxu0 0.0
    %4496 = vmatpush1.msra.mxu0 %v4473
    %4497 = vmatprep.subr.mxu0 0.0
    %4498 = vmatpush1.msra.mxu0 %v4472
    %4499 = vmatprep.subr.mxu0 0.0
    %4500 = vmatpush1.msra.mxu0 %v4471
    %4501 = vmatprep.subr.mxu0 0.0
    %4502 = vmatpush1.msra.mxu0 %v4470
    %4503 = vmatprep.subr.mxu0 0.0
    %4504 = vmatpush1.msra.mxu0 %v4469
    %4505 = vmatprep.subr.mxu0 0.0
    %4506 = vmatpush1.msra.mxu0 %v4468
    %4507 = vmatprep.subr.mxu0 0.0
    %4508 = vmatpush1.msra.mxu0 %v4467
    %4509 = vmatprep.subr.mxu0 0.0
    %4510 = vmatpush1.msra.mxu0 %v4466
    %4511 = vmatprep.subr.mxu0 0.0
    %4512 = vmatpush1.msra.mxu0 %v4465
    %4513 = vmatprep.subr.mxu0 0.0
    %4514 = vmatpush2.msra.mxu0 0.0
    %4515 = vmatprep.subr.mxu0 0.0
    %4516 = vmatpush2.msra.mxu0 0.0
    %4517 = vmatprep.subr.mxu0 0.0
    %4518 = vmatpush2.msra.mxu0 0.0
    %4519 = vmatprep.subr.mxu0 0.0
    %4520 = vmatpush2.msra.mxu0 0.0
    %4521 = vmatprep.subr.mxu0 0.0
    %4522 = vmatpush2.msra.mxu0 0.0
    %4523 = vmatprep.subr.mxu0 0.0
    %4524 = vmatpush2.msra.mxu0 0.0
    %4525 = vmatprep.subr.mxu0 0.0
    %4526 = vmatpush2.msra.mxu0 0.0
    %4527 = vmatprep.subr.mxu0 0.0
    %4528 = vmatpush2.msra.mxu0 0.0
    %4529 = vmatprep.subr.mxu0 0.0
    %4530 = vmatpush2.msra.mxu0 0.0
    %4531 = vmatprep.subr.mxu0 0.0
    %4532 = vmatpush2.msra.mxu0 0.0
    %4533 = vmatprep.subr.mxu0 0.0
    %4534 = vmatpush2.msra.mxu0 0.0
    %4535 = vmatprep.subr.mxu0 0.0
    %4536 = vmatpush2.msra.mxu0 0.0
    %4537 = vmatprep.subr.mxu0 0.0
    %4538 = vmatpush2.msra.mxu0 0.0
    %4539 = vmatprep.subr.mxu0 0.0
    %4540 = vmatpush2.msra.mxu0 0.0
    %4541 = vmatprep.subr.mxu0 0.0
    %4542 = vmatpush2.msra.mxu0 0.0
    %4543 = vmatprep.subr.mxu0 0.0
    %4544 = vmatpush2.msra.mxu0 0.0
    %4545 = vmatprep.mubr.f32.mxu0 0.0
    %4546 = vmatmul.mubr.f32.gmra.mxu0 %v4187
    %v4547 = vpop.f32.mrf.mxu0
    %v4548 = vadd.f32 0.0, %v4547
    %v4549 = vpop.f32.mrf.mxu0
    %4550 = vdwg.mxu0
    %v4551 = vadd.f32 %v4464, %v4548
    %v4552 = vld [vmem:[#allocation2 + $0xf0] sm:$0xff]
    %v4553 = vld [vmem:[#allocation7] sm:$0xff]
    %v4554 = vld [vmem:[#allocation7 + $0x8] sm:$0xff]
    %v4555 = vld [vmem:[#allocation7 + $0x10] sm:$0xff]
    %v4556 = vld [vmem:[#allocation7 + $0x18] sm:$0xff]
    %v4557 = vld [vmem:[#allocation7 + $0x20] sm:$0xff]
    %v4558 = vld [vmem:[#allocation7 + $0x28] sm:$0xff]
    %v4559 = vld [vmem:[#allocation7 + $0x30] sm:$0xff]
    %v4560 = vld [vmem:[#allocation7 + $0x38] sm:$0xff]
    %v4561 = vld [vmem:[#allocation7 + $0x40] sm:$0xff]
    %v4562 = vld [vmem:[#allocation7 + $0x48] sm:$0xff]
    %v4563 = vld [vmem:[#allocation7 + $0x50] sm:$0xff]
    %v4564 = vld [vmem:[#allocation7 + $0x58] sm:$0xff]
    %v4565 = vld [vmem:[#allocation7 + $0x60] sm:$0xff]
    %v4566 = vld [vmem:[#allocation7 + $0x68] sm:$0xff]
    %v4567 = vld [vmem:[#allocation7 + $0x70] sm:$0xff]
    %v4568 = vld [vmem:[#allocation7 + $0x78] sm:$0xff]
    %4569 = vmatprep.subr.mxu0 0.0
    %4570 = vmatpush1.msra.mxu0 %v4568
    %4571 = vmatprep.subr.mxu0 0.0
    %4572 = vmatpush1.msra.mxu0 %v4567
    %4573 = vmatprep.subr.mxu0 0.0
    %4574 = vmatpush1.msra.mxu0 %v4566
    %4575 = vmatprep.subr.mxu0 0.0
    %4576 = vmatpush1.msra.mxu0 %v4565
    %4577 = vmatprep.subr.mxu0 0.0
    %4578 = vmatpush1.msra.mxu0 %v4564
    %4579 = vmatprep.subr.mxu0 0.0
    %4580 = vmatpush1.msra.mxu0 %v4563
    %4581 = vmatprep.subr.mxu0 0.0
    %4582 = vmatpush1.msra.mxu0 %v4562
    %4583 = vmatprep.subr.mxu0 0.0
    %4584 = vmatpush1.msra.mxu0 %v4561
    %4585 = vmatprep.subr.mxu0 0.0
    %4586 = vmatpush1.msra.mxu0 %v4560
    %4587 = vmatprep.subr.mxu0 0.0
    %4588 = vmatpush1.msra.mxu0 %v4559
    %4589 = vmatprep.subr.mxu0 0.0
    %4590 = vmatpush1.msra.mxu0 %v4558
    %4591 = vmatprep.subr.mxu0 0.0
    %4592 = vmatpush1.msra.mxu0 %v4557
    %4593 = vmatprep.subr.mxu0 0.0
    %4594 = vmatpush1.msra.mxu0 %v4556
    %4595 = vmatprep.subr.mxu0 0.0
    %4596 = vmatpush1.msra.mxu0 %v4555
    %4597 = vmatprep.subr.mxu0 0.0
    %4598 = vmatpush1.msra.mxu0 %v4554
    %4599 = vmatprep.subr.mxu0 0.0
    %4600 = vmatpush1.msra.mxu0 %v4553
    %4601 = vmatprep.subr.mxu0 0.0
    %4602 = vmatpush2.msra.mxu0 0.0
    %4603 = vmatprep.subr.mxu0 0.0
    %4604 = vmatpush2.msra.mxu0 0.0
    %4605 = vmatprep.subr.mxu0 0.0
    %4606 = vmatpush2.msra.mxu0 0.0
    %4607 = vmatprep.subr.mxu0 0.0
    %4608 = vmatpush2.msra.mxu0 0.0
    %4609 = vmatprep.subr.mxu0 0.0
    %4610 = vmatpush2.msra.mxu0 0.0
    %4611 = vmatprep.subr.mxu0 0.0
    %4612 = vmatpush2.msra.mxu0 0.0
    %4613 = vmatprep.subr.mxu0 0.0
    %4614 = vmatpush2.msra.mxu0 0.0
    %4615 = vmatprep.subr.mxu0 0.0
    %4616 = vmatpush2.msra.mxu0 0.0
    %4617 = vmatprep.subr.mxu0 0.0
    %4618 = vmatpush2.msra.mxu0 0.0
    %4619 = vmatprep.subr.mxu0 0.0
    %4620 = vmatpush2.msra.mxu0 0.0
    %4621 = vmatprep.subr.mxu0 0.0
    %4622 = vmatpush2.msra.mxu0 0.0
    %4623 = vmatprep.subr.mxu0 0.0
    %4624 = vmatpush2.msra.mxu0 0.0
    %4625 = vmatprep.subr.mxu0 0.0
    %4626 = vmatpush2.msra.mxu0 0.0
    %4627 = vmatprep.subr.mxu0 0.0
    %4628 = vmatpush2.msra.mxu0 0.0
    %4629 = vmatprep.subr.mxu0 0.0
    %4630 = vmatpush2.msra.mxu0 0.0
    %4631 = vmatprep.subr.mxu0 0.0
    %4632 = vmatpush2.msra.mxu0 0.0
    %4633 = vmatprep.mubr.f32.mxu0 0.0
    %4634 = vmatmul.mubr.f32.gmra.mxu0 %v4187
    %v4635 = vpop.f32.mrf.mxu0
    %v4636 = vadd.f32 0.0, %v4635
    %v4637 = vpop.f32.mrf.mxu0
    %4638 = vdwg.mxu0
    %v4639 = vadd.f32 %v4552, %v4636
    %v4640 = vmul.f32 %v4463, 0.5
    %v4641 = vtanh.pop %v4640
    %v4642 = vmul.f32 %v4641, 0.5
    %v4643 = vadd.f32 %v4642, 0.5
    %v4644 = vmul.f32 %v4551, 0.5
    %v4645 = vtanh.pop %v4644
    %v4646 = vmul.f32 %v4645, 0.5
    %v4647 = vadd.f32 %v4646, 0.5
    %v4648 = vtanh.pop %v4639
    %v4649 = vmul.f32 %v4647, %v4093
    %v4650 = vmul.f32 %v4643, %v4648
    %v4651 = vadd.f32 %v4649, %v4650
    %v4652 = vld [vmem:[#allocation2 + $0xf8] sm:$0xff]
    %v4653 = vld [vmem:[#allocation8] sm:$0xff]
    %v4654 = vld [vmem:[#allocation8 + $0x8] sm:$0xff]
    %v4655 = vld [vmem:[#allocation8 + $0x10] sm:$0xff]
    %v4656 = vld [vmem:[#allocation8 + $0x18] sm:$0xff]
    %v4657 = vld [vmem:[#allocation8 + $0x20] sm:$0xff]
    %v4658 = vld [vmem:[#allocation8 + $0x28] sm:$0xff]
    %v4659 = vld [vmem:[#allocation8 + $0x30] sm:$0xff]
    %v4660 = vld [vmem:[#allocation8 + $0x38] sm:$0xff]
    %v4661 = vld [vmem:[#allocation8 + $0x40] sm:$0xff]
    %v4662 = vld [vmem:[#allocation8 + $0x48] sm:$0xff]
    %v4663 = vld [vmem:[#allocation8 + $0x50] sm:$0xff]
    %v4664 = vld [vmem:[#allocation8 + $0x58] sm:$0xff]
    %v4665 = vld [vmem:[#allocation8 + $0x60] sm:$0xff]
    %v4666 = vld [vmem:[#allocation8 + $0x68] sm:$0xff]
    %v4667 = vld [vmem:[#allocation8 + $0x70] sm:$0xff]
    %v4668 = vld [vmem:[#allocation8 + $0x78] sm:$0xff]
    %4669 = vmatprep.subr.mxu0 0.0
    %4670 = vmatpush1.msra.mxu0 %v4668
    %4671 = vmatprep.subr.mxu0 0.0
    %4672 = vmatpush1.msra.mxu0 %v4667
    %4673 = vmatprep.subr.mxu0 0.0
    %4674 = vmatpush1.msra.mxu0 %v4666
    %4675 = vmatprep.subr.mxu0 0.0
    %4676 = vmatpush1.msra.mxu0 %v4665
    %4677 = vmatprep.subr.mxu0 0.0
    %4678 = vmatpush1.msra.mxu0 %v4664
    %4679 = vmatprep.subr.mxu0 0.0
    %4680 = vmatpush1.msra.mxu0 %v4663
    %4681 = vmatprep.subr.mxu0 0.0
    %4682 = vmatpush1.msra.mxu0 %v4662
    %4683 = vmatprep.subr.mxu0 0.0
    %4684 = vmatpush1.msra.mxu0 %v4661
    %4685 = vmatprep.subr.mxu0 0.0
    %4686 = vmatpush1.msra.mxu0 %v4660
    %4687 = vmatprep.subr.mxu0 0.0
    %4688 = vmatpush1.msra.mxu0 %v4659
    %4689 = vmatprep.subr.mxu0 0.0
    %4690 = vmatpush1.msra.mxu0 %v4658
    %4691 = vmatprep.subr.mxu0 0.0
    %4692 = vmatpush1.msra.mxu0 %v4657
    %4693 = vmatprep.subr.mxu0 0.0
    %4694 = vmatpush1.msra.mxu0 %v4656
    %4695 = vmatprep.subr.mxu0 0.0
    %4696 = vmatpush1.msra.mxu0 %v4655
    %4697 = vmatprep.subr.mxu0 0.0
    %4698 = vmatpush1.msra.mxu0 %v4654
    %4699 = vmatprep.subr.mxu0 0.0
    %4700 = vmatpush1.msra.mxu0 %v4653
    %4701 = vmatprep.subr.mxu0 0.0
    %4702 = vmatpush2.msra.mxu0 0.0
    %4703 = vmatprep.subr.mxu0 0.0
    %4704 = vmatpush2.msra.mxu0 0.0
    %4705 = vmatprep.subr.mxu0 0.0
    %4706 = vmatpush2.msra.mxu0 0.0
    %4707 = vmatprep.subr.mxu0 0.0
    %4708 = vmatpush2.msra.mxu0 0.0
    %4709 = vmatprep.subr.mxu0 0.0
    %4710 = vmatpush2.msra.mxu0 0.0
    %4711 = vmatprep.subr.mxu0 0.0
    %4712 = vmatpush2.msra.mxu0 0.0
    %4713 = vmatprep.subr.mxu0 0.0
    %4714 = vmatpush2.msra.mxu0 0.0
    %4715 = vmatprep.subr.mxu0 0.0
    %4716 = vmatpush2.msra.mxu0 0.0
    %4717 = vmatprep.subr.mxu0 0.0
    %4718 = vmatpush2.msra.mxu0 0.0
    %4719 = vmatprep.subr.mxu0 0.0
    %4720 = vmatpush2.msra.mxu0 0.0
    %4721 = vmatprep.subr.mxu0 0.0
    %4722 = vmatpush2.msra.mxu0 0.0
    %4723 = vmatprep.subr.mxu0 0.0
    %4724 = vmatpush2.msra.mxu0 0.0
    %4725 = vmatprep.subr.mxu0 0.0
    %4726 = vmatpush2.msra.mxu0 0.0
    %4727 = vmatprep.subr.mxu0 0.0
    %4728 = vmatpush2.msra.mxu0 0.0
    %4729 = vmatprep.subr.mxu0 0.0
    %4730 = vmatpush2.msra.mxu0 0.0
    %4731 = vmatprep.subr.mxu0 0.0
    %4732 = vmatpush2.msra.mxu0 0.0
    %4733 = vmatprep.mubr.f32.mxu0 0.0
    %4734 = vmatmul.mubr.f32.gmra.mxu0 %v4187
    %v4735 = vpop.f32.mrf.mxu0
    %v4736 = vadd.f32 0.0, %v4735
    %v4737 = vpop.f32.mrf.mxu0
    %4738 = vdwg.mxu0
    %v4739 = vadd.f32 %v4652, %v4736
    %v4740 = vmul.f32 %v4739, 0.5
    %v4741 = vtanh.pop %v4740
    %v4742 = vmul.f32 %v4741, 0.5
    %v4743 = vadd.f32 %v4742, 0.5
    %v4744 = vtanh.pop %v4651
    %v4745 = vmul.f32 %v4743, %v4744
    %v4746 = vld [vmem:[#allocation10] sm:$0xff]
    %v4747 = vld [vmem:[#allocation10 + $0x8] sm:$0xff]
    %v4748 = vld [vmem:[#allocation10 + $0x10] sm:$0xff]
    %v4749 = vld [vmem:[#allocation10 + $0x18] sm:$0xff]
    %v4750 = vld [vmem:[#allocation10 + $0x20] sm:$0xff]
    %v4751 = vld [vmem:[#allocation10 + $0x28] sm:$0xff]
    %v4752 = vld [vmem:[#allocation10 + $0x30] sm:$0xff]
    %v4753 = vld [vmem:[#allocation10 + $0x38] sm:$0xff]
    %v4754 = vld [vmem:[#allocation10 + $0x40] sm:$0xff]
    %v4755 = vld [vmem:[#allocation10 + $0x48] sm:$0xff]
    %v4756 = vld [vmem:[#allocation10 + $0x50] sm:$0xff]
    %v4757 = vld [vmem:[#allocation10 + $0x58] sm:$0xff]
    %v4758 = vld [vmem:[#allocation10 + $0x60] sm:$0xff]
    %v4759 = vld [vmem:[#allocation10 + $0x68] sm:$0xff]
    %v4760 = vld [vmem:[#allocation10 + $0x70] sm:$0xff]
    %v4761 = vld [vmem:[#allocation10 + $0x78] sm:$0xff]
    %v4762 = vld [vmem:[%s10] sm:$0x1]
    %v4764 = vlaneseq
    %v4765 = vshrl.u32 %v4764, 7
    %v4766 = vsub.s32 0, %v4765
    %v4767 = vrot.slane %v4762, %v4766
    %4769 = vmatprep.subr.mxu0 0.0
    %4770 = vmatpush1.msra.mxu0 %v4761
    %4771 = vmatprep.subr.mxu0 0.0
    %4772 = vmatpush1.msra.mxu0 %v4760
    %4773 = vmatprep.subr.mxu0 0.0
    %4774 = vmatpush1.msra.mxu0 %v4759
    %4775 = vmatprep.subr.mxu0 0.0
    %4776 = vmatpush1.msra.mxu0 %v4758
    %4777 = vmatprep.subr.mxu0 0.0
    %4778 = vmatpush1.msra.mxu0 %v4757
    %4779 = vmatprep.subr.mxu0 0.0
    %4780 = vmatpush1.msra.mxu0 %v4756
    %4781 = vmatprep.subr.mxu0 0.0
    %4782 = vmatpush1.msra.mxu0 %v4755
    %4783 = vmatprep.subr.mxu0 0.0
    %4784 = vmatpush1.msra.mxu0 %v4754
    %4785 = vmatprep.subr.mxu0 0.0
    %4786 = vmatpush1.msra.mxu0 %v4753
    %4787 = vmatprep.subr.mxu0 0.0
    %4788 = vmatpush1.msra.mxu0 %v4752
    %4789 = vmatprep.subr.mxu0 0.0
    %4790 = vmatpush1.msra.mxu0 %v4751
    %4791 = vmatprep.subr.mxu0 0.0
    %4792 = vmatpush1.msra.mxu0 %v4750
    %4793 = vmatprep.subr.mxu0 0.0
    %4794 = vmatpush1.msra.mxu0 %v4749
    %4795 = vmatprep.subr.mxu0 0.0
    %4796 = vmatpush1.msra.mxu0 %v4748
    %4797 = vmatprep.subr.mxu0 0.0
    %4798 = vmatpush1.msra.mxu0 %v4747
    %4799 = vmatprep.subr.mxu0 0.0
    %4800 = vmatpush1.msra.mxu0 %v4746
    %4801 = vmatprep.subr.mxu0 0.0
    %4802 = vmatpush2.msra.mxu0 0.0
    %4803 = vmatprep.subr.mxu0 0.0
    %4804 = vmatpush2.msra.mxu0 0.0
    %4805 = vmatprep.subr.mxu0 0.0
    %4806 = vmatpush2.msra.mxu0 0.0
    %4807 = vmatprep.subr.mxu0 0.0
    %4808 = vmatpush2.msra.mxu0 0.0
    %4809 = vmatprep.subr.mxu0 0.0
    %4810 = vmatpush2.msra.mxu0 0.0
    %4811 = vmatprep.subr.mxu0 0.0
    %4812 = vmatpush2.msra.mxu0 0.0
    %4813 = vmatprep.subr.mxu0 0.0
    %4814 = vmatpush2.msra.mxu0 0.0
    %4815 = vmatprep.subr.mxu0 0.0
    %4816 = vmatpush2.msra.mxu0 0.0
    %4817 = vmatprep.subr.mxu0 0.0
    %4818 = vmatpush2.msra.mxu0 0.0
    %4819 = vmatprep.subr.mxu0 0.0
    %4820 = vmatpush2.msra.mxu0 0.0
    %4821 = vmatprep.subr.mxu0 0.0
    %4822 = vmatpush2.msra.mxu0 0.0
    %4823 = vmatprep.subr.mxu0 0.0
    %4824 = vmatpush2.msra.mxu0 0.0
    %4825 = vmatprep.subr.mxu0 0.0
    %4826 = vmatpush2.msra.mxu0 0.0
    %4827 = vmatprep.subr.mxu0 0.0
    %4828 = vmatpush2.msra.mxu0 0.0
    %4829 = vmatprep.subr.mxu0 0.0
    %4830 = vmatpush2.msra.mxu0 0.0
    %4831 = vmatprep.subr.mxu0 0.0
    %4832 = vmatpush2.msra.mxu0 0.0
    %4833 = vmatprep.mubr.f32.mxu0 0.0
    %4834 = vmatmul.mubr.f32.gmra.mxu0 %v4745
    %v4835 = vpop.f32.mrf.mxu0
    %v4836 = vadd.f32 %v4767, %v4835
    %v4837 = vpop.f32.mrf.mxu0
    %4838 = vdwg.mxu0
    %v4839 = vtanh.pop %v4836
    %v4840 = vld [vmem:[#allocation11] sm:$0xff]
    %v4841 = vld [vmem:[#allocation11 + $0x8] sm:$0xff]
    %v4842 = vld [vmem:[#allocation11 + $0x10] sm:$0xff]
    %v4843 = vld [vmem:[#allocation11 + $0x18] sm:$0xff]
    %v4844 = vld [vmem:[#allocation11 + $0x20] sm:$0xff]
    %v4845 = vld [vmem:[#allocation11 + $0x28] sm:$0xff]
    %v4846 = vld [vmem:[#allocation11 + $0x30] sm:$0xff]
    %v4847 = vld [vmem:[#allocation11 + $0x38] sm:$0xff]
    %v4848 = vld [vmem:[#allocation11 + $0x40] sm:$0xff]
    %v4849 = vld [vmem:[#allocation11 + $0x48] sm:$0xff]
    %v4850 = vld [vmem:[#allocation11 + $0x50] sm:$0xff]
    %v4851 = vld [vmem:[#allocation11 + $0x58] sm:$0xff]
    %v4852 = vld [vmem:[#allocation11 + $0x60] sm:$0xff]
    %v4853 = vld [vmem:[#allocation11 + $0x68] sm:$0xff]
    %v4854 = vld [vmem:[#allocation11 + $0x70] sm:$0xff]
    %v4855 = vld [vmem:[#allocation11 + $0x78] sm:$0xff]
    %v4856 = vld [vmem:[%s12] sm:$0x1]
    %v4858 = vlaneseq
    %v4859 = vshrl.u32 %v4858, 7
    %v4860 = vsub.s32 0, %v4859
    %v4861 = vrot.slane %v4856, %v4860
    %4863 = vmatprep.subr.mxu0 0.0
    %4864 = vmatpush1.msra.mxu0 %v4855
    %4865 = vmatprep.subr.mxu0 0.0
    %4866 = vmatpush1.msra.mxu0 %v4854
    %4867 = vmatprep.subr.mxu0 0.0
    %4868 = vmatpush1.msra.mxu0 %v4853
    %4869 = vmatprep.subr.mxu0 0.0
    %4870 = vmatpush1.msra.mxu0 %v4852
    %4871 = vmatprep.subr.mxu0 0.0
    %4872 = vmatpush1.msra.mxu0 %v4851
    %4873 = vmatprep.subr.mxu0 0.0
    %4874 = vmatpush1.msra.mxu0 %v4850
    %4875 = vmatprep.subr.mxu0 0.0
    %4876 = vmatpush1.msra.mxu0 %v4849
    %4877 = vmatprep.subr.mxu0 0.0
    %4878 = vmatpush1.msra.mxu0 %v4848
    %4879 = vmatprep.subr.mxu0 0.0
    %4880 = vmatpush1.msra.mxu0 %v4847
    %4881 = vmatprep.subr.mxu0 0.0
    %4882 = vmatpush1.msra.mxu0 %v4846
    %4883 = vmatprep.subr.mxu0 0.0
    %4884 = vmatpush1.msra.mxu0 %v4845
    %4885 = vmatprep.subr.mxu0 0.0
    %4886 = vmatpush1.msra.mxu0 %v4844
    %4887 = vmatprep.subr.mxu0 0.0
    %4888 = vmatpush1.msra.mxu0 %v4843
    %4889 = vmatprep.subr.mxu0 0.0
    %4890 = vmatpush1.msra.mxu0 %v4842
    %4891 = vmatprep.subr.mxu0 0.0
    %4892 = vmatpush1.msra.mxu0 %v4841
    %4893 = vmatprep.subr.mxu0 0.0
    %4894 = vmatpush1.msra.mxu0 %v4840
    %4895 = vmatprep.subr.mxu0 0.0
    %4896 = vmatpush2.msra.mxu0 0.0
    %4897 = vmatprep.subr.mxu0 0.0
    %4898 = vmatpush2.msra.mxu0 0.0
    %4899 = vmatprep.subr.mxu0 0.0
    %4900 = vmatpush2.msra.mxu0 0.0
    %4901 = vmatprep.subr.mxu0 0.0
    %4902 = vmatpush2.msra.mxu0 0.0
    %4903 = vmatprep.subr.mxu0 0.0
    %4904 = vmatpush2.msra.mxu0 0.0
    %4905 = vmatprep.subr.mxu0 0.0
    %4906 = vmatpush2.msra.mxu0 0.0
    %4907 = vmatprep.subr.mxu0 0.0
    %4908 = vmatpush2.msra.mxu0 0.0
    %4909 = vmatprep.subr.mxu0 0.0
    %4910 = vmatpush2.msra.mxu0 0.0
    %4911 = vmatprep.subr.mxu0 0.0
    %4912 = vmatpush2.msra.mxu0 0.0
    %4913 = vmatprep.subr.mxu0 0.0
    %4914 = vmatpush2.msra.mxu0 0.0
    %4915 = vmatprep.subr.mxu0 0.0
    %4916 = vmatpush2.msra.mxu0 0.0
    %4917 = vmatprep.subr.mxu0 0.0
    %4918 = vmatpush2.msra.mxu0 0.0
    %4919 = vmatprep.subr.mxu0 0.0
    %4920 = vmatpush2.msra.mxu0 0.0
    %4921 = vmatprep.subr.mxu0 0.0
    %4922 = vmatpush2.msra.mxu0 0.0
    %4923 = vmatprep.subr.mxu0 0.0
    %4924 = vmatpush2.msra.mxu0 0.0
    %4925 = vmatprep.subr.mxu0 0.0
    %4926 = vmatpush2.msra.mxu0 0.0
    %4927 = vmatprep.mubr.f32.mxu0 0.0
    %4928 = vmatmul.mubr.f32.gmra.mxu0 %v4839
    %v4929 = vpop.f32.mrf.mxu0
    %v4930 = vadd.f32 %v4861, %v4929
    %v4931 = vpop.f32.mrf.mxu0
    %4932 = vdwg.mxu0
    %4933 = vst [vmem:[%s13 + $0x38] sm:$0xff] %v4930
    %4934 = vst [vmem:[%s14] sm:$0xff] %v4745
    %4935 = vst [vmem:[%s15] sm:$0xff] %v4651
    // Predicated region
    $region78: #{decoder_forward.1} parent=1 // pred_check
      _
    $region79: #{decoder_forward.1} parent=1 // pred_check_branch
      %4937 = sbr.rel (0) target = $region81
    $region80: #{decoder_forward.1} parent=1 // pred_region
      _
    $region81: #{decoder_forward.1} parent=1 // pred_fallthru
      _
    // Predicated region
    $region82: #{decoder_forward.1} parent=1 // pred_check
      _
    $region83: #{decoder_forward.1} parent=1 // pred_check_branch
      %4939 = sbr.rel (0) target = $region85
    $region84: #{decoder_forward.1} parent=1 // pred_region
      _
    $region85: #{decoder_forward.1} parent=1 // pred_fallthru
      _
    // Predicated region
    $region86: #{decoder_forward.1} parent=1 // pred_check
      _
    $region87: #{decoder_forward.1} parent=1 // pred_check_branch
      %4941 = sbr.rel (0) target = $region89
    $region88: #{decoder_forward.1} parent=1 // pred_region
      _
    $region89: #{decoder_forward.1} parent=1 // pred_fallthru
      _
    // Predicated region
    $region90: #{decoder_forward.1} parent=1 // pred_check
      _
    $region91: #{decoder_forward.1} parent=1 // pred_check_branch
      %4943 = sbr.rel (0) target = $region93
    $region92: #{decoder_forward.1} parent=1 // pred_region
      _
    $region93: #{decoder_forward.1} parent=1 // pred_fallthru
      _
    // Predicated region
    $region94: #{decoder_forward.1} parent=1 // pred_check
      _
    $region95: #{decoder_forward.1} parent=1 // pred_check_branch
      %4945 = sbr.rel (0) target = $region97
    $region96: #{decoder_forward.1} parent=1 // pred_region
      _
    $region97: #{decoder_forward.1} parent=1 // pred_fallthru
      _
    // Predicated region
    $region98: #{decoder_forward.1} parent=1 // pred_check
      _
    $region99: #{decoder_forward.1} parent=1 // pred_check_branch
      %4947 = sbr.rel (0) target = $region101
    $region100: #{decoder_forward.1} parent=1 // pred_region
      _
    $region101: #{decoder_forward.1} parent=1 // pred_fallthru
      _
    %4948 = vsyncpa [#allocation4], 1
    %4949 = vsyncpa [#allocation6], 1
    %4950 = vsyncpa [#allocation9], 1
    %4951 = vsyncpa [#allocation12], 1

</llo_original>
